<compile_context>
chip_gen: v7x
topology: tpu7x:2x2x1
jax: 0.10.0
libtpu: 0.0.40
codegen_flags: <defaults>
</compile_context>

<pallas_src>
import functools

import jax
import jax.numpy as jnp
from jax import lax
from jax.experimental import pallas as pl
from jax.experimental.pallas import tpu as pltpu

K = 7                 # spatial kernel size
P = (K - 1) // 2      # conv padding = 3


def _spatial_attention_kernel(x_ref, w_ref, o_ref, pad_ref, shift_ref, *, Nb, C, H, W):
    # x_ref    : (Nb, C, H, W)      VMEM  unpadded input block
    # w_ref    : (2*K*K,)           SMEM  flattened conv weight, idx = c*K*K + kh*K + kw
    # o_ref    : (Nb, C, H, W)      VMEM  output block
    # pad_ref  : (2, H+2P, W+2P)    VMEM  zero-padded pooled maps (f32 scratch)
    # shift_ref: (2, K, H+2P, W)    VMEM  lane-shifted copies of the padded maps (f32)

    # Zero the padded scratch once per grid step; only the interior is rewritten per
    # image below, so the halo stays zero (this realizes the conv's zero padding).
    pad_ref[...] = jnp.zeros_like(pad_ref)

    for b in range(Nb):                       # Nb is small (capped at 8) -> cheap unroll
        # ---- ChannelPool: max / mean over channels, f32 accumulation ----
        xb = x_ref[b].astype(jnp.float32)               # (C, H, W), vreg-resident
        cmax = jnp.max(xb, axis=0)                      # (H, W)
        cmean = jnp.sum(xb, axis=0) * (1.0 / C)         # (H, W)

        # ---- write the pooled maps into the zero-padded scratch (interior only) ----
        pad_ref[0, P:P + H, P:P + W] = cmax
        pad_ref[1, P:P + H, P:P + W] = cmean

        # ---- hoist the 7 lane offsets: shift_ref[m, kw] = padded_map_m[:, kw:kw+W] ----
        # 14 small lane-shifted copies total; the conv loop below then only needs
        # lane-aligned loads at sublane offsets (no per-tap lane shift).
        for m in range(2):
            pm = pad_ref[m]                              # (H+2P, W+2P) value
            for kw in range(K):
                shift_ref[m, kw] = pm[:, kw:kw + W]

        # ---- 7x7 conv, 2 in-channels -> 1 out-channel, stride 1, no bias ----
        acc = jnp.zeros((H, W), jnp.float32)
        for kh in range(K):
            for kw in range(K):
                acc = acc + w_ref[kh * K + kw] * shift_ref[0, kw, kh:kh + H, :]
                acc = acc + w_ref[K * K + kh * K + kw] * shift_ref[1, kw, kh:kh + H, :]

        scale = jax.nn.sigmoid(acc)                      # (H, W) f32

        # ---- broadcast multiply against the unpadded input block and store ----
        o_ref[b] = (x_ref[b] * scale[None, :, :].astype(x_ref.dtype)).astype(o_ref.dtype)


def _pick_batch_block(N, bytes_per_image, *, max_unroll=8, vmem_budget=24 << 20):
    """Largest divisor of N that keeps (double-buffered in + out) blocks under budget
    and keeps the in-kernel batch unroll modest."""
    cap = max(1, min(max_unroll, vmem_budget // (4 * max(1, bytes_per_image))))
    nb = 1
    for cand in range(1, min(N, cap) + 1):
        if N % cand == 0:
            nb = cand
    return nb


def spatial_attention(x, w):
    """x: (N, C, H, W) NCHW; w: (1, 2, K, K) OIHW conv weight (no bias)."""
    N, C, H, W = x.shape
    assert w.shape == (1, 2, K, K), w.shape
    Hp, Wp = H + 2 * P, W + 2 * P

    bytes_per_image = C * H * W * x.dtype.itemsize
    Nb = _pick_batch_block(N, bytes_per_image)

    w_flat = w.reshape(-1).astype(jnp.float32)           # (2*K*K,) for SMEM scalar reads

    kernel = functools.partial(_spatial_attention_kernel, Nb=Nb, C=C, H=H, W=W)
    return pl.pallas_call(
        kernel,
        out_shape=jax.ShapeDtypeStruct((N, C, H, W), x.dtype),
        grid=(N // Nb,),
        in_specs=[
            pl.BlockSpec((Nb, C, H, W), lambda i: (i, 0, 0, 0)),   # Nb images per step
            pl.BlockSpec(memory_space=pltpu.MemorySpace.SMEM),     # whole weight in SMEM
        ],
        out_specs=pl.BlockSpec((Nb, C, H, W), lambda i: (i, 0, 0, 0)),
        scratch_shapes=[
            pltpu.VMEM((2, Hp, Wp), jnp.float32),                  # zero-padded pooled maps
            pltpu.VMEM((2, K, Hp, W), jnp.float32),                # lane-shifted copies
        ],
        compiler_params=pltpu.CompilerParams(
            dimension_semantics=("parallel",),
            vmem_limit_bytes=48 * 1024 * 1024,
        ),
    )(x, w_flat)


def spatial_attention_reference(x, w):
    """Pure-JAX reference mirroring the PyTorch module."""
    cmax = jnp.max(x, axis=1, keepdims=True)
    cmean = jnp.mean(x, axis=1, keepdims=True)
    pooled = jnp.concatenate([cmax, cmean], axis=1)               # (N, 2, H, W)
    conv = lax.conv_general_dilated(
        pooled, w, window_strides=(1, 1), padding=((P, P), (P, P)),
        dimension_numbers=("NCHW", "OIHW", "NCHW"))               # (N, 1, H, W)
    return x * jax.nn.sigmoid(conv)


if __name__ == "__main__":
    key = jax.random.PRNGKey(0)
    kx, kw = jax.random.split(key)

    N, Cin, H, W = 2, 4, 16, 16
    x = jax.random.normal(kx, (N, Cin, H, W), dtype=jnp.float32)

    # Deterministic conv weight init (Conv2d-style uniform in [-1/sqrt(fan_in), 1/sqrt(fan_in)]).
    fan_in = 2 * K * K
    bound = 1.0 / (fan_in ** 0.5)
    w = jax.random.uniform(kw, (1, 2, K, K), jnp.float32, minval=-bound, maxval=bound)

    out = jax.block_until_ready(spatial_attention(x, w))
    ref = spatial_attention_reference(x, w)

    assert out.shape == x.shape, (out.shape, x.shape)
    assert jnp.allclose(out, ref, atol=1e-5, rtol=1e-5), float(jnp.max(jnp.abs(out - ref)))
    print("KERNEL_OK")
</pallas_src>

<mosaic_0001>
module attributes {stable_mosaic.version = 11 : i64} {
  func.func @_spatial_attention_kernel(%arg0: i32, %arg1: memref<2x4x16x16xf32, #tpu.memory_space<vmem>>, %arg2: memref<98xf32, #tpu.memory_space<smem>>, %arg3: memref<2x4x16x16xf32, #tpu.memory_space<vmem>>, %arg4: memref<2x22x22xf32, #tpu.memory_space<vmem>>, %arg5: memref<2x7x22x16xf32, #tpu.memory_space<vmem>>) attributes {dimension_semantics = [#tpu.dimension_semantics<parallel>], iteration_bounds = array<i64: 1>, scalar_prefetch = 0 : i64, scratch_operands = 2 : i64, tpu.core_type = #tpu.core_type<tc>, window_params = [{transform_indices = @transform_0, window_bounds = array<i64: 2, 4, 16, 16>}, {transform_indices = @transform_1, window_bounds = array<i64: 98>}, {transform_indices = @transform_2, window_bounds = array<i64: 2, 4, 16, 16>}]} {
    %cst = arith.constant 0.000000e+00 : f32
    %0 = vector.broadcast %cst : f32 to vector<2x22x22xf32>
    %c0 = arith.constant 0 : index
    %c0_0 = arith.constant 0 : index
    %c0_1 = arith.constant 0 : index
    %1 = vector.load %arg4[%c0, %c0_0, %c0_1] : memref<2x22x22xf32, #tpu.memory_space<vmem>>, vector<2x22x22xf32>
    tpu.vector_store %arg4[%c0, %c0_0, %c0_1], %0 {strides = array<i32>} : memref<2x22x22xf32, #tpu.memory_space<vmem>>, vector<2x22x22xf32>,
    %c0_2 = arith.constant 0 : index
    %c0_3 = arith.constant 0 : index
    %c0_4 = arith.constant 0 : index
    %c0_5 = arith.constant 0 : index
    %2 = vector.load %arg1[%c0_2, %c0_3, %c0_4, %c0_5] : memref<2x4x16x16xf32, #tpu.memory_space<vmem>>, vector<1x4x16x16xf32>
    %3 = vector.shape_cast %2 : vector<1x4x16x16xf32> to vector<4x16x16xf32>
    %cst_6 = arith.constant dense<0xFF800000> : vector<16x16xf32>
    %4 = vector.multi_reduction <maximumf>, %3, %cst_6 [0] : vector<4x16x16xf32> to vector<16x16xf32>
    %cst_7 = arith.constant dense<0.000000e+00> : vector<16x16xf32>
    %5 = vector.multi_reduction <add>, %3, %cst_7 [0] : vector<4x16x16xf32> to vector<16x16xf32>
    %cst_8 = arith.constant 2.500000e-01 : f32
    %6 = vector.broadcast %cst_8 : f32 to vector<16x16xf32>
    %7 = arith.mulf %5, %6 : vector<16x16xf32>
    %c0_9 = arith.constant 0 : index
    %c3 = arith.constant 3 : index
    %c3_10 = arith.constant 3 : index
    %8 = vector.load %arg4[%c0_9, %c3, %c3_10] : memref<2x22x22xf32, #tpu.memory_space<vmem>>, vector<1x16x16xf32>
    %9 = vector.shape_cast %8 : vector<1x16x16xf32> to vector<16x16xf32>
    %10 = vector.shape_cast %4 : vector<16x16xf32> to vector<1x16x16xf32>
    tpu.vector_store %arg4[%c0_9, %c3, %c3_10], %10 {strides = array<i32>} : memref<2x22x22xf32, #tpu.memory_space<vmem>>, vector<1x16x16xf32>,
    %c1 = arith.constant 1 : index
    %c3_11 = arith.constant 3 : index
    %c3_12 = arith.constant 3 : index
    %11 = vector.load %arg4[%c1, %c3_11, %c3_12] : memref<2x22x22xf32, #tpu.memory_space<vmem>>, vector<1x16x16xf32>
    %12 = vector.shape_cast %11 : vector<1x16x16xf32> to vector<16x16xf32>
    %13 = vector.shape_cast %7 : vector<16x16xf32> to vector<1x16x16xf32>
    tpu.vector_store %arg4[%c1, %c3_11, %c3_12], %13 {strides = array<i32>} : memref<2x22x22xf32, #tpu.memory_space<vmem>>, vector<1x16x16xf32>,
    %c0_13 = arith.constant 0 : index
    %c0_14 = arith.constant 0 : index
    %c0_15 = arith.constant 0 : index
    %14 = vector.load %arg4[%c0_13, %c0_14, %c0_15] : memref<2x22x22xf32, #tpu.memory_space<vmem>>, vector<1x22x22xf32>
    %15 = vector.shape_cast %14 : vector<1x22x22xf32> to vector<22x22xf32>
    %16 = vector.extract_strided_slice %15 {offsets = [0, 0], sizes = [22, 16], strides = [1, 1]} : vector<22x22xf32> to vector<22x16xf32>
    %c0_16 = arith.constant 0 : index
    %c0_17 = arith.constant 0 : index
    %c0_18 = arith.constant 0 : index
    %c0_19 = arith.constant 0 : index
    %17 = vector.load %arg5[%c0_16, %c0_17, %c0_18, %c0_19] : memref<2x7x22x16xf32, #tpu.memory_space<vmem>>, vector<1x1x22x16xf32>
    %18 = vector.shape_cast %17 : vector<1x1x22x16xf32> to vector<22x16xf32>
    %19 = vector.shape_cast %16 : vector<22x16xf32> to vector<1x1x22x16xf32>
    tpu.vector_store %arg5[%c0_16, %c0_17, %c0_18, %c0_19], %19 {strides = array<i32>} : memref<2x7x22x16xf32, #tpu.memory_space<vmem>>, vector<1x1x22x16xf32>,
    %20 = vector.extract_strided_slice %15 {offsets = [0, 1], sizes = [22, 16], strides = [1, 1]} : vector<22x22xf32> to vector<22x16xf32>
    %c0_20 = arith.constant 0 : index
    %c1_21 = arith.constant 1 : index
    %c0_22 = arith.constant 0 : index
    %c0_23 = arith.constant 0 : index
    %21 = vector.load %arg5[%c0_20, %c1_21, %c0_22, %c0_23] : memref<2x7x22x16xf32, #tpu.memory_space<vmem>>, vector<1x1x22x16xf32>
    %22 = vector.shape_cast %21 : vector<1x1x22x16xf32> to vector<22x16xf32>
    %23 = vector.shape_cast %20 : vector<22x16xf32> to vector<1x1x22x16xf32>
    tpu.vector_store %arg5[%c0_20, %c1_21, %c0_22, %c0_23], %23 {strides = array<i32>} : memref<2x7x22x16xf32, #tpu.memory_space<vmem>>, vector<1x1x22x16xf32>,
    %24 = vector.extract_strided_slice %15 {offsets = [0, 2], sizes = [22, 16], strides = [1, 1]} : vector<22x22xf32> to vector<22x16xf32>
    %c0_24 = arith.constant 0 : index
    %c2 = arith.constant 2 : index
    %c0_25 = arith.constant 0 : index
    %c0_26 = arith.constant 0 : index
    %25 = vector.load %arg5[%c0_24, %c2, %c0_25, %c0_26] : memref<2x7x22x16xf32, #tpu.memory_space<vmem>>, vector<1x1x22x16xf32>
    %26 = vector.shape_cast %25 : vector<1x1x22x16xf32> to vector<22x16xf32>
    %27 = vector.shape_cast %24 : vector<22x16xf32> to vector<1x1x22x16xf32>
    tpu.vector_store %arg5[%c0_24, %c2, %c0_25, %c0_26], %27 {strides = array<i32>} : memref<2x7x22x16xf32, #tpu.memory_space<vmem>>, vector<1x1x22x16xf32>,
    %28 = vector.extract_strided_slice %15 {offsets = [0, 3], sizes = [22, 16], strides = [1, 1]} : vector<22x22xf32> to vector<22x16xf32>
    %c0_27 = arith.constant 0 : index
    %c3_28 = arith.constant 3 : index
    %c0_29 = arith.constant 0 : index
    %c0_30 = arith.constant 0 : index
    %29 = vector.load %arg5[%c0_27, %c3_28, %c0_29, %c0_30] : memref<2x7x22x16xf32, #tpu.memory_space<vmem>>, vector<1x1x22x16xf32>
    %30 = vector.shape_cast %29 : vector<1x1x22x16xf32> to vector<22x16xf32>
    %31 = vector.shape_cast %28 : vector<22x16xf32> to vector<1x1x22x16xf32>
    tpu.vector_store %arg5[%c0_27, %c3_28, %c0_29, %c0_30], %31 {strides = array<i32>} : memref<2x7x22x16xf32, #tpu.memory_space<vmem>>, vector<1x1x22x16xf32>,
    %32 = vector.extract_strided_slice %15 {offsets = [0, 4], sizes = [22, 16], strides = [1, 1]} : vector<22x22xf32> to vector<22x16xf32>
    %c0_31 = arith.constant 0 : index
    %c4 = arith.constant 4 : index
    %c0_32 = arith.constant 0 : index
    %c0_33 = arith.constant 0 : index
    %33 = vector.load %arg5[%c0_31, %c4, %c0_32, %c0_33] : memref<2x7x22x16xf32, #tpu.memory_space<vmem>>, vector<1x1x22x16xf32>
    %34 = vector.shape_cast %33 : vector<1x1x22x16xf32> to vector<22x16xf32>
    %35 = vector.shape_cast %32 : vector<22x16xf32> to vector<1x1x22x16xf32>
    tpu.vector_store %arg5[%c0_31, %c4, %c0_32, %c0_33], %35 {strides = array<i32>} : memref<2x7x22x16xf32, #tpu.memory_space<vmem>>, vector<1x1x22x16xf32>,
    %36 = vector.extract_strided_slice %15 {offsets = [0, 5], sizes = [22, 16], strides = [1, 1]} : vector<22x22xf32> to vector<22x16xf32>
    %c0_34 = arith.constant 0 : index
    %c5 = arith.constant 5 : index
    %c0_35 = arith.constant 0 : index
    %c0_36 = arith.constant 0 : index
    %37 = vector.load %arg5[%c0_34, %c5, %c0_35, %c0_36] : memref<2x7x22x16xf32, #tpu.memory_space<vmem>>, vector<1x1x22x16xf32>
    %38 = vector.shape_cast %37 : vector<1x1x22x16xf32> to vector<22x16xf32>
    %39 = vector.shape_cast %36 : vector<22x16xf32> to vector<1x1x22x16xf32>
    tpu.vector_store %arg5[%c0_34, %c5, %c0_35, %c0_36], %39 {strides = array<i32>} : memref<2x7x22x16xf32, #tpu.memory_space<vmem>>, vector<1x1x22x16xf32>,
    %40 = vector.extract_strided_slice %15 {offsets = [0, 6], sizes = [22, 16], strides = [1, 1]} : vector<22x22xf32> to vector<22x16xf32>
    %c0_37 = arith.constant 0 : index
    %c6 = arith.constant 6 : index
    %c0_38 = arith.constant 0 : index
    %c0_39 = arith.constant 0 : index
    %41 = vector.load %arg5[%c0_37, %c6, %c0_38, %c0_39] : memref<2x7x22x16xf32, #tpu.memory_space<vmem>>, vector<1x1x22x16xf32>
    %42 = vector.shape_cast %41 : vector<1x1x22x16xf32> to vector<22x16xf32>
    %43 = vector.shape_cast %40 : vector<22x16xf32> to vector<1x1x22x16xf32>
    tpu.vector_store %arg5[%c0_37, %c6, %c0_38, %c0_39], %43 {strides = array<i32>} : memref<2x7x22x16xf32, #tpu.memory_space<vmem>>, vector<1x1x22x16xf32>,
    %c1_40 = arith.constant 1 : index
    %c0_41 = arith.constant 0 : index
    %c0_42 = arith.constant 0 : index
    %44 = vector.load %arg4[%c1_40, %c0_41, %c0_42] : memref<2x22x22xf32, #tpu.memory_space<vmem>>, vector<1x22x22xf32>
    %45 = vector.shape_cast %44 : vector<1x22x22xf32> to vector<22x22xf32>
    %46 = vector.extract_strided_slice %45 {offsets = [0, 0], sizes = [22, 16], strides = [1, 1]} : vector<22x22xf32> to vector<22x16xf32>
    %c1_43 = arith.constant 1 : index
    %c0_44 = arith.constant 0 : index
    %c0_45 = arith.constant 0 : index
    %c0_46 = arith.constant 0 : index
    %47 = vector.load %arg5[%c1_43, %c0_44, %c0_45, %c0_46] : memref<2x7x22x16xf32, #tpu.memory_space<vmem>>, vector<1x1x22x16xf32>
    %48 = vector.shape_cast %47 : vector<1x1x22x16xf32> to vector<22x16xf32>
    %49 = vector.shape_cast %46 : vector<22x16xf32> to vector<1x1x22x16xf32>
    tpu.vector_store %arg5[%c1_43, %c0_44, %c0_45, %c0_46], %49 {strides = array<i32>} : memref<2x7x22x16xf32, #tpu.memory_space<vmem>>, vector<1x1x22x16xf32>,
    %50 = vector.extract_strided_slice %45 {offsets = [0, 1], sizes = [22, 16], strides = [1, 1]} : vector<22x22xf32> to vector<22x16xf32>
    %c1_47 = arith.constant 1 : index
    %c1_48 = arith.constant 1 : index
    %c0_49 = arith.constant 0 : index
    %c0_50 = arith.constant 0 : index
    %51 = vector.load %arg5[%c1_47, %c1_48, %c0_49, %c0_50] : memref<2x7x22x16xf32, #tpu.memory_space<vmem>>, vector<1x1x22x16xf32>
    %52 = vector.shape_cast %51 : vector<1x1x22x16xf32> to vector<22x16xf32>
    %53 = vector.shape_cast %50 : vector<22x16xf32> to vector<1x1x22x16xf32>
    tpu.vector_store %arg5[%c1_47, %c1_48, %c0_49, %c0_50], %53 {strides = array<i32>} : memref<2x7x22x16xf32, #tpu.memory_space<vmem>>, vector<1x1x22x16xf32>,
    %54 = vector.extract_strided_slice %45 {offsets = [0, 2], sizes = [22, 16], strides = [1, 1]} : vector<22x22xf32> to vector<22x16xf32>
    %c1_51 = arith.constant 1 : index
    %c2_52 = arith.constant 2 : index
    %c0_53 = arith.constant 0 : index
    %c0_54 = arith.constant 0 : index
    %55 = vector.load %arg5[%c1_51, %c2_52, %c0_53, %c0_54] : memref<2x7x22x16xf32, #tpu.memory_space<vmem>>, vector<1x1x22x16xf32>
    %56 = vector.shape_cast %55 : vector<1x1x22x16xf32> to vector<22x16xf32>
    %57 = vector.shape_cast %54 : vector<22x16xf32> to vector<1x1x22x16xf32>
    tpu.vector_store %arg5[%c1_51, %c2_52, %c0_53, %c0_54], %57 {strides = array<i32>} : memref<2x7x22x16xf32, #tpu.memory_space<vmem>>, vector<1x1x22x16xf32>,
    %58 = vector.extract_strided_slice %45 {offsets = [0, 3], sizes = [22, 16], strides = [1, 1]} : vector<22x22xf32> to vector<22x16xf32>
    %c1_55 = arith.constant 1 : index
    %c3_56 = arith.constant 3 : index
    %c0_57 = arith.constant 0 : index
    %c0_58 = arith.constant 0 : index
    %59 = vector.load %arg5[%c1_55, %c3_56, %c0_57, %c0_58] : memref<2x7x22x16xf32, #tpu.memory_space<vmem>>, vector<1x1x22x16xf32>
    %60 = vector.shape_cast %59 : vector<1x1x22x16xf32> to vector<22x16xf32>
    %61 = vector.shape_cast %58 : vector<22x16xf32> to vector<1x1x22x16xf32>
    tpu.vector_store %arg5[%c1_55, %c3_56, %c0_57, %c0_58], %61 {strides = array<i32>} : memref<2x7x22x16xf32, #tpu.memory_space<vmem>>, vector<1x1x22x16xf32>,
    %62 = vector.extract_strided_slice %45 {offsets = [0, 4], sizes = [22, 16], strides = [1, 1]} : vector<22x22xf32> to vector<22x16xf32>
    %c1_59 = arith.constant 1 : index
    %c4_60 = arith.constant 4 : index
    %c0_61 = arith.constant 0 : index
    %c0_62 = arith.constant 0 : index
    %63 = vector.load %arg5[%c1_59, %c4_60, %c0_61, %c0_62] : memref<2x7x22x16xf32, #tpu.memory_space<vmem>>, vector<1x1x22x16xf32>
    %64 = vector.shape_cast %63 : vector<1x1x22x16xf32> to vector<22x16xf32>
    %65 = vector.shape_cast %62 : vector<22x16xf32> to vector<1x1x22x16xf32>
    tpu.vector_store %arg5[%c1_59, %c4_60, %c0_61, %c0_62], %65 {strides = array<i32>} : memref<2x7x22x16xf32, #tpu.memory_space<vmem>>, vector<1x1x22x16xf32>,
    %66 = vector.extract_strided_slice %45 {offsets = [0, 5], sizes = [22, 16], strides = [1, 1]} : vector<22x22xf32> to vector<22x16xf32>
    %c1_63 = arith.constant 1 : index
    %c5_64 = arith.constant 5 : index
    %c0_65 = arith.constant 0 : index
    %c0_66 = arith.constant 0 : index
    %67 = vector.load %arg5[%c1_63, %c5_64, %c0_65, %c0_66] : memref<2x7x22x16xf32, #tpu.memory_space<vmem>>, vector<1x1x22x16xf32>
    %68 = vector.shape_cast %67 : vector<1x1x22x16xf32> to vector<22x16xf32>
    %69 = vector.shape_cast %66 : vector<22x16xf32> to vector<1x1x22x16xf32>
    tpu.vector_store %arg5[%c1_63, %c5_64, %c0_65, %c0_66], %69 {strides = array<i32>} : memref<2x7x22x16xf32, #tpu.memory_space<vmem>>, vector<1x1x22x16xf32>,
    %70 = vector.extract_strided_slice %45 {offsets = [0, 6], sizes = [22, 16], strides = [1, 1]} : vector<22x22xf32> to vector<22x16xf32>
    %c1_67 = arith.constant 1 : index
    %c6_68 = arith.constant 6 : index
    %c0_69 = arith.constant 0 : index
    %c0_70 = arith.constant 0 : index
    %71 = vector.load %arg5[%c1_67, %c6_68, %c0_69, %c0_70] : memref<2x7x22x16xf32, #tpu.memory_space<vmem>>, vector<1x1x22x16xf32>
    %72 = vector.shape_cast %71 : vector<1x1x22x16xf32> to vector<22x16xf32>
    %73 = vector.shape_cast %70 : vector<22x16xf32> to vector<1x1x22x16xf32>
    tpu.vector_store %arg5[%c1_67, %c6_68, %c0_69, %c0_70], %73 {strides = array<i32>} : memref<2x7x22x16xf32, #tpu.memory_space<vmem>>, vector<1x1x22x16xf32>,
    %cst_71 = arith.constant 0.000000e+00 : f32
    %74 = vector.broadcast %cst_71 : f32 to vector<16x16xf32>
    %c0_72 = arith.constant 0 : index
    %75 = memref.load %arg2[%c0_72] : memref<98xf32, #tpu.memory_space<smem>>
    %c0_73 = arith.constant 0 : index
    %c0_74 = arith.constant 0 : index
    %c0_75 = arith.constant 0 : index
    %c0_76 = arith.constant 0 : index
    %76 = vector.load %arg5[%c0_73, %c0_74, %c0_75, %c0_76] : memref<2x7x22x16xf32, #tpu.memory_space<vmem>>, vector<1x1x16x16xf32>
    %77 = vector.shape_cast %76 : vector<1x1x16x16xf32> to vector<16x16xf32>
    %78 = vector.broadcast %75 : f32 to vector<16x16xf32>
    %79 = arith.mulf %78, %77 : vector<16x16xf32>
    %80 = arith.addf %74, %79 : vector<16x16xf32>
    %c49 = arith.constant 49 : index
    %81 = memref.load %arg2[%c49] : memref<98xf32, #tpu.memory_space<smem>>
    %c1_77 = arith.constant 1 : index
    %c0_78 = arith.constant 0 : index
    %c0_79 = arith.constant 0 : index
    %c0_80 = arith.constant 0 : index
    %82 = vector.load %arg5[%c1_77, %c0_78, %c0_79, %c0_80] : memref<2x7x22x16xf32, #tpu.memory_space<vmem>>, vector<1x1x16x16xf32>
    %83 = vector.shape_cast %82 : vector<1x1x16x16xf32> to vector<16x16xf32>
    %84 = vector.broadcast %81 : f32 to vector<16x16xf32>
    %85 = arith.mulf %84, %83 : vector<16x16xf32>
    %86 = arith.addf %80, %85 : vector<16x16xf32>
    %c1_81 = arith.constant 1 : index
    %87 = memref.load %arg2[%c1_81] : memref<98xf32, #tpu.memory_space<smem>>
    %c0_82 = arith.constant 0 : index
    %c1_83 = arith.constant 1 : index
    %c0_84 = arith.constant 0 : index
    %c0_85 = arith.constant 0 : index
    %88 = vector.load %arg5[%c0_82, %c1_83, %c0_84, %c0_85] : memref<2x7x22x16xf32, #tpu.memory_space<vmem>>, vector<1x1x16x16xf32>
    %89 = vector.shape_cast %88 : vector<1x1x16x16xf32> to vector<16x16xf32>
    %90 = vector.broadcast %87 : f32 to vector<16x16xf32>
    %91 = arith.mulf %90, %89 : vector<16x16xf32>
    %92 = arith.addf %86, %91 : vector<16x16xf32>
    %c50 = arith.constant 50 : index
    %93 = memref.load %arg2[%c50] : memref<98xf32, #tpu.memory_space<smem>>
    %c1_86 = arith.constant 1 : index
    %c1_87 = arith.constant 1 : index
    %c0_88 = arith.constant 0 : index
    %c0_89 = arith.constant 0 : index
    %94 = vector.load %arg5[%c1_86, %c1_87, %c0_88, %c0_89] : memref<2x7x22x16xf32, #tpu.memory_space<vmem>>, vector<1x1x16x16xf32>
    %95 = vector.shape_cast %94 : vector<1x1x16x16xf32> to vector<16x16xf32>
    %96 = vector.broadcast %93 : f32 to vector<16x16xf32>
    %97 = arith.mulf %96, %95 : vector<16x16xf32>
    %98 = arith.addf %92, %97 : vector<16x16xf32>
    %c2_90 = arith.constant 2 : index
    %99 = memref.load %arg2[%c2_90] : memref<98xf32, #tpu.memory_space<smem>>
    %c0_91 = arith.constant 0 : index
    %c2_92 = arith.constant 2 : index
    %c0_93 = arith.constant 0 : index
    %c0_94 = arith.constant 0 : index
    %100 = vector.load %arg5[%c0_91, %c2_92, %c0_93, %c0_94] : memref<2x7x22x16xf32, #tpu.memory_space<vmem>>, vector<1x1x16x16xf32>
    %101 = vector.shape_cast %100 : vector<1x1x16x16xf32> to vector<16x16xf32>
    %102 = vector.broadcast %99 : f32 to vector<16x16xf32>
    %103 = arith.mulf %102, %101 : vector<16x16xf32>
    %104 = arith.addf %98, %103 : vector<16x16xf32>
    %c51 = arith.constant 51 : index
    %105 = memref.load %arg2[%c51] : memref<98xf32, #tpu.memory_space<smem>>
    %c1_95 = arith.constant 1 : index
    %c2_96 = arith.constant 2 : index
    %c0_97 = arith.constant 0 : index
    %c0_98 = arith.constant 0 : index
    %106 = vector.load %arg5[%c1_95, %c2_96, %c0_97, %c0_98] : memref<2x7x22x16xf32, #tpu.memory_space<vmem>>, vector<1x1x16x16xf32>
    %107 = vector.shape_cast %106 : vector<1x1x16x16xf32> to vector<16x16xf32>
    %108 = vector.broadcast %105 : f32 to vector<16x16xf32>
    %109 = arith.mulf %108, %107 : vector<16x16xf32>
    %110 = arith.addf %104, %109 : vector<16x16xf32>
    %c3_99 = arith.constant 3 : index
    %111 = memref.load %arg2[%c3_99] : memref<98xf32, #tpu.memory_space<smem>>
    %c0_100 = arith.constant 0 : index
    %c3_101 = arith.constant 3 : index
    %c0_102 = arith.constant 0 : index
    %c0_103 = arith.constant 0 : index
    %112 = vector.load %arg5[%c0_100, %c3_101, %c0_102, %c0_103] : memref<2x7x22x16xf32, #tpu.memory_space<vmem>>, vector<1x1x16x16xf32>
    %113 = vector.shape_cast %112 : vector<1x1x16x16xf32> to vector<16x16xf32>
    %114 = vector.broadcast %111 : f32 to vector<16x16xf32>
    %115 = arith.mulf %114, %113 : vector<16x16xf32>
    %116 = arith.addf %110, %115 : vector<16x16xf32>
    %c52 = arith.constant 52 : index
    %117 = memref.load %arg2[%c52] : memref<98xf32, #tpu.memory_space<smem>>
    %c1_104 = arith.constant 1 : index
    %c3_105 = arith.constant 3 : index
    %c0_106 = arith.constant 0 : index
    %c0_107 = arith.constant 0 : index
    %118 = vector.load %arg5[%c1_104, %c3_105, %c0_106, %c0_107] : memref<2x7x22x16xf32, #tpu.memory_space<vmem>>, vector<1x1x16x16xf32>
    %119 = vector.shape_cast %118 : vector<1x1x16x16xf32> to vector<16x16xf32>
    %120 = vector.broadcast %117 : f32 to vector<16x16xf32>
    %121 = arith.mulf %120, %119 : vector<16x16xf32>
    %122 = arith.addf %116, %121 : vector<16x16xf32>
    %c4_108 = arith.constant 4 : index
    %123 = memref.load %arg2[%c4_108] : memref<98xf32, #tpu.memory_space<smem>>
    %c0_109 = arith.constant 0 : index
    %c4_110 = arith.constant 4 : index
    %c0_111 = arith.constant 0 : index
    %c0_112 = arith.constant 0 : index
    %124 = vector.load %arg5[%c0_109, %c4_110, %c0_111, %c0_112] : memref<2x7x22x16xf32, #tpu.memory_space<vmem>>, vector<1x1x16x16xf32>
    %125 = vector.shape_cast %124 : vector<1x1x16x16xf32> to vector<16x16xf32>
    %126 = vector.broadcast %123 : f32 to vector<16x16xf32>
    %127 = arith.mulf %126, %125 : vector<16x16xf32>
    %128 = arith.addf %122, %127 : vector<16x16xf32>
    %c53 = arith.constant 53 : index
    %129 = memref.load %arg2[%c53] : memref<98xf32, #tpu.memory_space<smem>>
    %c1_113 = arith.constant 1 : index
    %c4_114 = arith.constant 4 : index
    %c0_115 = arith.constant 0 : index
    %c0_116 = arith.constant 0 : index
    %130 = vector.load %arg5[%c1_113, %c4_114, %c0_115, %c0_116] : memref<2x7x22x16xf32, #tpu.memory_space<vmem>>, vector<1x1x16x16xf32>
    %131 = vector.shape_cast %130 : vector<1x1x16x16xf32> to vector<16x16xf32>
    %132 = vector.broadcast %129 : f32 to vector<16x16xf32>
    %133 = arith.mulf %132, %131 : vector<16x16xf32>
    %134 = arith.addf %128, %133 : vector<16x16xf32>
    %c5_117 = arith.constant 5 : index
    %135 = memref.load %arg2[%c5_117] : memref<98xf32, #tpu.memory_space<smem>>
    %c0_118 = arith.constant 0 : index
    %c5_119 = arith.constant 5 : index
    %c0_120 = arith.constant 0 : index
    %c0_121 = arith.constant 0 : index
    %136 = vector.load %arg5[%c0_118, %c5_119, %c0_120, %c0_121] : memref<2x7x22x16xf32, #tpu.memory_space<vmem>>, vector<1x1x16x16xf32>
    %137 = vector.shape_cast %136 : vector<1x1x16x16xf32> to vector<16x16xf32>
    %138 = vector.broadcast %135 : f32 to vector<16x16xf32>
    %139 = arith.mulf %138, %137 : vector<16x16xf32>
    %140 = arith.addf %134, %139 : vector<16x16xf32>
    %c54 = arith.constant 54 : index
    %141 = memref.load %arg2[%c54] : memref<98xf32, #tpu.memory_space<smem>>
    %c1_122 = arith.constant 1 : index
    %c5_123 = arith.constant 5 : index
    %c0_124 = arith.constant 0 : index
    %c0_125 = arith.constant 0 : index
    %142 = vector.load %arg5[%c1_122, %c5_123, %c0_124, %c0_125] : memref<2x7x22x16xf32, #tpu.memory_space<vmem>>, vector<1x1x16x16xf32>
    %143 = vector.shape_cast %142 : vector<1x1x16x16xf32> to vector<16x16xf32>
    %144 = vector.broadcast %141 : f32 to vector<16x16xf32>
    %145 = arith.mulf %144, %143 : vector<16x16xf32>
    %146 = arith.addf %140, %145 : vector<16x16xf32>
    %c6_126 = arith.constant 6 : index
    %147 = memref.load %arg2[%c6_126] : memref<98xf32, #tpu.memory_space<smem>>
    %c0_127 = arith.constant 0 : index
    %c6_128 = arith.constant 6 : index
    %c0_129 = arith.constant 0 : index
    %c0_130 = arith.constant 0 : index
    %148 = vector.load %arg5[%c0_127, %c6_128, %c0_129, %c0_130] : memref<2x7x22x16xf32, #tpu.memory_space<vmem>>, vector<1x1x16x16xf32>
    %149 = vector.shape_cast %148 : vector<1x1x16x16xf32> to vector<16x16xf32>
    %150 = vector.broadcast %147 : f32 to vector<16x16xf32>
    %151 = arith.mulf %150, %149 : vector<16x16xf32>
    %152 = arith.addf %146, %151 : vector<16x16xf32>
    %c55 = arith.constant 55 : index
    %153 = memref.load %arg2[%c55] : memref<98xf32, #tpu.memory_space<smem>>
    %c1_131 = arith.constant 1 : index
    %c6_132 = arith.constant 6 : index
    %c0_133 = arith.constant 0 : index
    %c0_134 = arith.constant 0 : index
    %154 = vector.load %arg5[%c1_131, %c6_132, %c0_133, %c0_134] : memref<2x7x22x16xf32, #tpu.memory_space<vmem>>, vector<1x1x16x16xf32>
    %155 = vector.shape_cast %154 : vector<1x1x16x16xf32> to vector<16x16xf32>
    %156 = vector.broadcast %153 : f32 to vector<16x16xf32>
    %157 = arith.mulf %156, %155 : vector<16x16xf32>
    %158 = arith.addf %152, %157 : vector<16x16xf32>
    %c7 = arith.constant 7 : index
    %159 = memref.load %arg2[%c7] : memref<98xf32, #tpu.memory_space<smem>>
    %c0_135 = arith.constant 0 : index
    %c0_136 = arith.constant 0 : index
    %c1_137 = arith.constant 1 : index
    %c0_138 = arith.constant 0 : index
    %160 = vector.load %arg5[%c0_135, %c0_136, %c1_137, %c0_138] : memref<2x7x22x16xf32, #tpu.memory_space<vmem>>, vector<1x1x16x16xf32>
    %161 = vector.shape_cast %160 : vector<1x1x16x16xf32> to vector<16x16xf32>
    %162 = vector.broadcast %159 : f32 to vector<16x16xf32>
    %163 = arith.mulf %162, %161 : vector<16x16xf32>
    %164 = arith.addf %158, %163 : vector<16x16xf32>
    %c56 = arith.constant 56 : index
    %165 = memref.load %arg2[%c56] : memref<98xf32, #tpu.memory_space<smem>>
    %c1_139 = arith.constant 1 : index
    %c0_140 = arith.constant 0 : index
    %c1_141 = arith.constant 1 : index
    %c0_142 = arith.constant 0 : index
    %166 = vector.load %arg5[%c1_139, %c0_140, %c1_141, %c0_142] : memref<2x7x22x16xf32, #tpu.memory_space<vmem>>, vector<1x1x16x16xf32>
    %167 = vector.shape_cast %166 : vector<1x1x16x16xf32> to vector<16x16xf32>
    %168 = vector.broadcast %165 : f32 to vector<16x16xf32>
    %169 = arith.mulf %168, %167 : vector<16x16xf32>
    %170 = arith.addf %164, %169 : vector<16x16xf32>
    %c8 = arith.constant 8 : index
    %171 = memref.load %arg2[%c8] : memref<98xf32, #tpu.memory_space<smem>>
    %c0_143 = arith.constant 0 : index
    %c1_144 = arith.constant 1 : index
    %c1_145 = arith.constant 1 : index
    %c0_146 = arith.constant 0 : index
    %172 = vector.load %arg5[%c0_143, %c1_144, %c1_145, %c0_146] : memref<2x7x22x16xf32, #tpu.memory_space<vmem>>, vector<1x1x16x16xf32>
    %173 = vector.shape_cast %172 : vector<1x1x16x16xf32> to vector<16x16xf32>
    %174 = vector.broadcast %171 : f32 to vector<16x16xf32>
    %175 = arith.mulf %174, %173 : vector<16x16xf32>
    %176 = arith.addf %170, %175 : vector<16x16xf32>
    %c57 = arith.constant 57 : index
    %177 = memref.load %arg2[%c57] : memref<98xf32, #tpu.memory_space<smem>>
    %c1_147 = arith.constant 1 : index
    %c1_148 = arith.constant 1 : index
    %c1_149 = arith.constant 1 : index
    %c0_150 = arith.constant 0 : index
    %178 = vector.load %arg5[%c1_147, %c1_148, %c1_149, %c0_150] : memref<2x7x22x16xf32, #tpu.memory_space<vmem>>, vector<1x1x16x16xf32>
    %179 = vector.shape_cast %178 : vector<1x1x16x16xf32> to vector<16x16xf32>
    %180 = vector.broadcast %177 : f32 to vector<16x16xf32>
    %181 = arith.mulf %180, %179 : vector<16x16xf32>
    %182 = arith.addf %176, %181 : vector<16x16xf32>
    %c9 = arith.constant 9 : index
    %183 = memref.load %arg2[%c9] : memref<98xf32, #tpu.memory_space<smem>>
    %c0_151 = arith.constant 0 : index
    %c2_152 = arith.constant 2 : index
    %c1_153 = arith.constant 1 : index
    %c0_154 = arith.constant 0 : index
    %184 = vector.load %arg5[%c0_151, %c2_152, %c1_153, %c0_154] : memref<2x7x22x16xf32, #tpu.memory_space<vmem>>, vector<1x1x16x16xf32>
    %185 = vector.shape_cast %184 : vector<1x1x16x16xf32> to vector<16x16xf32>
    %186 = vector.broadcast %183 : f32 to vector<16x16xf32>
    %187 = arith.mulf %186, %185 : vector<16x16xf32>
    %188 = arith.addf %182, %187 : vector<16x16xf32>
    %c58 = arith.constant 58 : index
    %189 = memref.load %arg2[%c58] : memref<98xf32, #tpu.memory_space<smem>>
    %c1_155 = arith.constant 1 : index
    %c2_156 = arith.constant 2 : index
    %c1_157 = arith.constant 1 : index
    %c0_158 = arith.constant 0 : index
    %190 = vector.load %arg5[%c1_155, %c2_156, %c1_157, %c0_158] : memref<2x7x22x16xf32, #tpu.memory_space<vmem>>, vector<1x1x16x16xf32>
    %191 = vector.shape_cast %190 : vector<1x1x16x16xf32> to vector<16x16xf32>
    %192 = vector.broadcast %189 : f32 to vector<16x16xf32>
    %193 = arith.mulf %192, %191 : vector<16x16xf32>
    %194 = arith.addf %188, %193 : vector<16x16xf32>
    %c10 = arith.constant 10 : index
    %195 = memref.load %arg2[%c10] : memref<98xf32, #tpu.memory_space<smem>>
    %c0_159 = arith.constant 0 : index
    %c3_160 = arith.constant 3 : index
    %c1_161 = arith.constant 1 : index
    %c0_162 = arith.constant 0 : index
    %196 = vector.load %arg5[%c0_159, %c3_160, %c1_161, %c0_162] : memref<2x7x22x16xf32, #tpu.memory_space<vmem>>, vector<1x1x16x16xf32>
    %197 = vector.shape_cast %196 : vector<1x1x16x16xf32> to vector<16x16xf32>
    %198 = vector.broadcast %195 : f32 to vector<16x16xf32>
    %199 = arith.mulf %198, %197 : vector<16x16xf32>
    %200 = arith.addf %194, %199 : vector<16x16xf32>
    %c59 = arith.constant 59 : index
    %201 = memref.load %arg2[%c59] : memref<98xf32, #tpu.memory_space<smem>>
    %c1_163 = arith.constant 1 : index
    %c3_164 = arith.constant 3 : index
    %c1_165 = arith.constant 1 : index
    %c0_166 = arith.constant 0 : index
    %202 = vector.load %arg5[%c1_163, %c3_164, %c1_165, %c0_166] : memref<2x7x22x16xf32, #tpu.memory_space<vmem>>, vector<1x1x16x16xf32>
    %203 = vector.shape_cast %202 : vector<1x1x16x16xf32> to vector<16x16xf32>
    %204 = vector.broadcast %201 : f32 to vector<16x16xf32>
    %205 = arith.mulf %204, %203 : vector<16x16xf32>
    %206 = arith.addf %200, %205 : vector<16x16xf32>
    %c11 = arith.constant 11 : index
    %207 = memref.load %arg2[%c11] : memref<98xf32, #tpu.memory_space<smem>>
    %c0_167 = arith.constant 0 : index
    %c4_168 = arith.constant 4 : index
    %c1_169 = arith.constant 1 : index
    %c0_170 = arith.constant 0 : index
    %208 = vector.load %arg5[%c0_167, %c4_168, %c1_169, %c0_170] : memref<2x7x22x16xf32, #tpu.memory_space<vmem>>, vector<1x1x16x16xf32>
    %209 = vector.shape_cast %208 : vector<1x1x16x16xf32> to vector<16x16xf32>
    %210 = vector.broadcast %207 : f32 to vector<16x16xf32>
    %211 = arith.mulf %210, %209 : vector<16x16xf32>
    %212 = arith.addf %206, %211 : vector<16x16xf32>
    %c60 = arith.constant 60 : index
    %213 = memref.load %arg2[%c60] : memref<98xf32, #tpu.memory_space<smem>>
    %c1_171 = arith.constant 1 : index
    %c4_172 = arith.constant 4 : index
    %c1_173 = arith.constant 1 : index
    %c0_174 = arith.constant 0 : index
    %214 = vector.load %arg5[%c1_171, %c4_172, %c1_173, %c0_174] : memref<2x7x22x16xf32, #tpu.memory_space<vmem>>, vector<1x1x16x16xf32>
    %215 = vector.shape_cast %214 : vector<1x1x16x16xf32> to vector<16x16xf32>
    %216 = vector.broadcast %213 : f32 to vector<16x16xf32>
    %217 = arith.mulf %216, %215 : vector<16x16xf32>
    %218 = arith.addf %212, %217 : vector<16x16xf32>
    %c12 = arith.constant 12 : index
    %219 = memref.load %arg2[%c12] : memref<98xf32, #tpu.memory_space<smem>>
    %c0_175 = arith.constant 0 : index
    %c5_176 = arith.constant 5 : index
    %c1_177 = arith.constant 1 : index
    %c0_178 = arith.constant 0 : index
    %220 = vector.load %arg5[%c0_175, %c5_176, %c1_177, %c0_178] : memref<2x7x22x16xf32, #tpu.memory_space<vmem>>, vector<1x1x16x16xf32>
    %221 = vector.shape_cast %220 : vector<1x1x16x16xf32> to vector<16x16xf32>
    %222 = vector.broadcast %219 : f32 to vector<16x16xf32>
    %223 = arith.mulf %222, %221 : vector<16x16xf32>
    %224 = arith.addf %218, %223 : vector<16x16xf32>
    %c61 = arith.constant 61 : index
    %225 = memref.load %arg2[%c61] : memref<98xf32, #tpu.memory_space<smem>>
    %c1_179 = arith.constant 1 : index
    %c5_180 = arith.constant 5 : index
    %c1_181 = arith.constant 1 : index
    %c0_182 = arith.constant 0 : index
    %226 = vector.load %arg5[%c1_179, %c5_180, %c1_181, %c0_182] : memref<2x7x22x16xf32, #tpu.memory_space<vmem>>, vector<1x1x16x16xf32>
    %227 = vector.shape_cast %226 : vector<1x1x16x16xf32> to vector<16x16xf32>
    %228 = vector.broadcast %225 : f32 to vector<16x16xf32>
    %229 = arith.mulf %228, %227 : vector<16x16xf32>
    %230 = arith.addf %224, %229 : vector<16x16xf32>
    %c13 = arith.constant 13 : index
    %231 = memref.load %arg2[%c13] : memref<98xf32, #tpu.memory_space<smem>>
    %c0_183 = arith.constant 0 : index
    %c6_184 = arith.constant 6 : index
    %c1_185 = arith.constant 1 : index
    %c0_186 = arith.constant 0 : index
    %232 = vector.load %arg5[%c0_183, %c6_184, %c1_185, %c0_186] : memref<2x7x22x16xf32, #tpu.memory_space<vmem>>, vector<1x1x16x16xf32>
    %233 = vector.shape_cast %232 : vector<1x1x16x16xf32> to vector<16x16xf32>
    %234 = vector.broadcast %231 : f32 to vector<16x16xf32>
    %235 = arith.mulf %234, %233 : vector<16x16xf32>
    %236 = arith.addf %230, %235 : vector<16x16xf32>
    %c62 = arith.constant 62 : index
    %237 = memref.load %arg2[%c62] : memref<98xf32, #tpu.memory_space<smem>>
    %c1_187 = arith.constant 1 : index
    %c6_188 = arith.constant 6 : index
    %c1_189 = arith.constant 1 : index
    %c0_190 = arith.constant 0 : index
    %238 = vector.load %arg5[%c1_187, %c6_188, %c1_189, %c0_190] : memref<2x7x22x16xf32, #tpu.memory_space<vmem>>, vector<1x1x16x16xf32>
    %239 = vector.shape_cast %238 : vector<1x1x16x16xf32> to vector<16x16xf32>
    %240 = vector.broadcast %237 : f32 to vector<16x16xf32>
    %241 = arith.mulf %240, %239 : vector<16x16xf32>
    %242 = arith.addf %236, %241 : vector<16x16xf32>
    %c14 = arith.constant 14 : index
    %243 = memref.load %arg2[%c14] : memref<98xf32, #tpu.memory_space<smem>>
    %c0_191 = arith.constant 0 : index
    %c0_192 = arith.constant 0 : index
    %c2_193 = arith.constant 2 : index
    %c0_194 = arith.constant 0 : index
    %244 = vector.load %arg5[%c0_191, %c0_192, %c2_193, %c0_194] : memref<2x7x22x16xf32, #tpu.memory_space<vmem>>, vector<1x1x16x16xf32>
    %245 = vector.shape_cast %244 : vector<1x1x16x16xf32> to vector<16x16xf32>
    %246 = vector.broadcast %243 : f32 to vector<16x16xf32>
    %247 = arith.mulf %246, %245 : vector<16x16xf32>
    %248 = arith.addf %242, %247 : vector<16x16xf32>
    %c63 = arith.constant 63 : index
    %249 = memref.load %arg2[%c63] : memref<98xf32, #tpu.memory_space<smem>>
    %c1_195 = arith.constant 1 : index
    %c0_196 = arith.constant 0 : index
    %c2_197 = arith.constant 2 : index
    %c0_198 = arith.constant 0 : index
    %250 = vector.load %arg5[%c1_195, %c0_196, %c2_197, %c0_198] : memref<2x7x22x16xf32, #tpu.memory_space<vmem>>, vector<1x1x16x16xf32>
    %251 = vector.shape_cast %250 : vector<1x1x16x16xf32> to vector<16x16xf32>
    %252 = vector.broadcast %249 : f32 to vector<16x16xf32>
    %253 = arith.mulf %252, %251 : vector<16x16xf32>
    %254 = arith.addf %248, %253 : vector<16x16xf32>
    %c15 = arith.constant 15 : index
    %255 = memref.load %arg2[%c15] : memref<98xf32, #tpu.memory_space<smem>>
    %c0_199 = arith.constant 0 : index
    %c1_200 = arith.constant 1 : index
    %c2_201 = arith.constant 2 : index
    %c0_202 = arith.constant 0 : index
    %256 = vector.load %arg5[%c0_199, %c1_200, %c2_201, %c0_202] : memref<2x7x22x16xf32, #tpu.memory_space<vmem>>, vector<1x1x16x16xf32>
    %257 = vector.shape_cast %256 : vector<1x1x16x16xf32> to vector<16x16xf32>
    %258 = vector.broadcast %255 : f32 to vector<16x16xf32>
    %259 = arith.mulf %258, %257 : vector<16x16xf32>
    %260 = arith.addf %254, %259 : vector<16x16xf32>
    %c64 = arith.constant 64 : index
    %261 = memref.load %arg2[%c64] : memref<98xf32, #tpu.memory_space<smem>>
    %c1_203 = arith.constant 1 : index
    %c1_204 = arith.constant 1 : index
    %c2_205 = arith.constant 2 : index
    %c0_206 = arith.constant 0 : index
    %262 = vector.load %arg5[%c1_203, %c1_204, %c2_205, %c0_206] : memref<2x7x22x16xf32, #tpu.memory_space<vmem>>, vector<1x1x16x16xf32>
    %263 = vector.shape_cast %262 : vector<1x1x16x16xf32> to vector<16x16xf32>
    %264 = vector.broadcast %261 : f32 to vector<16x16xf32>
    %265 = arith.mulf %264, %263 : vector<16x16xf32>
    %266 = arith.addf %260, %265 : vector<16x16xf32>
    %c16 = arith.constant 16 : index
    %267 = memref.load %arg2[%c16] : memref<98xf32, #tpu.memory_space<smem>>
    %c0_207 = arith.constant 0 : index
    %c2_208 = arith.constant 2 : index
    %c2_209 = arith.constant 2 : index
    %c0_210 = arith.constant 0 : index
    %268 = vector.load %arg5[%c0_207, %c2_208, %c2_209, %c0_210] : memref<2x7x22x16xf32, #tpu.memory_space<vmem>>, vector<1x1x16x16xf32>
    %269 = vector.shape_cast %268 : vector<1x1x16x16xf32> to vector<16x16xf32>
    %270 = vector.broadcast %267 : f32 to vector<16x16xf32>
    %271 = arith.mulf %270, %269 : vector<16x16xf32>
    %272 = arith.addf %266, %271 : vector<16x16xf32>
    %c65 = arith.constant 65 : index
    %273 = memref.load %arg2[%c65] : memref<98xf32, #tpu.memory_space<smem>>
    %c1_211 = arith.constant 1 : index
    %c2_212 = arith.constant 2 : index
    %c2_213 = arith.constant 2 : index
    %c0_214 = arith.constant 0 : index
    %274 = vector.load %arg5[%c1_211, %c2_212, %c2_213, %c0_214] : memref<2x7x22x16xf32, #tpu.memory_space<vmem>>, vector<1x1x16x16xf32>
    %275 = vector.shape_cast %274 : vector<1x1x16x16xf32> to vector<16x16xf32>
    %276 = vector.broadcast %273 : f32 to vector<16x16xf32>
    %277 = arith.mulf %276, %275 : vector<16x16xf32>
    %278 = arith.addf %272, %277 : vector<16x16xf32>
    %c17 = arith.constant 17 : index
    %279 = memref.load %arg2[%c17] : memref<98xf32, #tpu.memory_space<smem>>
    %c0_215 = arith.constant 0 : index
    %c3_216 = arith.constant 3 : index
    %c2_217 = arith.constant 2 : index
    %c0_218 = arith.constant 0 : index
    %280 = vector.load %arg5[%c0_215, %c3_216, %c2_217, %c0_218] : memref<2x7x22x16xf32, #tpu.memory_space<vmem>>, vector<1x1x16x16xf32>
    %281 = vector.shape_cast %280 : vector<1x1x16x16xf32> to vector<16x16xf32>
    %282 = vector.broadcast %279 : f32 to vector<16x16xf32>
    %283 = arith.mulf %282, %281 : vector<16x16xf32>
    %284 = arith.addf %278, %283 : vector<16x16xf32>
    %c66 = arith.constant 66 : index
    %285 = memref.load %arg2[%c66] : memref<98xf32, #tpu.memory_space<smem>>
    %c1_219 = arith.constant 1 : index
    %c3_220 = arith.constant 3 : index
    %c2_221 = arith.constant 2 : index
    %c0_222 = arith.constant 0 : index
    %286 = vector.load %arg5[%c1_219, %c3_220, %c2_221, %c0_222] : memref<2x7x22x16xf32, #tpu.memory_space<vmem>>, vector<1x1x16x16xf32>
    %287 = vector.shape_cast %286 : vector<1x1x16x16xf32> to vector<16x16xf32>
    %288 = vector.broadcast %285 : f32 to vector<16x16xf32>
    %289 = arith.mulf %288, %287 : vector<16x16xf32>
    %290 = arith.addf %284, %289 : vector<16x16xf32>
    %c18 = arith.constant 18 : index
    %291 = memref.load %arg2[%c18] : memref<98xf32, #tpu.memory_space<smem>>
    %c0_223 = arith.constant 0 : index
    %c4_224 = arith.constant 4 : index
    %c2_225 = arith.constant 2 : index
    %c0_226 = arith.constant 0 : index
    %292 = vector.load %arg5[%c0_223, %c4_224, %c2_225, %c0_226] : memref<2x7x22x16xf32, #tpu.memory_space<vmem>>, vector<1x1x16x16xf32>
    %293 = vector.shape_cast %292 : vector<1x1x16x16xf32> to vector<16x16xf32>
    %294 = vector.broadcast %291 : f32 to vector<16x16xf32>
    %295 = arith.mulf %294, %293 : vector<16x16xf32>
    %296 = arith.addf %290, %295 : vector<16x16xf32>
    %c67 = arith.constant 67 : index
    %297 = memref.load %arg2[%c67] : memref<98xf32, #tpu.memory_space<smem>>
    %c1_227 = arith.constant 1 : index
    %c4_228 = arith.constant 4 : index
    %c2_229 = arith.constant 2 : index
    %c0_230 = arith.constant 0 : index
    %298 = vector.load %arg5[%c1_227, %c4_228, %c2_229, %c0_230] : memref<2x7x22x16xf32, #tpu.memory_space<vmem>>, vector<1x1x16x16xf32>
    %299 = vector.shape_cast %298 : vector<1x1x16x16xf32> to vector<16x16xf32>
    %300 = vector.broadcast %297 : f32 to vector<16x16xf32>
    %301 = arith.mulf %300, %299 : vector<16x16xf32>
    %302 = arith.addf %296, %301 : vector<16x16xf32>
    %c19 = arith.constant 19 : index
    %303 = memref.load %arg2[%c19] : memref<98xf32, #tpu.memory_space<smem>>
    %c0_231 = arith.constant 0 : index
    %c5_232 = arith.constant 5 : index
    %c2_233 = arith.constant 2 : index
    %c0_234 = arith.constant 0 : index
    %304 = vector.load %arg5[%c0_231, %c5_232, %c2_233, %c0_234] : memref<2x7x22x16xf32, #tpu.memory_space<vmem>>, vector<1x1x16x16xf32>
    %305 = vector.shape_cast %304 : vector<1x1x16x16xf32> to vector<16x16xf32>
    %306 = vector.broadcast %303 : f32 to vector<16x16xf32>
    %307 = arith.mulf %306, %305 : vector<16x16xf32>
    %308 = arith.addf %302, %307 : vector<16x16xf32>
    %c68 = arith.constant 68 : index
    %309 = memref.load %arg2[%c68] : memref<98xf32, #tpu.memory_space<smem>>
    %c1_235 = arith.constant 1 : index
    %c5_236 = arith.constant 5 : index
    %c2_237 = arith.constant 2 : index
    %c0_238 = arith.constant 0 : index
    %310 = vector.load %arg5[%c1_235, %c5_236, %c2_237, %c0_238] : memref<2x7x22x16xf32, #tpu.memory_space<vmem>>, vector<1x1x16x16xf32>
    %311 = vector.shape_cast %310 : vector<1x1x16x16xf32> to vector<16x16xf32>
    %312 = vector.broadcast %309 : f32 to vector<16x16xf32>
    %313 = arith.mulf %312, %311 : vector<16x16xf32>
    %314 = arith.addf %308, %313 : vector<16x16xf32>
    %c20 = arith.constant 20 : index
    %315 = memref.load %arg2[%c20] : memref<98xf32, #tpu.memory_space<smem>>
    %c0_239 = arith.constant 0 : index
    %c6_240 = arith.constant 6 : index
    %c2_241 = arith.constant 2 : index
    %c0_242 = arith.constant 0 : index
    %316 = vector.load %arg5[%c0_239, %c6_240, %c2_241, %c0_242] : memref<2x7x22x16xf32, #tpu.memory_space<vmem>>, vector<1x1x16x16xf32>
    %317 = vector.shape_cast %316 : vector<1x1x16x16xf32> to vector<16x16xf32>
    %318 = vector.broadcast %315 : f32 to vector<16x16xf32>
    %319 = arith.mulf %318, %317 : vector<16x16xf32>
    %320 = arith.addf %314, %319 : vector<16x16xf32>
    %c69 = arith.constant 69 : index
    %321 = memref.load %arg2[%c69] : memref<98xf32, #tpu.memory_space<smem>>
    %c1_243 = arith.constant 1 : index
    %c6_244 = arith.constant 6 : index
    %c2_245 = arith.constant 2 : index
    %c0_246 = arith.constant 0 : index
    %322 = vector.load %arg5[%c1_243, %c6_244, %c2_245, %c0_246] : memref<2x7x22x16xf32, #tpu.memory_space<vmem>>, vector<1x1x16x16xf32>
    %323 = vector.shape_cast %322 : vector<1x1x16x16xf32> to vector<16x16xf32>
    %324 = vector.broadcast %321 : f32 to vector<16x16xf32>
    %325 = arith.mulf %324, %323 : vector<16x16xf32>
    %326 = arith.addf %320, %325 : vector<16x16xf32>
    %c21 = arith.constant 21 : index
    %327 = memref.load %arg2[%c21] : memref<98xf32, #tpu.memory_space<smem>>
    %c0_247 = arith.constant 0 : index
    %c0_248 = arith.constant 0 : index
    %c3_249 = arith.constant 3 : index
    %c0_250 = arith.constant 0 : index
    %328 = vector.load %arg5[%c0_247, %c0_248, %c3_249, %c0_250] : memref<2x7x22x16xf32, #tpu.memory_space<vmem>>, vector<1x1x16x16xf32>
    %329 = vector.shape_cast %328 : vector<1x1x16x16xf32> to vector<16x16xf32>
    %330 = vector.broadcast %327 : f32 to vector<16x16xf32>
    %331 = arith.mulf %330, %329 : vector<16x16xf32>
    %332 = arith.addf %326, %331 : vector<16x16xf32>
    %c70 = arith.constant 70 : index
    %333 = memref.load %arg2[%c70] : memref<98xf32, #tpu.memory_space<smem>>
    %c1_251 = arith.constant 1 : index
    %c0_252 = arith.constant 0 : index
    %c3_253 = arith.constant 3 : index
    %c0_254 = arith.constant 0 : index
    %334 = vector.load %arg5[%c1_251, %c0_252, %c3_253, %c0_254] : memref<2x7x22x16xf32, #tpu.memory_space<vmem>>, vector<1x1x16x16xf32>
    %335 = vector.shape_cast %334 : vector<1x1x16x16xf32> to vector<16x16xf32>
    %336 = vector.broadcast %333 : f32 to vector<16x16xf32>
    %337 = arith.mulf %336, %335 : vector<16x16xf32>
    %338 = arith.addf %332, %337 : vector<16x16xf32>
    %c22 = arith.constant 22 : index
    %339 = memref.load %arg2[%c22] : memref<98xf32, #tpu.memory_space<smem>>
    %c0_255 = arith.constant 0 : index
    %c1_256 = arith.constant 1 : index
    %c3_257 = arith.constant 3 : index
    %c0_258 = arith.constant 0 : index
    %340 = vector.load %arg5[%c0_255, %c1_256, %c3_257, %c0_258] : memref<2x7x22x16xf32, #tpu.memory_space<vmem>>, vector<1x1x16x16xf32>
    %341 = vector.shape_cast %340 : vector<1x1x16x16xf32> to vector<16x16xf32>
    %342 = vector.broadcast %339 : f32 to vector<16x16xf32>
    %343 = arith.mulf %342, %341 : vector<16x16xf32>
    %344 = arith.addf %338, %343 : vector<16x16xf32>
    %c71 = arith.constant 71 : index
    %345 = memref.load %arg2[%c71] : memref<98xf32, #tpu.memory_space<smem>>
    %c1_259 = arith.constant 1 : index
    %c1_260 = arith.constant 1 : index
    %c3_261 = arith.constant 3 : index
    %c0_262 = arith.constant 0 : index
    %346 = vector.load %arg5[%c1_259, %c1_260, %c3_261, %c0_262] : memref<2x7x22x16xf32, #tpu.memory_space<vmem>>, vector<1x1x16x16xf32>
    %347 = vector.shape_cast %346 : vector<1x1x16x16xf32> to vector<16x16xf32>
    %348 = vector.broadcast %345 : f32 to vector<16x16xf32>
    %349 = arith.mulf %348, %347 : vector<16x16xf32>
    %350 = arith.addf %344, %349 : vector<16x16xf32>
    %c23 = arith.constant 23 : index
    %351 = memref.load %arg2[%c23] : memref<98xf32, #tpu.memory_space<smem>>
    %c0_263 = arith.constant 0 : index
    %c2_264 = arith.constant 2 : index
    %c3_265 = arith.constant 3 : index
    %c0_266 = arith.constant 0 : index
    %352 = vector.load %arg5[%c0_263, %c2_264, %c3_265, %c0_266] : memref<2x7x22x16xf32, #tpu.memory_space<vmem>>, vector<1x1x16x16xf32>
    %353 = vector.shape_cast %352 : vector<1x1x16x16xf32> to vector<16x16xf32>
    %354 = vector.broadcast %351 : f32 to vector<16x16xf32>
    %355 = arith.mulf %354, %353 : vector<16x16xf32>
    %356 = arith.addf %350, %355 : vector<16x16xf32>
    %c72 = arith.constant 72 : index
    %357 = memref.load %arg2[%c72] : memref<98xf32, #tpu.memory_space<smem>>
    %c1_267 = arith.constant 1 : index
    %c2_268 = arith.constant 2 : index
    %c3_269 = arith.constant 3 : index
    %c0_270 = arith.constant 0 : index
    %358 = vector.load %arg5[%c1_267, %c2_268, %c3_269, %c0_270] : memref<2x7x22x16xf32, #tpu.memory_space<vmem>>, vector<1x1x16x16xf32>
    %359 = vector.shape_cast %358 : vector<1x1x16x16xf32> to vector<16x16xf32>
    %360 = vector.broadcast %357 : f32 to vector<16x16xf32>
    %361 = arith.mulf %360, %359 : vector<16x16xf32>
    %362 = arith.addf %356, %361 : vector<16x16xf32>
    %c24 = arith.constant 24 : index
    %363 = memref.load %arg2[%c24] : memref<98xf32, #tpu.memory_space<smem>>
    %c0_271 = arith.constant 0 : index
    %c3_272 = arith.constant 3 : index
    %c3_273 = arith.constant 3 : index
    %c0_274 = arith.constant 0 : index
    %364 = vector.load %arg5[%c0_271, %c3_272, %c3_273, %c0_274] : memref<2x7x22x16xf32, #tpu.memory_space<vmem>>, vector<1x1x16x16xf32>
    %365 = vector.shape_cast %364 : vector<1x1x16x16xf32> to vector<16x16xf32>
    %366 = vector.broadcast %363 : f32 to vector<16x16xf32>
    %367 = arith.mulf %366, %365 : vector<16x16xf32>
    %368 = arith.addf %362, %367 : vector<16x16xf32>
    %c73 = arith.constant 73 : index
    %369 = memref.load %arg2[%c73] : memref<98xf32, #tpu.memory_space<smem>>
    %c1_275 = arith.constant 1 : index
    %c3_276 = arith.constant 3 : index
    %c3_277 = arith.constant 3 : index
    %c0_278 = arith.constant 0 : index
    %370 = vector.load %arg5[%c1_275, %c3_276, %c3_277, %c0_278] : memref<2x7x22x16xf32, #tpu.memory_space<vmem>>, vector<1x1x16x16xf32>
    %371 = vector.shape_cast %370 : vector<1x1x16x16xf32> to vector<16x16xf32>
    %372 = vector.broadcast %369 : f32 to vector<16x16xf32>
    %373 = arith.mulf %372, %371 : vector<16x16xf32>
    %374 = arith.addf %368, %373 : vector<16x16xf32>
    %c25 = arith.constant 25 : index
    %375 = memref.load %arg2[%c25] : memref<98xf32, #tpu.memory_space<smem>>
    %c0_279 = arith.constant 0 : index
    %c4_280 = arith.constant 4 : index
    %c3_281 = arith.constant 3 : index
    %c0_282 = arith.constant 0 : index
    %376 = vector.load %arg5[%c0_279, %c4_280, %c3_281, %c0_282] : memref<2x7x22x16xf32, #tpu.memory_space<vmem>>, vector<1x1x16x16xf32>
    %377 = vector.shape_cast %376 : vector<1x1x16x16xf32> to vector<16x16xf32>
    %378 = vector.broadcast %375 : f32 to vector<16x16xf32>
    %379 = arith.mulf %378, %377 : vector<16x16xf32>
    %380 = arith.addf %374, %379 : vector<16x16xf32>
    %c74 = arith.constant 74 : index
    %381 = memref.load %arg2[%c74] : memref<98xf32, #tpu.memory_space<smem>>
    %c1_283 = arith.constant 1 : index
    %c4_284 = arith.constant 4 : index
    %c3_285 = arith.constant 3 : index
    %c0_286 = arith.constant 0 : index
    %382 = vector.load %arg5[%c1_283, %c4_284, %c3_285, %c0_286] : memref<2x7x22x16xf32, #tpu.memory_space<vmem>>, vector<1x1x16x16xf32>
    %383 = vector.shape_cast %382 : vector<1x1x16x16xf32> to vector<16x16xf32>
    %384 = vector.broadcast %381 : f32 to vector<16x16xf32>
    %385 = arith.mulf %384, %383 : vector<16x16xf32>
    %386 = arith.addf %380, %385 : vector<16x16xf32>
    %c26 = arith.constant 26 : index
    %387 = memref.load %arg2[%c26] : memref<98xf32, #tpu.memory_space<smem>>
    %c0_287 = arith.constant 0 : index
    %c5_288 = arith.constant 5 : index
    %c3_289 = arith.constant 3 : index
    %c0_290 = arith.constant 0 : index
    %388 = vector.load %arg5[%c0_287, %c5_288, %c3_289, %c0_290] : memref<2x7x22x16xf32, #tpu.memory_space<vmem>>, vector<1x1x16x16xf32>
    %389 = vector.shape_cast %388 : vector<1x1x16x16xf32> to vector<16x16xf32>
    %390 = vector.broadcast %387 : f32 to vector<16x16xf32>
    %391 = arith.mulf %390, %389 : vector<16x16xf32>
    %392 = arith.addf %386, %391 : vector<16x16xf32>
    %c75 = arith.constant 75 : index
    %393 = memref.load %arg2[%c75] : memref<98xf32, #tpu.memory_space<smem>>
    %c1_291 = arith.constant 1 : index
    %c5_292 = arith.constant 5 : index
    %c3_293 = arith.constant 3 : index
    %c0_294 = arith.constant 0 : index
    %394 = vector.load %arg5[%c1_291, %c5_292, %c3_293, %c0_294] : memref<2x7x22x16xf32, #tpu.memory_space<vmem>>, vector<1x1x16x16xf32>
    %395 = vector.shape_cast %394 : vector<1x1x16x16xf32> to vector<16x16xf32>
    %396 = vector.broadcast %393 : f32 to vector<16x16xf32>
    %397 = arith.mulf %396, %395 : vector<16x16xf32>
    %398 = arith.addf %392, %397 : vector<16x16xf32>
    %c27 = arith.constant 27 : index
    %399 = memref.load %arg2[%c27] : memref<98xf32, #tpu.memory_space<smem>>
    %c0_295 = arith.constant 0 : index
    %c6_296 = arith.constant 6 : index
    %c3_297 = arith.constant 3 : index
    %c0_298 = arith.constant 0 : index
    %400 = vector.load %arg5[%c0_295, %c6_296, %c3_297, %c0_298] : memref<2x7x22x16xf32, #tpu.memory_space<vmem>>, vector<1x1x16x16xf32>
    %401 = vector.shape_cast %400 : vector<1x1x16x16xf32> to vector<16x16xf32>
    %402 = vector.broadcast %399 : f32 to vector<16x16xf32>
    %403 = arith.mulf %402, %401 : vector<16x16xf32>
    %404 = arith.addf %398, %403 : vector<16x16xf32>
    %c76 = arith.constant 76 : index
    %405 = memref.load %arg2[%c76] : memref<98xf32, #tpu.memory_space<smem>>
    %c1_299 = arith.constant 1 : index
    %c6_300 = arith.constant 6 : index
    %c3_301 = arith.constant 3 : index
    %c0_302 = arith.constant 0 : index
    %406 = vector.load %arg5[%c1_299, %c6_300, %c3_301, %c0_302] : memref<2x7x22x16xf32, #tpu.memory_space<vmem>>, vector<1x1x16x16xf32>
    %407 = vector.shape_cast %406 : vector<1x1x16x16xf32> to vector<16x16xf32>
    %408 = vector.broadcast %405 : f32 to vector<16x16xf32>
    %409 = arith.mulf %408, %407 : vector<16x16xf32>
    %410 = arith.addf %404, %409 : vector<16x16xf32>
    %c28 = arith.constant 28 : index
    %411 = memref.load %arg2[%c28] : memref<98xf32, #tpu.memory_space<smem>>
    %c0_303 = arith.constant 0 : index
    %c0_304 = arith.constant 0 : index
    %c4_305 = arith.constant 4 : index
    %c0_306 = arith.constant 0 : index
    %412 = vector.load %arg5[%c0_303, %c0_304, %c4_305, %c0_306] : memref<2x7x22x16xf32, #tpu.memory_space<vmem>>, vector<1x1x16x16xf32>
    %413 = vector.shape_cast %412 : vector<1x1x16x16xf32> to vector<16x16xf32>
    %414 = vector.broadcast %411 : f32 to vector<16x16xf32>
    %415 = arith.mulf %414, %413 : vector<16x16xf32>
    %416 = arith.addf %410, %415 : vector<16x16xf32>
    %c77 = arith.constant 77 : index
    %417 = memref.load %arg2[%c77] : memref<98xf32, #tpu.memory_space<smem>>
    %c1_307 = arith.constant 1 : index
    %c0_308 = arith.constant 0 : index
    %c4_309 = arith.constant 4 : index
    %c0_310 = arith.constant 0 : index
    %418 = vector.load %arg5[%c1_307, %c0_308, %c4_309, %c0_310] : memref<2x7x22x16xf32, #tpu.memory_space<vmem>>, vector<1x1x16x16xf32>
    %419 = vector.shape_cast %418 : vector<1x1x16x16xf32> to vector<16x16xf32>
    %420 = vector.broadcast %417 : f32 to vector<16x16xf32>
    %421 = arith.mulf %420, %419 : vector<16x16xf32>
    %422 = arith.addf %416, %421 : vector<16x16xf32>
    %c29 = arith.constant 29 : index
    %423 = memref.load %arg2[%c29] : memref<98xf32, #tpu.memory_space<smem>>
    %c0_311 = arith.constant 0 : index
    %c1_312 = arith.constant 1 : index
    %c4_313 = arith.constant 4 : index
    %c0_314 = arith.constant 0 : index
    %424 = vector.load %arg5[%c0_311, %c1_312, %c4_313, %c0_314] : memref<2x7x22x16xf32, #tpu.memory_space<vmem>>, vector<1x1x16x16xf32>
    %425 = vector.shape_cast %424 : vector<1x1x16x16xf32> to vector<16x16xf32>
    %426 = vector.broadcast %423 : f32 to vector<16x16xf32>
    %427 = arith.mulf %426, %425 : vector<16x16xf32>
    %428 = arith.addf %422, %427 : vector<16x16xf32>
    %c78 = arith.constant 78 : index
    %429 = memref.load %arg2[%c78] : memref<98xf32, #tpu.memory_space<smem>>
    %c1_315 = arith.constant 1 : index
    %c1_316 = arith.constant 1 : index
    %c4_317 = arith.constant 4 : index
    %c0_318 = arith.constant 0 : index
    %430 = vector.load %arg5[%c1_315, %c1_316, %c4_317, %c0_318] : memref<2x7x22x16xf32, #tpu.memory_space<vmem>>, vector<1x1x16x16xf32>
    %431 = vector.shape_cast %430 : vector<1x1x16x16xf32> to vector<16x16xf32>
    %432 = vector.broadcast %429 : f32 to vector<16x16xf32>
    %433 = arith.mulf %432, %431 : vector<16x16xf32>
    %434 = arith.addf %428, %433 : vector<16x16xf32>
    %c30 = arith.constant 30 : index
    %435 = memref.load %arg2[%c30] : memref<98xf32, #tpu.memory_space<smem>>
    %c0_319 = arith.constant 0 : index
    %c2_320 = arith.constant 2 : index
    %c4_321 = arith.constant 4 : index
    %c0_322 = arith.constant 0 : index
    %436 = vector.load %arg5[%c0_319, %c2_320, %c4_321, %c0_322] : memref<2x7x22x16xf32, #tpu.memory_space<vmem>>, vector<1x1x16x16xf32>
    %437 = vector.shape_cast %436 : vector<1x1x16x16xf32> to vector<16x16xf32>
    %438 = vector.broadcast %435 : f32 to vector<16x16xf32>
    %439 = arith.mulf %438, %437 : vector<16x16xf32>
    %440 = arith.addf %434, %439 : vector<16x16xf32>
    %c79 = arith.constant 79 : index
    %441 = memref.load %arg2[%c79] : memref<98xf32, #tpu.memory_space<smem>>
    %c1_323 = arith.constant 1 : index
    %c2_324 = arith.constant 2 : index
    %c4_325 = arith.constant 4 : index
    %c0_326 = arith.constant 0 : index
    %442 = vector.load %arg5[%c1_323, %c2_324, %c4_325, %c0_326] : memref<2x7x22x16xf32, #tpu.memory_space<vmem>>, vector<1x1x16x16xf32>
    %443 = vector.shape_cast %442 : vector<1x1x16x16xf32> to vector<16x16xf32>
    %444 = vector.broadcast %441 : f32 to vector<16x16xf32>
    %445 = arith.mulf %444, %443 : vector<16x16xf32>
    %446 = arith.addf %440, %445 : vector<16x16xf32>
    %c31 = arith.constant 31 : index
    %447 = memref.load %arg2[%c31] : memref<98xf32, #tpu.memory_space<smem>>
    %c0_327 = arith.constant 0 : index
    %c3_328 = arith.constant 3 : index
    %c4_329 = arith.constant 4 : index
    %c0_330 = arith.constant 0 : index
    %448 = vector.load %arg5[%c0_327, %c3_328, %c4_329, %c0_330] : memref<2x7x22x16xf32, #tpu.memory_space<vmem>>, vector<1x1x16x16xf32>
    %449 = vector.shape_cast %448 : vector<1x1x16x16xf32> to vector<16x16xf32>
    %450 = vector.broadcast %447 : f32 to vector<16x16xf32>
    %451 = arith.mulf %450, %449 : vector<16x16xf32>
    %452 = arith.addf %446, %451 : vector<16x16xf32>
    %c80 = arith.constant 80 : index
    %453 = memref.load %arg2[%c80] : memref<98xf32, #tpu.memory_space<smem>>
    %c1_331 = arith.constant 1 : index
    %c3_332 = arith.constant 3 : index
    %c4_333 = arith.constant 4 : index
    %c0_334 = arith.constant 0 : index
    %454 = vector.load %arg5[%c1_331, %c3_332, %c4_333, %c0_334] : memref<2x7x22x16xf32, #tpu.memory_space<vmem>>, vector<1x1x16x16xf32>
    %455 = vector.shape_cast %454 : vector<1x1x16x16xf32> to vector<16x16xf32>
    %456 = vector.broadcast %453 : f32 to vector<16x16xf32>
    %457 = arith.mulf %456, %455 : vector<16x16xf32>
    %458 = arith.addf %452, %457 : vector<16x16xf32>
    %c32 = arith.constant 32 : index
    %459 = memref.load %arg2[%c32] : memref<98xf32, #tpu.memory_space<smem>>
    %c0_335 = arith.constant 0 : index
    %c4_336 = arith.constant 4 : index
    %c4_337 = arith.constant 4 : index
    %c0_338 = arith.constant 0 : index
    %460 = vector.load %arg5[%c0_335, %c4_336, %c4_337, %c0_338] : memref<2x7x22x16xf32, #tpu.memory_space<vmem>>, vector<1x1x16x16xf32>
    %461 = vector.shape_cast %460 : vector<1x1x16x16xf32> to vector<16x16xf32>
    %462 = vector.broadcast %459 : f32 to vector<16x16xf32>
    %463 = arith.mulf %462, %461 : vector<16x16xf32>
    %464 = arith.addf %458, %463 : vector<16x16xf32>
    %c81 = arith.constant 81 : index
    %465 = memref.load %arg2[%c81] : memref<98xf32, #tpu.memory_space<smem>>
    %c1_339 = arith.constant 1 : index
    %c4_340 = arith.constant 4 : index
    %c4_341 = arith.constant 4 : index
    %c0_342 = arith.constant 0 : index
    %466 = vector.load %arg5[%c1_339, %c4_340, %c4_341, %c0_342] : memref<2x7x22x16xf32, #tpu.memory_space<vmem>>, vector<1x1x16x16xf32>
    %467 = vector.shape_cast %466 : vector<1x1x16x16xf32> to vector<16x16xf32>
    %468 = vector.broadcast %465 : f32 to vector<16x16xf32>
    %469 = arith.mulf %468, %467 : vector<16x16xf32>
    %470 = arith.addf %464, %469 : vector<16x16xf32>
    %c33 = arith.constant 33 : index
    %471 = memref.load %arg2[%c33] : memref<98xf32, #tpu.memory_space<smem>>
    %c0_343 = arith.constant 0 : index
    %c5_344 = arith.constant 5 : index
    %c4_345 = arith.constant 4 : index
    %c0_346 = arith.constant 0 : index
    %472 = vector.load %arg5[%c0_343, %c5_344, %c4_345, %c0_346] : memref<2x7x22x16xf32, #tpu.memory_space<vmem>>, vector<1x1x16x16xf32>
    %473 = vector.shape_cast %472 : vector<1x1x16x16xf32> to vector<16x16xf32>
    %474 = vector.broadcast %471 : f32 to vector<16x16xf32>
    %475 = arith.mulf %474, %473 : vector<16x16xf32>
    %476 = arith.addf %470, %475 : vector<16x16xf32>
    %c82 = arith.constant 82 : index
    %477 = memref.load %arg2[%c82] : memref<98xf32, #tpu.memory_space<smem>>
    %c1_347 = arith.constant 1 : index
    %c5_348 = arith.constant 5 : index
    %c4_349 = arith.constant 4 : index
    %c0_350 = arith.constant 0 : index
    %478 = vector.load %arg5[%c1_347, %c5_348, %c4_349, %c0_350] : memref<2x7x22x16xf32, #tpu.memory_space<vmem>>, vector<1x1x16x16xf32>
    %479 = vector.shape_cast %478 : vector<1x1x16x16xf32> to vector<16x16xf32>
    %480 = vector.broadcast %477 : f32 to vector<16x16xf32>
    %481 = arith.mulf %480, %479 : vector<16x16xf32>
    %482 = arith.addf %476, %481 : vector<16x16xf32>
    %c34 = arith.constant 34 : index
    %483 = memref.load %arg2[%c34] : memref<98xf32, #tpu.memory_space<smem>>
    %c0_351 = arith.constant 0 : index
    %c6_352 = arith.constant 6 : index
    %c4_353 = arith.constant 4 : index
    %c0_354 = arith.constant 0 : index
    %484 = vector.load %arg5[%c0_351, %c6_352, %c4_353, %c0_354] : memref<2x7x22x16xf32, #tpu.memory_space<vmem>>, vector<1x1x16x16xf32>
    %485 = vector.shape_cast %484 : vector<1x1x16x16xf32> to vector<16x16xf32>
    %486 = vector.broadcast %483 : f32 to vector<16x16xf32>
    %487 = arith.mulf %486, %485 : vector<16x16xf32>
    %488 = arith.addf %482, %487 : vector<16x16xf32>
    %c83 = arith.constant 83 : index
    %489 = memref.load %arg2[%c83] : memref<98xf32, #tpu.memory_space<smem>>
    %c1_355 = arith.constant 1 : index
    %c6_356 = arith.constant 6 : index
    %c4_357 = arith.constant 4 : index
    %c0_358 = arith.constant 0 : index
    %490 = vector.load %arg5[%c1_355, %c6_356, %c4_357, %c0_358] : memref<2x7x22x16xf32, #tpu.memory_space<vmem>>, vector<1x1x16x16xf32>
    %491 = vector.shape_cast %490 : vector<1x1x16x16xf32> to vector<16x16xf32>
    %492 = vector.broadcast %489 : f32 to vector<16x16xf32>
    %493 = arith.mulf %492, %491 : vector<16x16xf32>
    %494 = arith.addf %488, %493 : vector<16x16xf32>
    %c35 = arith.constant 35 : index
    %495 = memref.load %arg2[%c35] : memref<98xf32, #tpu.memory_space<smem>>
    %c0_359 = arith.constant 0 : index
    %c0_360 = arith.constant 0 : index
    %c5_361 = arith.constant 5 : index
    %c0_362 = arith.constant 0 : index
    %496 = vector.load %arg5[%c0_359, %c0_360, %c5_361, %c0_362] : memref<2x7x22x16xf32, #tpu.memory_space<vmem>>, vector<1x1x16x16xf32>
    %497 = vector.shape_cast %496 : vector<1x1x16x16xf32> to vector<16x16xf32>
    %498 = vector.broadcast %495 : f32 to vector<16x16xf32>
    %499 = arith.mulf %498, %497 : vector<16x16xf32>
    %500 = arith.addf %494, %499 : vector<16x16xf32>
    %c84 = arith.constant 84 : index
    %501 = memref.load %arg2[%c84] : memref<98xf32, #tpu.memory_space<smem>>
    %c1_363 = arith.constant 1 : index
    %c0_364 = arith.constant 0 : index
    %c5_365 = arith.constant 5 : index
    %c0_366 = arith.constant 0 : index
    %502 = vector.load %arg5[%c1_363, %c0_364, %c5_365, %c0_366] : memref<2x7x22x16xf32, #tpu.memory_space<vmem>>, vector<1x1x16x16xf32>
    %503 = vector.shape_cast %502 : vector<1x1x16x16xf32> to vector<16x16xf32>
    %504 = vector.broadcast %501 : f32 to vector<16x16xf32>
    %505 = arith.mulf %504, %503 : vector<16x16xf32>
    %506 = arith.addf %500, %505 : vector<16x16xf32>
    %c36 = arith.constant 36 : index
    %507 = memref.load %arg2[%c36] : memref<98xf32, #tpu.memory_space<smem>>
    %c0_367 = arith.constant 0 : index
    %c1_368 = arith.constant 1 : index
    %c5_369 = arith.constant 5 : index
    %c0_370 = arith.constant 0 : index
    %508 = vector.load %arg5[%c0_367, %c1_368, %c5_369, %c0_370] : memref<2x7x22x16xf32, #tpu.memory_space<vmem>>, vector<1x1x16x16xf32>
    %509 = vector.shape_cast %508 : vector<1x1x16x16xf32> to vector<16x16xf32>
    %510 = vector.broadcast %507 : f32 to vector<16x16xf32>
    %511 = arith.mulf %510, %509 : vector<16x16xf32>
    %512 = arith.addf %506, %511 : vector<16x16xf32>
    %c85 = arith.constant 85 : index
    %513 = memref.load %arg2[%c85] : memref<98xf32, #tpu.memory_space<smem>>
    %c1_371 = arith.constant 1 : index
    %c1_372 = arith.constant 1 : index
    %c5_373 = arith.constant 5 : index
    %c0_374 = arith.constant 0 : index
    %514 = vector.load %arg5[%c1_371, %c1_372, %c5_373, %c0_374] : memref<2x7x22x16xf32, #tpu.memory_space<vmem>>, vector<1x1x16x16xf32>
    %515 = vector.shape_cast %514 : vector<1x1x16x16xf32> to vector<16x16xf32>
    %516 = vector.broadcast %513 : f32 to vector<16x16xf32>
    %517 = arith.mulf %516, %515 : vector<16x16xf32>
    %518 = arith.addf %512, %517 : vector<16x16xf32>
    %c37 = arith.constant 37 : index
    %519 = memref.load %arg2[%c37] : memref<98xf32, #tpu.memory_space<smem>>
    %c0_375 = arith.constant 0 : index
    %c2_376 = arith.constant 2 : index
    %c5_377 = arith.constant 5 : index
    %c0_378 = arith.constant 0 : index
    %520 = vector.load %arg5[%c0_375, %c2_376, %c5_377, %c0_378] : memref<2x7x22x16xf32, #tpu.memory_space<vmem>>, vector<1x1x16x16xf32>
    %521 = vector.shape_cast %520 : vector<1x1x16x16xf32> to vector<16x16xf32>
    %522 = vector.broadcast %519 : f32 to vector<16x16xf32>
    %523 = arith.mulf %522, %521 : vector<16x16xf32>
    %524 = arith.addf %518, %523 : vector<16x16xf32>
    %c86 = arith.constant 86 : index
    %525 = memref.load %arg2[%c86] : memref<98xf32, #tpu.memory_space<smem>>
    %c1_379 = arith.constant 1 : index
    %c2_380 = arith.constant 2 : index
    %c5_381 = arith.constant 5 : index
    %c0_382 = arith.constant 0 : index
    %526 = vector.load %arg5[%c1_379, %c2_380, %c5_381, %c0_382] : memref<2x7x22x16xf32, #tpu.memory_space<vmem>>, vector<1x1x16x16xf32>
    %527 = vector.shape_cast %526 : vector<1x1x16x16xf32> to vector<16x16xf32>
    %528 = vector.broadcast %525 : f32 to vector<16x16xf32>
    %529 = arith.mulf %528, %527 : vector<16x16xf32>
    %530 = arith.addf %524, %529 : vector<16x16xf32>
    %c38 = arith.constant 38 : index
    %531 = memref.load %arg2[%c38] : memref<98xf32, #tpu.memory_space<smem>>
    %c0_383 = arith.constant 0 : index
    %c3_384 = arith.constant 3 : index
    %c5_385 = arith.constant 5 : index
    %c0_386 = arith.constant 0 : index
    %532 = vector.load %arg5[%c0_383, %c3_384, %c5_385, %c0_386] : memref<2x7x22x16xf32, #tpu.memory_space<vmem>>, vector<1x1x16x16xf32>
    %533 = vector.shape_cast %532 : vector<1x1x16x16xf32> to vector<16x16xf32>
    %534 = vector.broadcast %531 : f32 to vector<16x16xf32>
    %535 = arith.mulf %534, %533 : vector<16x16xf32>
    %536 = arith.addf %530, %535 : vector<16x16xf32>
    %c87 = arith.constant 87 : index
    %537 = memref.load %arg2[%c87] : memref<98xf32, #tpu.memory_space<smem>>
    %c1_387 = arith.constant 1 : index
    %c3_388 = arith.constant 3 : index
    %c5_389 = arith.constant 5 : index
    %c0_390 = arith.constant 0 : index
    %538 = vector.load %arg5[%c1_387, %c3_388, %c5_389, %c0_390] : memref<2x7x22x16xf32, #tpu.memory_space<vmem>>, vector<1x1x16x16xf32>
    %539 = vector.shape_cast %538 : vector<1x1x16x16xf32> to vector<16x16xf32>
    %540 = vector.broadcast %537 : f32 to vector<16x16xf32>
    %541 = arith.mulf %540, %539 : vector<16x16xf32>
    %542 = arith.addf %536, %541 : vector<16x16xf32>
    %c39 = arith.constant 39 : index
    %543 = memref.load %arg2[%c39] : memref<98xf32, #tpu.memory_space<smem>>
    %c0_391 = arith.constant 0 : index
    %c4_392 = arith.constant 4 : index
    %c5_393 = arith.constant 5 : index
    %c0_394 = arith.constant 0 : index
    %544 = vector.load %arg5[%c0_391, %c4_392, %c5_393, %c0_394] : memref<2x7x22x16xf32, #tpu.memory_space<vmem>>, vector<1x1x16x16xf32>
    %545 = vector.shape_cast %544 : vector<1x1x16x16xf32> to vector<16x16xf32>
    %546 = vector.broadcast %543 : f32 to vector<16x16xf32>
    %547 = arith.mulf %546, %545 : vector<16x16xf32>
    %548 = arith.addf %542, %547 : vector<16x16xf32>
    %c88 = arith.constant 88 : index
    %549 = memref.load %arg2[%c88] : memref<98xf32, #tpu.memory_space<smem>>
    %c1_395 = arith.constant 1 : index
    %c4_396 = arith.constant 4 : index
    %c5_397 = arith.constant 5 : index
    %c0_398 = arith.constant 0 : index
    %550 = vector.load %arg5[%c1_395, %c4_396, %c5_397, %c0_398] : memref<2x7x22x16xf32, #tpu.memory_space<vmem>>, vector<1x1x16x16xf32>
    %551 = vector.shape_cast %550 : vector<1x1x16x16xf32> to vector<16x16xf32>
    %552 = vector.broadcast %549 : f32 to vector<16x16xf32>
    %553 = arith.mulf %552, %551 : vector<16x16xf32>
    %554 = arith.addf %548, %553 : vector<16x16xf32>
    %c40 = arith.constant 40 : index
    %555 = memref.load %arg2[%c40] : memref<98xf32, #tpu.memory_space<smem>>
    %c0_399 = arith.constant 0 : index
    %c5_400 = arith.constant 5 : index
    %c5_401 = arith.constant 5 : index
    %c0_402 = arith.constant 0 : index
    %556 = vector.load %arg5[%c0_399, %c5_400, %c5_401, %c0_402] : memref<2x7x22x16xf32, #tpu.memory_space<vmem>>, vector<1x1x16x16xf32>
    %557 = vector.shape_cast %556 : vector<1x1x16x16xf32> to vector<16x16xf32>
    %558 = vector.broadcast %555 : f32 to vector<16x16xf32>
    %559 = arith.mulf %558, %557 : vector<16x16xf32>
    %560 = arith.addf %554, %559 : vector<16x16xf32>
    %c89 = arith.constant 89 : index
    %561 = memref.load %arg2[%c89] : memref<98xf32, #tpu.memory_space<smem>>
    %c1_403 = arith.constant 1 : index
    %c5_404 = arith.constant 5 : index
    %c5_405 = arith.constant 5 : index
    %c0_406 = arith.constant 0 : index
    %562 = vector.load %arg5[%c1_403, %c5_404, %c5_405, %c0_406] : memref<2x7x22x16xf32, #tpu.memory_space<vmem>>, vector<1x1x16x16xf32>
    %563 = vector.shape_cast %562 : vector<1x1x16x16xf32> to vector<16x16xf32>
    %564 = vector.broadcast %561 : f32 to vector<16x16xf32>
    %565 = arith.mulf %564, %563 : vector<16x16xf32>
    %566 = arith.addf %560, %565 : vector<16x16xf32>
    %c41 = arith.constant 41 : index
    %567 = memref.load %arg2[%c41] : memref<98xf32, #tpu.memory_space<smem>>
    %c0_407 = arith.constant 0 : index
    %c6_408 = arith.constant 6 : index
    %c5_409 = arith.constant 5 : index
    %c0_410 = arith.constant 0 : index
    %568 = vector.load %arg5[%c0_407, %c6_408, %c5_409, %c0_410] : memref<2x7x22x16xf32, #tpu.memory_space<vmem>>, vector<1x1x16x16xf32>
    %569 = vector.shape_cast %568 : vector<1x1x16x16xf32> to vector<16x16xf32>
    %570 = vector.broadcast %567 : f32 to vector<16x16xf32>
    %571 = arith.mulf %570, %569 : vector<16x16xf32>
    %572 = arith.addf %566, %571 : vector<16x16xf32>
    %c90 = arith.constant 90 : index
    %573 = memref.load %arg2[%c90] : memref<98xf32, #tpu.memory_space<smem>>
    %c1_411 = arith.constant 1 : index
    %c6_412 = arith.constant 6 : index
    %c5_413 = arith.constant 5 : index
    %c0_414 = arith.constant 0 : index
    %574 = vector.load %arg5[%c1_411, %c6_412, %c5_413, %c0_414] : memref<2x7x22x16xf32, #tpu.memory_space<vmem>>, vector<1x1x16x16xf32>
    %575 = vector.shape_cast %574 : vector<1x1x16x16xf32> to vector<16x16xf32>
    %576 = vector.broadcast %573 : f32 to vector<16x16xf32>
    %577 = arith.mulf %576, %575 : vector<16x16xf32>
    %578 = arith.addf %572, %577 : vector<16x16xf32>
    %c42 = arith.constant 42 : index
    %579 = memref.load %arg2[%c42] : memref<98xf32, #tpu.memory_space<smem>>
    %c0_415 = arith.constant 0 : index
    %c0_416 = arith.constant 0 : index
    %c6_417 = arith.constant 6 : index
    %c0_418 = arith.constant 0 : index
    %580 = vector.load %arg5[%c0_415, %c0_416, %c6_417, %c0_418] : memref<2x7x22x16xf32, #tpu.memory_space<vmem>>, vector<1x1x16x16xf32>
    %581 = vector.shape_cast %580 : vector<1x1x16x16xf32> to vector<16x16xf32>
    %582 = vector.broadcast %579 : f32 to vector<16x16xf32>
    %583 = arith.mulf %582, %581 : vector<16x16xf32>
    %584 = arith.addf %578, %583 : vector<16x16xf32>
    %c91 = arith.constant 91 : index
    %585 = memref.load %arg2[%c91] : memref<98xf32, #tpu.memory_space<smem>>
    %c1_419 = arith.constant 1 : index
    %c0_420 = arith.constant 0 : index
    %c6_421 = arith.constant 6 : index
    %c0_422 = arith.constant 0 : index
    %586 = vector.load %arg5[%c1_419, %c0_420, %c6_421, %c0_422] : memref<2x7x22x16xf32, #tpu.memory_space<vmem>>, vector<1x1x16x16xf32>
    %587 = vector.shape_cast %586 : vector<1x1x16x16xf32> to vector<16x16xf32>
    %588 = vector.broadcast %585 : f32 to vector<16x16xf32>
    %589 = arith.mulf %588, %587 : vector<16x16xf32>
    %590 = arith.addf %584, %589 : vector<16x16xf32>
    %c43 = arith.constant 43 : index
    %591 = memref.load %arg2[%c43] : memref<98xf32, #tpu.memory_space<smem>>
    %c0_423 = arith.constant 0 : index
    %c1_424 = arith.constant 1 : index
    %c6_425 = arith.constant 6 : index
    %c0_426 = arith.constant 0 : index
    %592 = vector.load %arg5[%c0_423, %c1_424, %c6_425, %c0_426] : memref<2x7x22x16xf32, #tpu.memory_space<vmem>>, vector<1x1x16x16xf32>
    %593 = vector.shape_cast %592 : vector<1x1x16x16xf32> to vector<16x16xf32>
    %594 = vector.broadcast %591 : f32 to vector<16x16xf32>
    %595 = arith.mulf %594, %593 : vector<16x16xf32>
    %596 = arith.addf %590, %595 : vector<16x16xf32>
    %c92 = arith.constant 92 : index
    %597 = memref.load %arg2[%c92] : memref<98xf32, #tpu.memory_space<smem>>
    %c1_427 = arith.constant 1 : index
    %c1_428 = arith.constant 1 : index
    %c6_429 = arith.constant 6 : index
    %c0_430 = arith.constant 0 : index
    %598 = vector.load %arg5[%c1_427, %c1_428, %c6_429, %c0_430] : memref<2x7x22x16xf32, #tpu.memory_space<vmem>>, vector<1x1x16x16xf32>
    %599 = vector.shape_cast %598 : vector<1x1x16x16xf32> to vector<16x16xf32>
    %600 = vector.broadcast %597 : f32 to vector<16x16xf32>
    %601 = arith.mulf %600, %599 : vector<16x16xf32>
    %602 = arith.addf %596, %601 : vector<16x16xf32>
    %c44 = arith.constant 44 : index
    %603 = memref.load %arg2[%c44] : memref<98xf32, #tpu.memory_space<smem>>
    %c0_431 = arith.constant 0 : index
    %c2_432 = arith.constant 2 : index
    %c6_433 = arith.constant 6 : index
    %c0_434 = arith.constant 0 : index
    %604 = vector.load %arg5[%c0_431, %c2_432, %c6_433, %c0_434] : memref<2x7x22x16xf32, #tpu.memory_space<vmem>>, vector<1x1x16x16xf32>
    %605 = vector.shape_cast %604 : vector<1x1x16x16xf32> to vector<16x16xf32>
    %606 = vector.broadcast %603 : f32 to vector<16x16xf32>
    %607 = arith.mulf %606, %605 : vector<16x16xf32>
    %608 = arith.addf %602, %607 : vector<16x16xf32>
    %c93 = arith.constant 93 : index
    %609 = memref.load %arg2[%c93] : memref<98xf32, #tpu.memory_space<smem>>
    %c1_435 = arith.constant 1 : index
    %c2_436 = arith.constant 2 : index
    %c6_437 = arith.constant 6 : index
    %c0_438 = arith.constant 0 : index
    %610 = vector.load %arg5[%c1_435, %c2_436, %c6_437, %c0_438] : memref<2x7x22x16xf32, #tpu.memory_space<vmem>>, vector<1x1x16x16xf32>
    %611 = vector.shape_cast %610 : vector<1x1x16x16xf32> to vector<16x16xf32>
    %612 = vector.broadcast %609 : f32 to vector<16x16xf32>
    %613 = arith.mulf %612, %611 : vector<16x16xf32>
    %614 = arith.addf %608, %613 : vector<16x16xf32>
    %c45 = arith.constant 45 : index
    %615 = memref.load %arg2[%c45] : memref<98xf32, #tpu.memory_space<smem>>
    %c0_439 = arith.constant 0 : index
    %c3_440 = arith.constant 3 : index
    %c6_441 = arith.constant 6 : index
    %c0_442 = arith.constant 0 : index
    %616 = vector.load %arg5[%c0_439, %c3_440, %c6_441, %c0_442] : memref<2x7x22x16xf32, #tpu.memory_space<vmem>>, vector<1x1x16x16xf32>
    %617 = vector.shape_cast %616 : vector<1x1x16x16xf32> to vector<16x16xf32>
    %618 = vector.broadcast %615 : f32 to vector<16x16xf32>
    %619 = arith.mulf %618, %617 : vector<16x16xf32>
    %620 = arith.addf %614, %619 : vector<16x16xf32>
    %c94 = arith.constant 94 : index
    %621 = memref.load %arg2[%c94] : memref<98xf32, #tpu.memory_space<smem>>
    %c1_443 = arith.constant 1 : index
    %c3_444 = arith.constant 3 : index
    %c6_445 = arith.constant 6 : index
    %c0_446 = arith.constant 0 : index
    %622 = vector.load %arg5[%c1_443, %c3_444, %c6_445, %c0_446] : memref<2x7x22x16xf32, #tpu.memory_space<vmem>>, vector<1x1x16x16xf32>
    %623 = vector.shape_cast %622 : vector<1x1x16x16xf32> to vector<16x16xf32>
    %624 = vector.broadcast %621 : f32 to vector<16x16xf32>
    %625 = arith.mulf %624, %623 : vector<16x16xf32>
    %626 = arith.addf %620, %625 : vector<16x16xf32>
    %c46 = arith.constant 46 : index
    %627 = memref.load %arg2[%c46] : memref<98xf32, #tpu.memory_space<smem>>
    %c0_447 = arith.constant 0 : index
    %c4_448 = arith.constant 4 : index
    %c6_449 = arith.constant 6 : index
    %c0_450 = arith.constant 0 : index
    %628 = vector.load %arg5[%c0_447, %c4_448, %c6_449, %c0_450] : memref<2x7x22x16xf32, #tpu.memory_space<vmem>>, vector<1x1x16x16xf32>
    %629 = vector.shape_cast %628 : vector<1x1x16x16xf32> to vector<16x16xf32>
    %630 = vector.broadcast %627 : f32 to vector<16x16xf32>
    %631 = arith.mulf %630, %629 : vector<16x16xf32>
    %632 = arith.addf %626, %631 : vector<16x16xf32>
    %c95 = arith.constant 95 : index
    %633 = memref.load %arg2[%c95] : memref<98xf32, #tpu.memory_space<smem>>
    %c1_451 = arith.constant 1 : index
    %c4_452 = arith.constant 4 : index
    %c6_453 = arith.constant 6 : index
    %c0_454 = arith.constant 0 : index
    %634 = vector.load %arg5[%c1_451, %c4_452, %c6_453, %c0_454] : memref<2x7x22x16xf32, #tpu.memory_space<vmem>>, vector<1x1x16x16xf32>
    %635 = vector.shape_cast %634 : vector<1x1x16x16xf32> to vector<16x16xf32>
    %636 = vector.broadcast %633 : f32 to vector<16x16xf32>
    %637 = arith.mulf %636, %635 : vector<16x16xf32>
    %638 = arith.addf %632, %637 : vector<16x16xf32>
    %c47 = arith.constant 47 : index
    %639 = memref.load %arg2[%c47] : memref<98xf32, #tpu.memory_space<smem>>
    %c0_455 = arith.constant 0 : index
    %c5_456 = arith.constant 5 : index
    %c6_457 = arith.constant 6 : index
    %c0_458 = arith.constant 0 : index
    %640 = vector.load %arg5[%c0_455, %c5_456, %c6_457, %c0_458] : memref<2x7x22x16xf32, #tpu.memory_space<vmem>>, vector<1x1x16x16xf32>
    %641 = vector.shape_cast %640 : vector<1x1x16x16xf32> to vector<16x16xf32>
    %642 = vector.broadcast %639 : f32 to vector<16x16xf32>
    %643 = arith.mulf %642, %641 : vector<16x16xf32>
    %644 = arith.addf %638, %643 : vector<16x16xf32>
    %c96 = arith.constant 96 : index
    %645 = memref.load %arg2[%c96] : memref<98xf32, #tpu.memory_space<smem>>
    %c1_459 = arith.constant 1 : index
    %c5_460 = arith.constant 5 : index
    %c6_461 = arith.constant 6 : index
    %c0_462 = arith.constant 0 : index
    %646 = vector.load %arg5[%c1_459, %c5_460, %c6_461, %c0_462] : memref<2x7x22x16xf32, #tpu.memory_space<vmem>>, vector<1x1x16x16xf32>
    %647 = vector.shape_cast %646 : vector<1x1x16x16xf32> to vector<16x16xf32>
    %648 = vector.broadcast %645 : f32 to vector<16x16xf32>
    %649 = arith.mulf %648, %647 : vector<16x16xf32>
    %650 = arith.addf %644, %649 : vector<16x16xf32>
    %c48 = arith.constant 48 : index
    %651 = memref.load %arg2[%c48] : memref<98xf32, #tpu.memory_space<smem>>
    %c0_463 = arith.constant 0 : index
    %c6_464 = arith.constant 6 : index
    %c6_465 = arith.constant 6 : index
    %c0_466 = arith.constant 0 : index
    %652 = vector.load %arg5[%c0_463, %c6_464, %c6_465, %c0_466] : memref<2x7x22x16xf32, #tpu.memory_space<vmem>>, vector<1x1x16x16xf32>
    %653 = vector.shape_cast %652 : vector<1x1x16x16xf32> to vector<16x16xf32>
    %654 = vector.broadcast %651 : f32 to vector<16x16xf32>
    %655 = arith.mulf %654, %653 : vector<16x16xf32>
    %656 = arith.addf %650, %655 : vector<16x16xf32>
    %c97 = arith.constant 97 : index
    %657 = memref.load %arg2[%c97] : memref<98xf32, #tpu.memory_space<smem>>
    %c1_467 = arith.constant 1 : index
    %c6_468 = arith.constant 6 : index
    %c6_469 = arith.constant 6 : index
    %c0_470 = arith.constant 0 : index
    %658 = vector.load %arg5[%c1_467, %c6_468, %c6_469, %c0_470] : memref<2x7x22x16xf32, #tpu.memory_space<vmem>>, vector<1x1x16x16xf32>
    %659 = vector.shape_cast %658 : vector<1x1x16x16xf32> to vector<16x16xf32>
    %660 = vector.broadcast %657 : f32 to vector<16x16xf32>
    %661 = arith.mulf %660, %659 : vector<16x16xf32>
    %662 = arith.addf %656, %661 : vector<16x16xf32>
    %663 = arith.negf %662 : vector<16x16xf32>
    %664 = math.exp %663 : vector<16x16xf32>
    %cst_471 = arith.constant 1.000000e+00 : f32
    %665 = vector.broadcast %cst_471 : f32 to vector<16x16xf32>
    %666 = arith.addf %665, %664 : vector<16x16xf32>
    %667 = arith.divf %665, %666 : vector<16x16xf32>
    %c0_472 = arith.constant 0 : index
    %c0_473 = arith.constant 0 : index
    %c0_474 = arith.constant 0 : index
    %c0_475 = arith.constant 0 : index
    %668 = vector.load %arg1[%c0_472, %c0_473, %c0_474, %c0_475] : memref<2x4x16x16xf32, #tpu.memory_space<vmem>>, vector<1x4x16x16xf32>
    %669 = vector.shape_cast %668 : vector<1x4x16x16xf32> to vector<4x16x16xf32>
    %670 = vector.shape_cast %667 : vector<16x16xf32> to vector<1x16x16xf32>
    %671 = vector.broadcast %670 : vector<1x16x16xf32> to vector<4x16x16xf32>
    %672 = arith.mulf %669, %671 : vector<4x16x16xf32>
    %c0_476 = arith.constant 0 : index
    %c0_477 = arith.constant 0 : index
    %c0_478 = arith.constant 0 : index
    %c0_479 = arith.constant 0 : index
    %673 = vector.load %arg3[%c0_476, %c0_477, %c0_478, %c0_479] : memref<2x4x16x16xf32, #tpu.memory_space<vmem>>, vector<1x4x16x16xf32>
    %674 = vector.shape_cast %673 : vector<1x4x16x16xf32> to vector<4x16x16xf32>
    %675 = vector.shape_cast %672 : vector<4x16x16xf32> to vector<1x4x16x16xf32>
    tpu.vector_store %arg3[%c0_476, %c0_477, %c0_478, %c0_479], %675 {strides = array<i32>} : memref<2x4x16x16xf32, #tpu.memory_space<vmem>>, vector<1x4x16x16xf32>,
    %c1_480 = arith.constant 1 : index
    %c0_481 = arith.constant 0 : index
    %c0_482 = arith.constant 0 : index
    %c0_483 = arith.constant 0 : index
    %676 = vector.load %arg1[%c1_480, %c0_481, %c0_482, %c0_483] : memref<2x4x16x16xf32, #tpu.memory_space<vmem>>, vector<1x4x16x16xf32>
    %677 = vector.shape_cast %676 : vector<1x4x16x16xf32> to vector<4x16x16xf32>
    %cst_484 = arith.constant dense<0xFF800000> : vector<16x16xf32>
    %678 = vector.multi_reduction <maximumf>, %677, %cst_484 [0] : vector<4x16x16xf32> to vector<16x16xf32>
    %cst_485 = arith.constant dense<0.000000e+00> : vector<16x16xf32>
    %679 = vector.multi_reduction <add>, %677, %cst_485 [0] : vector<4x16x16xf32> to vector<16x16xf32>
    %cst_486 = arith.constant 2.500000e-01 : f32
    %680 = vector.broadcast %cst_486 : f32 to vector<16x16xf32>
    %681 = arith.mulf %679, %680 : vector<16x16xf32>
    %c0_487 = arith.constant 0 : index
    %c3_488 = arith.constant 3 : index
    %c3_489 = arith.constant 3 : index
    %682 = vector.load %arg4[%c0_487, %c3_488, %c3_489] : memref<2x22x22xf32, #tpu.memory_space<vmem>>, vector<1x16x16xf32>
    %683 = vector.shape_cast %682 : vector<1x16x16xf32> to vector<16x16xf32>
    %684 = vector.shape_cast %678 : vector<16x16xf32> to vector<1x16x16xf32>
    tpu.vector_store %arg4[%c0_487, %c3_488, %c3_489], %684 {strides = array<i32>} : memref<2x22x22xf32, #tpu.memory_space<vmem>>, vector<1x16x16xf32>,
    %c1_490 = arith.constant 1 : index
    %c3_491 = arith.constant 3 : index
    %c3_492 = arith.constant 3 : index
    %685 = vector.load %arg4[%c1_490, %c3_491, %c3_492] : memref<2x22x22xf32, #tpu.memory_space<vmem>>, vector<1x16x16xf32>
    %686 = vector.shape_cast %685 : vector<1x16x16xf32> to vector<16x16xf32>
    %687 = vector.shape_cast %681 : vector<16x16xf32> to vector<1x16x16xf32>
    tpu.vector_store %arg4[%c1_490, %c3_491, %c3_492], %687 {strides = array<i32>} : memref<2x22x22xf32, #tpu.memory_space<vmem>>, vector<1x16x16xf32>,
    %c0_493 = arith.constant 0 : index
    %c0_494 = arith.constant 0 : index
    %c0_495 = arith.constant 0 : index
    %688 = vector.load %arg4[%c0_493, %c0_494, %c0_495] : memref<2x22x22xf32, #tpu.memory_space<vmem>>, vector<1x22x22xf32>
    %689 = vector.shape_cast %688 : vector<1x22x22xf32> to vector<22x22xf32>
    %690 = vector.extract_strided_slice %689 {offsets = [0, 0], sizes = [22, 16], strides = [1, 1]} : vector<22x22xf32> to vector<22x16xf32>
    %c0_496 = arith.constant 0 : index
    %c0_497 = arith.constant 0 : index
    %c0_498 = arith.constant 0 : index
    %c0_499 = arith.constant 0 : index
    %691 = vector.load %arg5[%c0_496, %c0_497, %c0_498, %c0_499] : memref<2x7x22x16xf32, #tpu.memory_space<vmem>>, vector<1x1x22x16xf32>
    %692 = vector.shape_cast %691 : vector<1x1x22x16xf32> to vector<22x16xf32>
    %693 = vector.shape_cast %690 : vector<22x16xf32> to vector<1x1x22x16xf32>
    tpu.vector_store %arg5[%c0_496, %c0_497, %c0_498, %c0_499], %693 {strides = array<i32>} : memref<2x7x22x16xf32, #tpu.memory_space<vmem>>, vector<1x1x22x16xf32>,
    %694 = vector.extract_strided_slice %689 {offsets = [0, 1], sizes = [22, 16], strides = [1, 1]} : vector<22x22xf32> to vector<22x16xf32>
    %c0_500 = arith.constant 0 : index
    %c1_501 = arith.constant 1 : index
    %c0_502 = arith.constant 0 : index
    %c0_503 = arith.constant 0 : index
    %695 = vector.load %arg5[%c0_500, %c1_501, %c0_502, %c0_503] : memref<2x7x22x16xf32, #tpu.memory_space<vmem>>, vector<1x1x22x16xf32>
    %696 = vector.shape_cast %695 : vector<1x1x22x16xf32> to vector<22x16xf32>
    %697 = vector.shape_cast %694 : vector<22x16xf32> to vector<1x1x22x16xf32>
    tpu.vector_store %arg5[%c0_500, %c1_501, %c0_502, %c0_503], %697 {strides = array<i32>} : memref<2x7x22x16xf32, #tpu.memory_space<vmem>>, vector<1x1x22x16xf32>,
    %698 = vector.extract_strided_slice %689 {offsets = [0, 2], sizes = [22, 16], strides = [1, 1]} : vector<22x22xf32> to vector<22x16xf32>
    %c0_504 = arith.constant 0 : index
    %c2_505 = arith.constant 2 : index
    %c0_506 = arith.constant 0 : index
    %c0_507 = arith.constant 0 : index
    %699 = vector.load %arg5[%c0_504, %c2_505, %c0_506, %c0_507] : memref<2x7x22x16xf32, #tpu.memory_space<vmem>>, vector<1x1x22x16xf32>
    %700 = vector.shape_cast %699 : vector<1x1x22x16xf32> to vector<22x16xf32>
    %701 = vector.shape_cast %698 : vector<22x16xf32> to vector<1x1x22x16xf32>
    tpu.vector_store %arg5[%c0_504, %c2_505, %c0_506, %c0_507], %701 {strides = array<i32>} : memref<2x7x22x16xf32, #tpu.memory_space<vmem>>, vector<1x1x22x16xf32>,
    %702 = vector.extract_strided_slice %689 {offsets = [0, 3], sizes = [22, 16], strides = [1, 1]} : vector<22x22xf32> to vector<22x16xf32>
    %c0_508 = arith.constant 0 : index
    %c3_509 = arith.constant 3 : index
    %c0_510 = arith.constant 0 : index
    %c0_511 = arith.constant 0 : index
    %703 = vector.load %arg5[%c0_508, %c3_509, %c0_510, %c0_511] : memref<2x7x22x16xf32, #tpu.memory_space<vmem>>, vector<1x1x22x16xf32>
    %704 = vector.shape_cast %703 : vector<1x1x22x16xf32> to vector<22x16xf32>
    %705 = vector.shape_cast %702 : vector<22x16xf32> to vector<1x1x22x16xf32>
    tpu.vector_store %arg5[%c0_508, %c3_509, %c0_510, %c0_511], %705 {strides = array<i32>} : memref<2x7x22x16xf32, #tpu.memory_space<vmem>>, vector<1x1x22x16xf32>,
    %706 = vector.extract_strided_slice %689 {offsets = [0, 4], sizes = [22, 16], strides = [1, 1]} : vector<22x22xf32> to vector<22x16xf32>
    %c0_512 = arith.constant 0 : index
    %c4_513 = arith.constant 4 : index
    %c0_514 = arith.constant 0 : index
    %c0_515 = arith.constant 0 : index
    %707 = vector.load %arg5[%c0_512, %c4_513, %c0_514, %c0_515] : memref<2x7x22x16xf32, #tpu.memory_space<vmem>>, vector<1x1x22x16xf32>
    %708 = vector.shape_cast %707 : vector<1x1x22x16xf32> to vector<22x16xf32>
    %709 = vector.shape_cast %706 : vector<22x16xf32> to vector<1x1x22x16xf32>
    tpu.vector_store %arg5[%c0_512, %c4_513, %c0_514, %c0_515], %709 {strides = array<i32>} : memref<2x7x22x16xf32, #tpu.memory_space<vmem>>, vector<1x1x22x16xf32>,
    %710 = vector.extract_strided_slice %689 {offsets = [0, 5], sizes = [22, 16], strides = [1, 1]} : vector<22x22xf32> to vector<22x16xf32>
    %c0_516 = arith.constant 0 : index
    %c5_517 = arith.constant 5 : index
    %c0_518 = arith.constant 0 : index
    %c0_519 = arith.constant 0 : index
    %711 = vector.load %arg5[%c0_516, %c5_517, %c0_518, %c0_519] : memref<2x7x22x16xf32, #tpu.memory_space<vmem>>, vector<1x1x22x16xf32>
    %712 = vector.shape_cast %711 : vector<1x1x22x16xf32> to vector<22x16xf32>
    %713 = vector.shape_cast %710 : vector<22x16xf32> to vector<1x1x22x16xf32>
    tpu.vector_store %arg5[%c0_516, %c5_517, %c0_518, %c0_519], %713 {strides = array<i32>} : memref<2x7x22x16xf32, #tpu.memory_space<vmem>>, vector<1x1x22x16xf32>,
    %714 = vector.extract_strided_slice %689 {offsets = [0, 6], sizes = [22, 16], strides = [1, 1]} : vector<22x22xf32> to vector<22x16xf32>
    %c0_520 = arith.constant 0 : index
    %c6_521 = arith.constant 6 : index
    %c0_522 = arith.constant 0 : index
    %c0_523 = arith.constant 0 : index
    %715 = vector.load %arg5[%c0_520, %c6_521, %c0_522, %c0_523] : memref<2x7x22x16xf32, #tpu.memory_space<vmem>>, vector<1x1x22x16xf32>
    %716 = vector.shape_cast %715 : vector<1x1x22x16xf32> to vector<22x16xf32>
    %717 = vector.shape_cast %714 : vector<22x16xf32> to vector<1x1x22x16xf32>
    tpu.vector_store %arg5[%c0_520, %c6_521, %c0_522, %c0_523], %717 {strides = array<i32>} : memref<2x7x22x16xf32, #tpu.memory_space<vmem>>, vector<1x1x22x16xf32>,
    %c1_524 = arith.constant 1 : index
    %c0_525 = arith.constant 0 : index
    %c0_526 = arith.constant 0 : index
    %718 = vector.load %arg4[%c1_524, %c0_525, %c0_526] : memref<2x22x22xf32, #tpu.memory_space<vmem>>, vector<1x22x22xf32>
    %719 = vector.shape_cast %718 : vector<1x22x22xf32> to vector<22x22xf32>
    %720 = vector.extract_strided_slice %719 {offsets = [0, 0], sizes = [22, 16], strides = [1, 1]} : vector<22x22xf32> to vector<22x16xf32>
    %c1_527 = arith.constant 1 : index
    %c0_528 = arith.constant 0 : index
    %c0_529 = arith.constant 0 : index
    %c0_530 = arith.constant 0 : index
    %721 = vector.load %arg5[%c1_527, %c0_528, %c0_529, %c0_530] : memref<2x7x22x16xf32, #tpu.memory_space<vmem>>, vector<1x1x22x16xf32>
    %722 = vector.shape_cast %721 : vector<1x1x22x16xf32> to vector<22x16xf32>
    %723 = vector.shape_cast %720 : vector<22x16xf32> to vector<1x1x22x16xf32>
    tpu.vector_store %arg5[%c1_527, %c0_528, %c0_529, %c0_530], %723 {strides = array<i32>} : memref<2x7x22x16xf32, #tpu.memory_space<vmem>>, vector<1x1x22x16xf32>,
    %724 = vector.extract_strided_slice %719 {offsets = [0, 1], sizes = [22, 16], strides = [1, 1]} : vector<22x22xf32> to vector<22x16xf32>
    %c1_531 = arith.constant 1 : index
    %c1_532 = arith.constant 1 : index
    %c0_533 = arith.constant 0 : index
    %c0_534 = arith.constant 0 : index
    %725 = vector.load %arg5[%c1_531, %c1_532, %c0_533, %c0_534] : memref<2x7x22x16xf32, #tpu.memory_space<vmem>>, vector<1x1x22x16xf32>
    %726 = vector.shape_cast %725 : vector<1x1x22x16xf32> to vector<22x16xf32>
    %727 = vector.shape_cast %724 : vector<22x16xf32> to vector<1x1x22x16xf32>
    tpu.vector_store %arg5[%c1_531, %c1_532, %c0_533, %c0_534], %727 {strides = array<i32>} : memref<2x7x22x16xf32, #tpu.memory_space<vmem>>, vector<1x1x22x16xf32>,
    %728 = vector.extract_strided_slice %719 {offsets = [0, 2], sizes = [22, 16], strides = [1, 1]} : vector<22x22xf32> to vector<22x16xf32>
    %c1_535 = arith.constant 1 : index
    %c2_536 = arith.constant 2 : index
    %c0_537 = arith.constant 0 : index
    %c0_538 = arith.constant 0 : index
    %729 = vector.load %arg5[%c1_535, %c2_536, %c0_537, %c0_538] : memref<2x7x22x16xf32, #tpu.memory_space<vmem>>, vector<1x1x22x16xf32>
    %730 = vector.shape_cast %729 : vector<1x1x22x16xf32> to vector<22x16xf32>
    %731 = vector.shape_cast %728 : vector<22x16xf32> to vector<1x1x22x16xf32>
    tpu.vector_store %arg5[%c1_535, %c2_536, %c0_537, %c0_538], %731 {strides = array<i32>} : memref<2x7x22x16xf32, #tpu.memory_space<vmem>>, vector<1x1x22x16xf32>,
    %732 = vector.extract_strided_slice %719 {offsets = [0, 3], sizes = [22, 16], strides = [1, 1]} : vector<22x22xf32> to vector<22x16xf32>
    %c1_539 = arith.constant 1 : index
    %c3_540 = arith.constant 3 : index
    %c0_541 = arith.constant 0 : index
    %c0_542 = arith.constant 0 : index
    %733 = vector.load %arg5[%c1_539, %c3_540, %c0_541, %c0_542] : memref<2x7x22x16xf32, #tpu.memory_space<vmem>>, vector<1x1x22x16xf32>
    %734 = vector.shape_cast %733 : vector<1x1x22x16xf32> to vector<22x16xf32>
    %735 = vector.shape_cast %732 : vector<22x16xf32> to vector<1x1x22x16xf32>
    tpu.vector_store %arg5[%c1_539, %c3_540, %c0_541, %c0_542], %735 {strides = array<i32>} : memref<2x7x22x16xf32, #tpu.memory_space<vmem>>, vector<1x1x22x16xf32>,
    %736 = vector.extract_strided_slice %719 {offsets = [0, 4], sizes = [22, 16], strides = [1, 1]} : vector<22x22xf32> to vector<22x16xf32>
    %c1_543 = arith.constant 1 : index
    %c4_544 = arith.constant 4 : index
    %c0_545 = arith.constant 0 : index
    %c0_546 = arith.constant 0 : index
    %737 = vector.load %arg5[%c1_543, %c4_544, %c0_545, %c0_546] : memref<2x7x22x16xf32, #tpu.memory_space<vmem>>, vector<1x1x22x16xf32>
    %738 = vector.shape_cast %737 : vector<1x1x22x16xf32> to vector<22x16xf32>
    %739 = vector.shape_cast %736 : vector<22x16xf32> to vector<1x1x22x16xf32>
    tpu.vector_store %arg5[%c1_543, %c4_544, %c0_545, %c0_546], %739 {strides = array<i32>} : memref<2x7x22x16xf32, #tpu.memory_space<vmem>>, vector<1x1x22x16xf32>,
    %740 = vector.extract_strided_slice %719 {offsets = [0, 5], sizes = [22, 16], strides = [1, 1]} : vector<22x22xf32> to vector<22x16xf32>
    %c1_547 = arith.constant 1 : index
    %c5_548 = arith.constant 5 : index
    %c0_549 = arith.constant 0 : index
    %c0_550 = arith.constant 0 : index
    %741 = vector.load %arg5[%c1_547, %c5_548, %c0_549, %c0_550] : memref<2x7x22x16xf32, #tpu.memory_space<vmem>>, vector<1x1x22x16xf32>
    %742 = vector.shape_cast %741 : vector<1x1x22x16xf32> to vector<22x16xf32>
    %743 = vector.shape_cast %740 : vector<22x16xf32> to vector<1x1x22x16xf32>
    tpu.vector_store %arg5[%c1_547, %c5_548, %c0_549, %c0_550], %743 {strides = array<i32>} : memref<2x7x22x16xf32, #tpu.memory_space<vmem>>, vector<1x1x22x16xf32>,
    %744 = vector.extract_strided_slice %719 {offsets = [0, 6], sizes = [22, 16], strides = [1, 1]} : vector<22x22xf32> to vector<22x16xf32>
    %c1_551 = arith.constant 1 : index
    %c6_552 = arith.constant 6 : index
    %c0_553 = arith.constant 0 : index
    %c0_554 = arith.constant 0 : index
    %745 = vector.load %arg5[%c1_551, %c6_552, %c0_553, %c0_554] : memref<2x7x22x16xf32, #tpu.memory_space<vmem>>, vector<1x1x22x16xf32>
    %746 = vector.shape_cast %745 : vector<1x1x22x16xf32> to vector<22x16xf32>
    %747 = vector.shape_cast %744 : vector<22x16xf32> to vector<1x1x22x16xf32>
    tpu.vector_store %arg5[%c1_551, %c6_552, %c0_553, %c0_554], %747 {strides = array<i32>} : memref<2x7x22x16xf32, #tpu.memory_space<vmem>>, vector<1x1x22x16xf32>,
    %cst_555 = arith.constant 0.000000e+00 : f32
    %748 = vector.broadcast %cst_555 : f32 to vector<16x16xf32>
    %c0_556 = arith.constant 0 : index
    %749 = memref.load %arg2[%c0_556] : memref<98xf32, #tpu.memory_space<smem>>
    %c0_557 = arith.constant 0 : index
    %c0_558 = arith.constant 0 : index
    %c0_559 = arith.constant 0 : index
    %c0_560 = arith.constant 0 : index
    %750 = vector.load %arg5[%c0_557, %c0_558, %c0_559, %c0_560] : memref<2x7x22x16xf32, #tpu.memory_space<vmem>>, vector<1x1x16x16xf32>
    %751 = vector.shape_cast %750 : vector<1x1x16x16xf32> to vector<16x16xf32>
    %752 = vector.broadcast %749 : f32 to vector<16x16xf32>
    %753 = arith.mulf %752, %751 : vector<16x16xf32>
    %754 = arith.addf %748, %753 : vector<16x16xf32>
    %c49_561 = arith.constant 49 : index
    %755 = memref.load %arg2[%c49_561] : memref<98xf32, #tpu.memory_space<smem>>
    %c1_562 = arith.constant 1 : index
    %c0_563 = arith.constant 0 : index
    %c0_564 = arith.constant 0 : index
    %c0_565 = arith.constant 0 : index
    %756 = vector.load %arg5[%c1_562, %c0_563, %c0_564, %c0_565] : memref<2x7x22x16xf32, #tpu.memory_space<vmem>>, vector<1x1x16x16xf32>
    %757 = vector.shape_cast %756 : vector<1x1x16x16xf32> to vector<16x16xf32>
    %758 = vector.broadcast %755 : f32 to vector<16x16xf32>
    %759 = arith.mulf %758, %757 : vector<16x16xf32>
    %760 = arith.addf %754, %759 : vector<16x16xf32>
    %c1_566 = arith.constant 1 : index
    %761 = memref.load %arg2[%c1_566] : memref<98xf32, #tpu.memory_space<smem>>
    %c0_567 = arith.constant 0 : index
    %c1_568 = arith.constant 1 : index
    %c0_569 = arith.constant 0 : index
    %c0_570 = arith.constant 0 : index
    %762 = vector.load %arg5[%c0_567, %c1_568, %c0_569, %c0_570] : memref<2x7x22x16xf32, #tpu.memory_space<vmem>>, vector<1x1x16x16xf32>
    %763 = vector.shape_cast %762 : vector<1x1x16x16xf32> to vector<16x16xf32>
    %764 = vector.broadcast %761 : f32 to vector<16x16xf32>
    %765 = arith.mulf %764, %763 : vector<16x16xf32>
    %766 = arith.addf %760, %765 : vector<16x16xf32>
    %c50_571 = arith.constant 50 : index
    %767 = memref.load %arg2[%c50_571] : memref<98xf32, #tpu.memory_space<smem>>
    %c1_572 = arith.constant 1 : index
    %c1_573 = arith.constant 1 : index
    %c0_574 = arith.constant 0 : index
    %c0_575 = arith.constant 0 : index
    %768 = vector.load %arg5[%c1_572, %c1_573, %c0_574, %c0_575] : memref<2x7x22x16xf32, #tpu.memory_space<vmem>>, vector<1x1x16x16xf32>
    %769 = vector.shape_cast %768 : vector<1x1x16x16xf32> to vector<16x16xf32>
    %770 = vector.broadcast %767 : f32 to vector<16x16xf32>
    %771 = arith.mulf %770, %769 : vector<16x16xf32>
    %772 = arith.addf %766, %771 : vector<16x16xf32>
    %c2_576 = arith.constant 2 : index
    %773 = memref.load %arg2[%c2_576] : memref<98xf32, #tpu.memory_space<smem>>
    %c0_577 = arith.constant 0 : index
    %c2_578 = arith.constant 2 : index
    %c0_579 = arith.constant 0 : index
    %c0_580 = arith.constant 0 : index
    %774 = vector.load %arg5[%c0_577, %c2_578, %c0_579, %c0_580] : memref<2x7x22x16xf32, #tpu.memory_space<vmem>>, vector<1x1x16x16xf32>
    %775 = vector.shape_cast %774 : vector<1x1x16x16xf32> to vector<16x16xf32>
    %776 = vector.broadcast %773 : f32 to vector<16x16xf32>
    %777 = arith.mulf %776, %775 : vector<16x16xf32>
    %778 = arith.addf %772, %777 : vector<16x16xf32>
    %c51_581 = arith.constant 51 : index
    %779 = memref.load %arg2[%c51_581] : memref<98xf32, #tpu.memory_space<smem>>
    %c1_582 = arith.constant 1 : index
    %c2_583 = arith.constant 2 : index
    %c0_584 = arith.constant 0 : index
    %c0_585 = arith.constant 0 : index
    %780 = vector.load %arg5[%c1_582, %c2_583, %c0_584, %c0_585] : memref<2x7x22x16xf32, #tpu.memory_space<vmem>>, vector<1x1x16x16xf32>
    %781 = vector.shape_cast %780 : vector<1x1x16x16xf32> to vector<16x16xf32>
    %782 = vector.broadcast %779 : f32 to vector<16x16xf32>
    %783 = arith.mulf %782, %781 : vector<16x16xf32>
    %784 = arith.addf %778, %783 : vector<16x16xf32>
    %c3_586 = arith.constant 3 : index
    %785 = memref.load %arg2[%c3_586] : memref<98xf32, #tpu.memory_space<smem>>
    %c0_587 = arith.constant 0 : index
    %c3_588 = arith.constant 3 : index
    %c0_589 = arith.constant 0 : index
    %c0_590 = arith.constant 0 : index
    %786 = vector.load %arg5[%c0_587, %c3_588, %c0_589, %c0_590] : memref<2x7x22x16xf32, #tpu.memory_space<vmem>>, vector<1x1x16x16xf32>
    %787 = vector.shape_cast %786 : vector<1x1x16x16xf32> to vector<16x16xf32>
    %788 = vector.broadcast %785 : f32 to vector<16x16xf32>
    %789 = arith.mulf %788, %787 : vector<16x16xf32>
    %790 = arith.addf %784, %789 : vector<16x16xf32>
    %c52_591 = arith.constant 52 : index
    %791 = memref.load %arg2[%c52_591] : memref<98xf32, #tpu.memory_space<smem>>
    %c1_592 = arith.constant 1 : index
    %c3_593 = arith.constant 3 : index
    %c0_594 = arith.constant 0 : index
    %c0_595 = arith.constant 0 : index
    %792 = vector.load %arg5[%c1_592, %c3_593, %c0_594, %c0_595] : memref<2x7x22x16xf32, #tpu.memory_space<vmem>>, vector<1x1x16x16xf32>
    %793 = vector.shape_cast %792 : vector<1x1x16x16xf32> to vector<16x16xf32>
    %794 = vector.broadcast %791 : f32 to vector<16x16xf32>
    %795 = arith.mulf %794, %793 : vector<16x16xf32>
    %796 = arith.addf %790, %795 : vector<16x16xf32>
    %c4_596 = arith.constant 4 : index
    %797 = memref.load %arg2[%c4_596] : memref<98xf32, #tpu.memory_space<smem>>
    %c0_597 = arith.constant 0 : index
    %c4_598 = arith.constant 4 : index
    %c0_599 = arith.constant 0 : index
    %c0_600 = arith.constant 0 : index
    %798 = vector.load %arg5[%c0_597, %c4_598, %c0_599, %c0_600] : memref<2x7x22x16xf32, #tpu.memory_space<vmem>>, vector<1x1x16x16xf32>
    %799 = vector.shape_cast %798 : vector<1x1x16x16xf32> to vector<16x16xf32>
    %800 = vector.broadcast %797 : f32 to vector<16x16xf32>
    %801 = arith.mulf %800, %799 : vector<16x16xf32>
    %802 = arith.addf %796, %801 : vector<16x16xf32>
    %c53_601 = arith.constant 53 : index
    %803 = memref.load %arg2[%c53_601] : memref<98xf32, #tpu.memory_space<smem>>
    %c1_602 = arith.constant 1 : index
    %c4_603 = arith.constant 4 : index
    %c0_604 = arith.constant 0 : index
    %c0_605 = arith.constant 0 : index
    %804 = vector.load %arg5[%c1_602, %c4_603, %c0_604, %c0_605] : memref<2x7x22x16xf32, #tpu.memory_space<vmem>>, vector<1x1x16x16xf32>
    %805 = vector.shape_cast %804 : vector<1x1x16x16xf32> to vector<16x16xf32>
    %806 = vector.broadcast %803 : f32 to vector<16x16xf32>
    %807 = arith.mulf %806, %805 : vector<16x16xf32>
    %808 = arith.addf %802, %807 : vector<16x16xf32>
    %c5_606 = arith.constant 5 : index
    %809 = memref.load %arg2[%c5_606] : memref<98xf32, #tpu.memory_space<smem>>
    %c0_607 = arith.constant 0 : index
    %c5_608 = arith.constant 5 : index
    %c0_609 = arith.constant 0 : index
    %c0_610 = arith.constant 0 : index
    %810 = vector.load %arg5[%c0_607, %c5_608, %c0_609, %c0_610] : memref<2x7x22x16xf32, #tpu.memory_space<vmem>>, vector<1x1x16x16xf32>
    %811 = vector.shape_cast %810 : vector<1x1x16x16xf32> to vector<16x16xf32>
    %812 = vector.broadcast %809 : f32 to vector<16x16xf32>
    %813 = arith.mulf %812, %811 : vector<16x16xf32>
    %814 = arith.addf %808, %813 : vector<16x16xf32>
    %c54_611 = arith.constant 54 : index
    %815 = memref.load %arg2[%c54_611] : memref<98xf32, #tpu.memory_space<smem>>
    %c1_612 = arith.constant 1 : index
    %c5_613 = arith.constant 5 : index
    %c0_614 = arith.constant 0 : index
    %c0_615 = arith.constant 0 : index
    %816 = vector.load %arg5[%c1_612, %c5_613, %c0_614, %c0_615] : memref<2x7x22x16xf32, #tpu.memory_space<vmem>>, vector<1x1x16x16xf32>
    %817 = vector.shape_cast %816 : vector<1x1x16x16xf32> to vector<16x16xf32>
    %818 = vector.broadcast %815 : f32 to vector<16x16xf32>
    %819 = arith.mulf %818, %817 : vector<16x16xf32>
    %820 = arith.addf %814, %819 : vector<16x16xf32>
    %c6_616 = arith.constant 6 : index
    %821 = memref.load %arg2[%c6_616] : memref<98xf32, #tpu.memory_space<smem>>
    %c0_617 = arith.constant 0 : index
    %c6_618 = arith.constant 6 : index
    %c0_619 = arith.constant 0 : index
    %c0_620 = arith.constant 0 : index
    %822 = vector.load %arg5[%c0_617, %c6_618, %c0_619, %c0_620] : memref<2x7x22x16xf32, #tpu.memory_space<vmem>>, vector<1x1x16x16xf32>
    %823 = vector.shape_cast %822 : vector<1x1x16x16xf32> to vector<16x16xf32>
    %824 = vector.broadcast %821 : f32 to vector<16x16xf32>
    %825 = arith.mulf %824, %823 : vector<16x16xf32>
    %826 = arith.addf %820, %825 : vector<16x16xf32>
    %c55_621 = arith.constant 55 : index
    %827 = memref.load %arg2[%c55_621] : memref<98xf32, #tpu.memory_space<smem>>
    %c1_622 = arith.constant 1 : index
    %c6_623 = arith.constant 6 : index
    %c0_624 = arith.constant 0 : index
    %c0_625 = arith.constant 0 : index
    %828 = vector.load %arg5[%c1_622, %c6_623, %c0_624, %c0_625] : memref<2x7x22x16xf32, #tpu.memory_space<vmem>>, vector<1x1x16x16xf32>
    %829 = vector.shape_cast %828 : vector<1x1x16x16xf32> to vector<16x16xf32>
    %830 = vector.broadcast %827 : f32 to vector<16x16xf32>
    %831 = arith.mulf %830, %829 : vector<16x16xf32>
    %832 = arith.addf %826, %831 : vector<16x16xf32>
    %c7_626 = arith.constant 7 : index
    %833 = memref.load %arg2[%c7_626] : memref<98xf32, #tpu.memory_space<smem>>
    %c0_627 = arith.constant 0 : index
    %c0_628 = arith.constant 0 : index
    %c1_629 = arith.constant 1 : index
    %c0_630 = arith.constant 0 : index
    %834 = vector.load %arg5[%c0_627, %c0_628, %c1_629, %c0_630] : memref<2x7x22x16xf32, #tpu.memory_space<vmem>>, vector<1x1x16x16xf32>
    %835 = vector.shape_cast %834 : vector<1x1x16x16xf32> to vector<16x16xf32>
    %836 = vector.broadcast %833 : f32 to vector<16x16xf32>
    %837 = arith.mulf %836, %835 : vector<16x16xf32>
    %838 = arith.addf %832, %837 : vector<16x16xf32>
    %c56_631 = arith.constant 56 : index
    %839 = memref.load %arg2[%c56_631] : memref<98xf32, #tpu.memory_space<smem>>
    %c1_632 = arith.constant 1 : index
    %c0_633 = arith.constant 0 : index
    %c1_634 = arith.constant 1 : index
    %c0_635 = arith.constant 0 : index
    %840 = vector.load %arg5[%c1_632, %c0_633, %c1_634, %c0_635] : memref<2x7x22x16xf32, #tpu.memory_space<vmem>>, vector<1x1x16x16xf32>
    %841 = vector.shape_cast %840 : vector<1x1x16x16xf32> to vector<16x16xf32>
    %842 = vector.broadcast %839 : f32 to vector<16x16xf32>
    %843 = arith.mulf %842, %841 : vector<16x16xf32>
    %844 = arith.addf %838, %843 : vector<16x16xf32>
    %c8_636 = arith.constant 8 : index
    %845 = memref.load %arg2[%c8_636] : memref<98xf32, #tpu.memory_space<smem>>
    %c0_637 = arith.constant 0 : index
    %c1_638 = arith.constant 1 : index
    %c1_639 = arith.constant 1 : index
    %c0_640 = arith.constant 0 : index
    %846 = vector.load %arg5[%c0_637, %c1_638, %c1_639, %c0_640] : memref<2x7x22x16xf32, #tpu.memory_space<vmem>>, vector<1x1x16x16xf32>
    %847 = vector.shape_cast %846 : vector<1x1x16x16xf32> to vector<16x16xf32>
    %848 = vector.broadcast %845 : f32 to vector<16x16xf32>
    %849 = arith.mulf %848, %847 : vector<16x16xf32>
    %850 = arith.addf %844, %849 : vector<16x16xf32>
    %c57_641 = arith.constant 57 : index
    %851 = memref.load %arg2[%c57_641] : memref<98xf32, #tpu.memory_space<smem>>
    %c1_642 = arith.constant 1 : index
    %c1_643 = arith.constant 1 : index
    %c1_644 = arith.constant 1 : index
    %c0_645 = arith.constant 0 : index
    %852 = vector.load %arg5[%c1_642, %c1_643, %c1_644, %c0_645] : memref<2x7x22x16xf32, #tpu.memory_space<vmem>>, vector<1x1x16x16xf32>
    %853 = vector.shape_cast %852 : vector<1x1x16x16xf32> to vector<16x16xf32>
    %854 = vector.broadcast %851 : f32 to vector<16x16xf32>
    %855 = arith.mulf %854, %853 : vector<16x16xf32>
    %856 = arith.addf %850, %855 : vector<16x16xf32>
    %c9_646 = arith.constant 9 : index
    %857 = memref.load %arg2[%c9_646] : memref<98xf32, #tpu.memory_space<smem>>
    %c0_647 = arith.constant 0 : index
    %c2_648 = arith.constant 2 : index
    %c1_649 = arith.constant 1 : index
    %c0_650 = arith.constant 0 : index
    %858 = vector.load %arg5[%c0_647, %c2_648, %c1_649, %c0_650] : memref<2x7x22x16xf32, #tpu.memory_space<vmem>>, vector<1x1x16x16xf32>
    %859 = vector.shape_cast %858 : vector<1x1x16x16xf32> to vector<16x16xf32>
    %860 = vector.broadcast %857 : f32 to vector<16x16xf32>
    %861 = arith.mulf %860, %859 : vector<16x16xf32>
    %862 = arith.addf %856, %861 : vector<16x16xf32>
    %c58_651 = arith.constant 58 : index
    %863 = memref.load %arg2[%c58_651] : memref<98xf32, #tpu.memory_space<smem>>
    %c1_652 = arith.constant 1 : index
    %c2_653 = arith.constant 2 : index
    %c1_654 = arith.constant 1 : index
    %c0_655 = arith.constant 0 : index
    %864 = vector.load %arg5[%c1_652, %c2_653, %c1_654, %c0_655] : memref<2x7x22x16xf32, #tpu.memory_space<vmem>>, vector<1x1x16x16xf32>
    %865 = vector.shape_cast %864 : vector<1x1x16x16xf32> to vector<16x16xf32>
    %866 = vector.broadcast %863 : f32 to vector<16x16xf32>
    %867 = arith.mulf %866, %865 : vector<16x16xf32>
    %868 = arith.addf %862, %867 : vector<16x16xf32>
    %c10_656 = arith.constant 10 : index
    %869 = memref.load %arg2[%c10_656] : memref<98xf32, #tpu.memory_space<smem>>
    %c0_657 = arith.constant 0 : index
    %c3_658 = arith.constant 3 : index
    %c1_659 = arith.constant 1 : index
    %c0_660 = arith.constant 0 : index
    %870 = vector.load %arg5[%c0_657, %c3_658, %c1_659, %c0_660] : memref<2x7x22x16xf32, #tpu.memory_space<vmem>>, vector<1x1x16x16xf32>
    %871 = vector.shape_cast %870 : vector<1x1x16x16xf32> to vector<16x16xf32>
    %872 = vector.broadcast %869 : f32 to vector<16x16xf32>
    %873 = arith.mulf %872, %871 : vector<16x16xf32>
    %874 = arith.addf %868, %873 : vector<16x16xf32>
    %c59_661 = arith.constant 59 : index
    %875 = memref.load %arg2[%c59_661] : memref<98xf32, #tpu.memory_space<smem>>
    %c1_662 = arith.constant 1 : index
    %c3_663 = arith.constant 3 : index
    %c1_664 = arith.constant 1 : index
    %c0_665 = arith.constant 0 : index
    %876 = vector.load %arg5[%c1_662, %c3_663, %c1_664, %c0_665] : memref<2x7x22x16xf32, #tpu.memory_space<vmem>>, vector<1x1x16x16xf32>
    %877 = vector.shape_cast %876 : vector<1x1x16x16xf32> to vector<16x16xf32>
    %878 = vector.broadcast %875 : f32 to vector<16x16xf32>
    %879 = arith.mulf %878, %877 : vector<16x16xf32>
    %880 = arith.addf %874, %879 : vector<16x16xf32>
    %c11_666 = arith.constant 11 : index
    %881 = memref.load %arg2[%c11_666] : memref<98xf32, #tpu.memory_space<smem>>
    %c0_667 = arith.constant 0 : index
    %c4_668 = arith.constant 4 : index
    %c1_669 = arith.constant 1 : index
    %c0_670 = arith.constant 0 : index
    %882 = vector.load %arg5[%c0_667, %c4_668, %c1_669, %c0_670] : memref<2x7x22x16xf32, #tpu.memory_space<vmem>>, vector<1x1x16x16xf32>
    %883 = vector.shape_cast %882 : vector<1x1x16x16xf32> to vector<16x16xf32>
    %884 = vector.broadcast %881 : f32 to vector<16x16xf32>
    %885 = arith.mulf %884, %883 : vector<16x16xf32>
    %886 = arith.addf %880, %885 : vector<16x16xf32>
    %c60_671 = arith.constant 60 : index
    %887 = memref.load %arg2[%c60_671] : memref<98xf32, #tpu.memory_space<smem>>
    %c1_672 = arith.constant 1 : index
    %c4_673 = arith.constant 4 : index
    %c1_674 = arith.constant 1 : index
    %c0_675 = arith.constant 0 : index
    %888 = vector.load %arg5[%c1_672, %c4_673, %c1_674, %c0_675] : memref<2x7x22x16xf32, #tpu.memory_space<vmem>>, vector<1x1x16x16xf32>
    %889 = vector.shape_cast %888 : vector<1x1x16x16xf32> to vector<16x16xf32>
    %890 = vector.broadcast %887 : f32 to vector<16x16xf32>
    %891 = arith.mulf %890, %889 : vector<16x16xf32>
    %892 = arith.addf %886, %891 : vector<16x16xf32>
    %c12_676 = arith.constant 12 : index
    %893 = memref.load %arg2[%c12_676] : memref<98xf32, #tpu.memory_space<smem>>
    %c0_677 = arith.constant 0 : index
    %c5_678 = arith.constant 5 : index
    %c1_679 = arith.constant 1 : index
    %c0_680 = arith.constant 0 : index
    %894 = vector.load %arg5[%c0_677, %c5_678, %c1_679, %c0_680] : memref<2x7x22x16xf32, #tpu.memory_space<vmem>>, vector<1x1x16x16xf32>
    %895 = vector.shape_cast %894 : vector<1x1x16x16xf32> to vector<16x16xf32>
    %896 = vector.broadcast %893 : f32 to vector<16x16xf32>
    %897 = arith.mulf %896, %895 : vector<16x16xf32>
    %898 = arith.addf %892, %897 : vector<16x16xf32>
    %c61_681 = arith.constant 61 : index
    %899 = memref.load %arg2[%c61_681] : memref<98xf32, #tpu.memory_space<smem>>
    %c1_682 = arith.constant 1 : index
    %c5_683 = arith.constant 5 : index
    %c1_684 = arith.constant 1 : index
    %c0_685 = arith.constant 0 : index
    %900 = vector.load %arg5[%c1_682, %c5_683, %c1_684, %c0_685] : memref<2x7x22x16xf32, #tpu.memory_space<vmem>>, vector<1x1x16x16xf32>
    %901 = vector.shape_cast %900 : vector<1x1x16x16xf32> to vector<16x16xf32>
    %902 = vector.broadcast %899 : f32 to vector<16x16xf32>
    %903 = arith.mulf %902, %901 : vector<16x16xf32>
    %904 = arith.addf %898, %903 : vector<16x16xf32>
    %c13_686 = arith.constant 13 : index
    %905 = memref.load %arg2[%c13_686] : memref<98xf32, #tpu.memory_space<smem>>
    %c0_687 = arith.constant 0 : index
    %c6_688 = arith.constant 6 : index
    %c1_689 = arith.constant 1 : index
    %c0_690 = arith.constant 0 : index
    %906 = vector.load %arg5[%c0_687, %c6_688, %c1_689, %c0_690] : memref<2x7x22x16xf32, #tpu.memory_space<vmem>>, vector<1x1x16x16xf32>
    %907 = vector.shape_cast %906 : vector<1x1x16x16xf32> to vector<16x16xf32>
    %908 = vector.broadcast %905 : f32 to vector<16x16xf32>
    %909 = arith.mulf %908, %907 : vector<16x16xf32>
    %910 = arith.addf %904, %909 : vector<16x16xf32>
    %c62_691 = arith.constant 62 : index
    %911 = memref.load %arg2[%c62_691] : memref<98xf32, #tpu.memory_space<smem>>
    %c1_692 = arith.constant 1 : index
    %c6_693 = arith.constant 6 : index
    %c1_694 = arith.constant 1 : index
    %c0_695 = arith.constant 0 : index
    %912 = vector.load %arg5[%c1_692, %c6_693, %c1_694, %c0_695] : memref<2x7x22x16xf32, #tpu.memory_space<vmem>>, vector<1x1x16x16xf32>
    %913 = vector.shape_cast %912 : vector<1x1x16x16xf32> to vector<16x16xf32>
    %914 = vector.broadcast %911 : f32 to vector<16x16xf32>
    %915 = arith.mulf %914, %913 : vector<16x16xf32>
    %916 = arith.addf %910, %915 : vector<16x16xf32>
    %c14_696 = arith.constant 14 : index
    %917 = memref.load %arg2[%c14_696] : memref<98xf32, #tpu.memory_space<smem>>
    %c0_697 = arith.constant 0 : index
    %c0_698 = arith.constant 0 : index
    %c2_699 = arith.constant 2 : index
    %c0_700 = arith.constant 0 : index
    %918 = vector.load %arg5[%c0_697, %c0_698, %c2_699, %c0_700] : memref<2x7x22x16xf32, #tpu.memory_space<vmem>>, vector<1x1x16x16xf32>
    %919 = vector.shape_cast %918 : vector<1x1x16x16xf32> to vector<16x16xf32>
    %920 = vector.broadcast %917 : f32 to vector<16x16xf32>
    %921 = arith.mulf %920, %919 : vector<16x16xf32>
    %922 = arith.addf %916, %921 : vector<16x16xf32>
    %c63_701 = arith.constant 63 : index
    %923 = memref.load %arg2[%c63_701] : memref<98xf32, #tpu.memory_space<smem>>
    %c1_702 = arith.constant 1 : index
    %c0_703 = arith.constant 0 : index
    %c2_704 = arith.constant 2 : index
    %c0_705 = arith.constant 0 : index
    %924 = vector.load %arg5[%c1_702, %c0_703, %c2_704, %c0_705] : memref<2x7x22x16xf32, #tpu.memory_space<vmem>>, vector<1x1x16x16xf32>
    %925 = vector.shape_cast %924 : vector<1x1x16x16xf32> to vector<16x16xf32>
    %926 = vector.broadcast %923 : f32 to vector<16x16xf32>
    %927 = arith.mulf %926, %925 : vector<16x16xf32>
    %928 = arith.addf %922, %927 : vector<16x16xf32>
    %c15_706 = arith.constant 15 : index
    %929 = memref.load %arg2[%c15_706] : memref<98xf32, #tpu.memory_space<smem>>
    %c0_707 = arith.constant 0 : index
    %c1_708 = arith.constant 1 : index
    %c2_709 = arith.constant 2 : index
    %c0_710 = arith.constant 0 : index
    %930 = vector.load %arg5[%c0_707, %c1_708, %c2_709, %c0_710] : memref<2x7x22x16xf32, #tpu.memory_space<vmem>>, vector<1x1x16x16xf32>
    %931 = vector.shape_cast %930 : vector<1x1x16x16xf32> to vector<16x16xf32>
    %932 = vector.broadcast %929 : f32 to vector<16x16xf32>
    %933 = arith.mulf %932, %931 : vector<16x16xf32>
    %934 = arith.addf %928, %933 : vector<16x16xf32>
    %c64_711 = arith.constant 64 : index
    %935 = memref.load %arg2[%c64_711] : memref<98xf32, #tpu.memory_space<smem>>
    %c1_712 = arith.constant 1 : index
    %c1_713 = arith.constant 1 : index
    %c2_714 = arith.constant 2 : index
    %c0_715 = arith.constant 0 : index
    %936 = vector.load %arg5[%c1_712, %c1_713, %c2_714, %c0_715] : memref<2x7x22x16xf32, #tpu.memory_space<vmem>>, vector<1x1x16x16xf32>
    %937 = vector.shape_cast %936 : vector<1x1x16x16xf32> to vector<16x16xf32>
    %938 = vector.broadcast %935 : f32 to vector<16x16xf32>
    %939 = arith.mulf %938, %937 : vector<16x16xf32>
    %940 = arith.addf %934, %939 : vector<16x16xf32>
    %c16_716 = arith.constant 16 : index
    %941 = memref.load %arg2[%c16_716] : memref<98xf32, #tpu.memory_space<smem>>
    %c0_717 = arith.constant 0 : index
    %c2_718 = arith.constant 2 : index
    %c2_719 = arith.constant 2 : index
    %c0_720 = arith.constant 0 : index
    %942 = vector.load %arg5[%c0_717, %c2_718, %c2_719, %c0_720] : memref<2x7x22x16xf32, #tpu.memory_space<vmem>>, vector<1x1x16x16xf32>
    %943 = vector.shape_cast %942 : vector<1x1x16x16xf32> to vector<16x16xf32>
    %944 = vector.broadcast %941 : f32 to vector<16x16xf32>
    %945 = arith.mulf %944, %943 : vector<16x16xf32>
    %946 = arith.addf %940, %945 : vector<16x16xf32>
    %c65_721 = arith.constant 65 : index
    %947 = memref.load %arg2[%c65_721] : memref<98xf32, #tpu.memory_space<smem>>
    %c1_722 = arith.constant 1 : index
    %c2_723 = arith.constant 2 : index
    %c2_724 = arith.constant 2 : index
    %c0_725 = arith.constant 0 : index
    %948 = vector.load %arg5[%c1_722, %c2_723, %c2_724, %c0_725] : memref<2x7x22x16xf32, #tpu.memory_space<vmem>>, vector<1x1x16x16xf32>
    %949 = vector.shape_cast %948 : vector<1x1x16x16xf32> to vector<16x16xf32>
    %950 = vector.broadcast %947 : f32 to vector<16x16xf32>
    %951 = arith.mulf %950, %949 : vector<16x16xf32>
    %952 = arith.addf %946, %951 : vector<16x16xf32>
    %c17_726 = arith.constant 17 : index
    %953 = memref.load %arg2[%c17_726] : memref<98xf32, #tpu.memory_space<smem>>
    %c0_727 = arith.constant 0 : index
    %c3_728 = arith.constant 3 : index
    %c2_729 = arith.constant 2 : index
    %c0_730 = arith.constant 0 : index
    %954 = vector.load %arg5[%c0_727, %c3_728, %c2_729, %c0_730] : memref<2x7x22x16xf32, #tpu.memory_space<vmem>>, vector<1x1x16x16xf32>
    %955 = vector.shape_cast %954 : vector<1x1x16x16xf32> to vector<16x16xf32>
    %956 = vector.broadcast %953 : f32 to vector<16x16xf32>
    %957 = arith.mulf %956, %955 : vector<16x16xf32>
    %958 = arith.addf %952, %957 : vector<16x16xf32>
    %c66_731 = arith.constant 66 : index
    %959 = memref.load %arg2[%c66_731] : memref<98xf32, #tpu.memory_space<smem>>
    %c1_732 = arith.constant 1 : index
    %c3_733 = arith.constant 3 : index
    %c2_734 = arith.constant 2 : index
    %c0_735 = arith.constant 0 : index
    %960 = vector.load %arg5[%c1_732, %c3_733, %c2_734, %c0_735] : memref<2x7x22x16xf32, #tpu.memory_space<vmem>>, vector<1x1x16x16xf32>
    %961 = vector.shape_cast %960 : vector<1x1x16x16xf32> to vector<16x16xf32>
    %962 = vector.broadcast %959 : f32 to vector<16x16xf32>
    %963 = arith.mulf %962, %961 : vector<16x16xf32>
    %964 = arith.addf %958, %963 : vector<16x16xf32>
    %c18_736 = arith.constant 18 : index
    %965 = memref.load %arg2[%c18_736] : memref<98xf32, #tpu.memory_space<smem>>
    %c0_737 = arith.constant 0 : index
    %c4_738 = arith.constant 4 : index
    %c2_739 = arith.constant 2 : index
    %c0_740 = arith.constant 0 : index
    %966 = vector.load %arg5[%c0_737, %c4_738, %c2_739, %c0_740] : memref<2x7x22x16xf32, #tpu.memory_space<vmem>>, vector<1x1x16x16xf32>
    %967 = vector.shape_cast %966 : vector<1x1x16x16xf32> to vector<16x16xf32>
    %968 = vector.broadcast %965 : f32 to vector<16x16xf32>
    %969 = arith.mulf %968, %967 : vector<16x16xf32>
    %970 = arith.addf %964, %969 : vector<16x16xf32>
    %c67_741 = arith.constant 67 : index
    %971 = memref.load %arg2[%c67_741] : memref<98xf32, #tpu.memory_space<smem>>
    %c1_742 = arith.constant 1 : index
    %c4_743 = arith.constant 4 : index
    %c2_744 = arith.constant 2 : index
    %c0_745 = arith.constant 0 : index
    %972 = vector.load %arg5[%c1_742, %c4_743, %c2_744, %c0_745] : memref<2x7x22x16xf32, #tpu.memory_space<vmem>>, vector<1x1x16x16xf32>
    %973 = vector.shape_cast %972 : vector<1x1x16x16xf32> to vector<16x16xf32>
    %974 = vector.broadcast %971 : f32 to vector<16x16xf32>
    %975 = arith.mulf %974, %973 : vector<16x16xf32>
    %976 = arith.addf %970, %975 : vector<16x16xf32>
    %c19_746 = arith.constant 19 : index
    %977 = memref.load %arg2[%c19_746] : memref<98xf32, #tpu.memory_space<smem>>
    %c0_747 = arith.constant 0 : index
    %c5_748 = arith.constant 5 : index
    %c2_749 = arith.constant 2 : index
    %c0_750 = arith.constant 0 : index
    %978 = vector.load %arg5[%c0_747, %c5_748, %c2_749, %c0_750] : memref<2x7x22x16xf32, #tpu.memory_space<vmem>>, vector<1x1x16x16xf32>
    %979 = vector.shape_cast %978 : vector<1x1x16x16xf32> to vector<16x16xf32>
    %980 = vector.broadcast %977 : f32 to vector<16x16xf32>
    %981 = arith.mulf %980, %979 : vector<16x16xf32>
    %982 = arith.addf %976, %981 : vector<16x16xf32>
    %c68_751 = arith.constant 68 : index
    %983 = memref.load %arg2[%c68_751] : memref<98xf32, #tpu.memory_space<smem>>
    %c1_752 = arith.constant 1 : index
    %c5_753 = arith.constant 5 : index
    %c2_754 = arith.constant 2 : index
    %c0_755 = arith.constant 0 : index
    %984 = vector.load %arg5[%c1_752, %c5_753, %c2_754, %c0_755] : memref<2x7x22x16xf32, #tpu.memory_space<vmem>>, vector<1x1x16x16xf32>
    %985 = vector.shape_cast %984 : vector<1x1x16x16xf32> to vector<16x16xf32>
    %986 = vector.broadcast %983 : f32 to vector<16x16xf32>
    %987 = arith.mulf %986, %985 : vector<16x16xf32>
    %988 = arith.addf %982, %987 : vector<16x16xf32>
    %c20_756 = arith.constant 20 : index
    %989 = memref.load %arg2[%c20_756] : memref<98xf32, #tpu.memory_space<smem>>
    %c0_757 = arith.constant 0 : index
    %c6_758 = arith.constant 6 : index
    %c2_759 = arith.constant 2 : index
    %c0_760 = arith.constant 0 : index
    %990 = vector.load %arg5[%c0_757, %c6_758, %c2_759, %c0_760] : memref<2x7x22x16xf32, #tpu.memory_space<vmem>>, vector<1x1x16x16xf32>
    %991 = vector.shape_cast %990 : vector<1x1x16x16xf32> to vector<16x16xf32>
    %992 = vector.broadcast %989 : f32 to vector<16x16xf32>
    %993 = arith.mulf %992, %991 : vector<16x16xf32>
    %994 = arith.addf %988, %993 : vector<16x16xf32>
    %c69_761 = arith.constant 69 : index
    %995 = memref.load %arg2[%c69_761] : memref<98xf32, #tpu.memory_space<smem>>
    %c1_762 = arith.constant 1 : index
    %c6_763 = arith.constant 6 : index
    %c2_764 = arith.constant 2 : index
    %c0_765 = arith.constant 0 : index
    %996 = vector.load %arg5[%c1_762, %c6_763, %c2_764, %c0_765] : memref<2x7x22x16xf32, #tpu.memory_space<vmem>>, vector<1x1x16x16xf32>
    %997 = vector.shape_cast %996 : vector<1x1x16x16xf32> to vector<16x16xf32>
    %998 = vector.broadcast %995 : f32 to vector<16x16xf32>
    %999 = arith.mulf %998, %997 : vector<16x16xf32>
    %1000 = arith.addf %994, %999 : vector<16x16xf32>
    %c21_766 = arith.constant 21 : index
    %1001 = memref.load %arg2[%c21_766] : memref<98xf32, #tpu.memory_space<smem>>
    %c0_767 = arith.constant 0 : index
    %c0_768 = arith.constant 0 : index
    %c3_769 = arith.constant 3 : index
    %c0_770 = arith.constant 0 : index
    %1002 = vector.load %arg5[%c0_767, %c0_768, %c3_769, %c0_770] : memref<2x7x22x16xf32, #tpu.memory_space<vmem>>, vector<1x1x16x16xf32>
    %1003 = vector.shape_cast %1002 : vector<1x1x16x16xf32> to vector<16x16xf32>
    %1004 = vector.broadcast %1001 : f32 to vector<16x16xf32>
    %1005 = arith.mulf %1004, %1003 : vector<16x16xf32>
    %1006 = arith.addf %1000, %1005 : vector<16x16xf32>
    %c70_771 = arith.constant 70 : index
    %1007 = memref.load %arg2[%c70_771] : memref<98xf32, #tpu.memory_space<smem>>
    %c1_772 = arith.constant 1 : index
    %c0_773 = arith.constant 0 : index
    %c3_774 = arith.constant 3 : index
    %c0_775 = arith.constant 0 : index
    %1008 = vector.load %arg5[%c1_772, %c0_773, %c3_774, %c0_775] : memref<2x7x22x16xf32, #tpu.memory_space<vmem>>, vector<1x1x16x16xf32>
    %1009 = vector.shape_cast %1008 : vector<1x1x16x16xf32> to vector<16x16xf32>
    %1010 = vector.broadcast %1007 : f32 to vector<16x16xf32>
    %1011 = arith.mulf %1010, %1009 : vector<16x16xf32>
    %1012 = arith.addf %1006, %1011 : vector<16x16xf32>
    %c22_776 = arith.constant 22 : index
    %1013 = memref.load %arg2[%c22_776] : memref<98xf32, #tpu.memory_space<smem>>
    %c0_777 = arith.constant 0 : index
    %c1_778 = arith.constant 1 : index
    %c3_779 = arith.constant 3 : index
    %c0_780 = arith.constant 0 : index
    %1014 = vector.load %arg5[%c0_777, %c1_778, %c3_779, %c0_780] : memref<2x7x22x16xf32, #tpu.memory_space<vmem>>, vector<1x1x16x16xf32>
    %1015 = vector.shape_cast %1014 : vector<1x1x16x16xf32> to vector<16x16xf32>
    %1016 = vector.broadcast %1013 : f32 to vector<16x16xf32>
    %1017 = arith.mulf %1016, %1015 : vector<16x16xf32>
    %1018 = arith.addf %1012, %1017 : vector<16x16xf32>
    %c71_781 = arith.constant 71 : index
    %1019 = memref.load %arg2[%c71_781] : memref<98xf32, #tpu.memory_space<smem>>
    %c1_782 = arith.constant 1 : index
    %c1_783 = arith.constant 1 : index
    %c3_784 = arith.constant 3 : index
    %c0_785 = arith.constant 0 : index
    %1020 = vector.load %arg5[%c1_782, %c1_783, %c3_784, %c0_785] : memref<2x7x22x16xf32, #tpu.memory_space<vmem>>, vector<1x1x16x16xf32>
    %1021 = vector.shape_cast %1020 : vector<1x1x16x16xf32> to vector<16x16xf32>
    %1022 = vector.broadcast %1019 : f32 to vector<16x16xf32>
    %1023 = arith.mulf %1022, %1021 : vector<16x16xf32>
    %1024 = arith.addf %1018, %1023 : vector<16x16xf32>
    %c23_786 = arith.constant 23 : index
    %1025 = memref.load %arg2[%c23_786] : memref<98xf32, #tpu.memory_space<smem>>
    %c0_787 = arith.constant 0 : index
    %c2_788 = arith.constant 2 : index
    %c3_789 = arith.constant 3 : index
    %c0_790 = arith.constant 0 : index
    %1026 = vector.load %arg5[%c0_787, %c2_788, %c3_789, %c0_790] : memref<2x7x22x16xf32, #tpu.memory_space<vmem>>, vector<1x1x16x16xf32>
    %1027 = vector.shape_cast %1026 : vector<1x1x16x16xf32> to vector<16x16xf32>
    %1028 = vector.broadcast %1025 : f32 to vector<16x16xf32>
    %1029 = arith.mulf %1028, %1027 : vector<16x16xf32>
    %1030 = arith.addf %1024, %1029 : vector<16x16xf32>
    %c72_791 = arith.constant 72 : index
    %1031 = memref.load %arg2[%c72_791] : memref<98xf32, #tpu.memory_space<smem>>
    %c1_792 = arith.constant 1 : index
    %c2_793 = arith.constant 2 : index
    %c3_794 = arith.constant 3 : index
    %c0_795 = arith.constant 0 : index
    %1032 = vector.load %arg5[%c1_792, %c2_793, %c3_794, %c0_795] : memref<2x7x22x16xf32, #tpu.memory_space<vmem>>, vector<1x1x16x16xf32>
    %1033 = vector.shape_cast %1032 : vector<1x1x16x16xf32> to vector<16x16xf32>
    %1034 = vector.broadcast %1031 : f32 to vector<16x16xf32>
    %1035 = arith.mulf %1034, %1033 : vector<16x16xf32>
    %1036 = arith.addf %1030, %1035 : vector<16x16xf32>
    %c24_796 = arith.constant 24 : index
    %1037 = memref.load %arg2[%c24_796] : memref<98xf32, #tpu.memory_space<smem>>
    %c0_797 = arith.constant 0 : index
    %c3_798 = arith.constant 3 : index
    %c3_799 = arith.constant 3 : index
    %c0_800 = arith.constant 0 : index
    %1038 = vector.load %arg5[%c0_797, %c3_798, %c3_799, %c0_800] : memref<2x7x22x16xf32, #tpu.memory_space<vmem>>, vector<1x1x16x16xf32>
    %1039 = vector.shape_cast %1038 : vector<1x1x16x16xf32> to vector<16x16xf32>
    %1040 = vector.broadcast %1037 : f32 to vector<16x16xf32>
    %1041 = arith.mulf %1040, %1039 : vector<16x16xf32>
    %1042 = arith.addf %1036, %1041 : vector<16x16xf32>
    %c73_801 = arith.constant 73 : index
    %1043 = memref.load %arg2[%c73_801] : memref<98xf32, #tpu.memory_space<smem>>
    %c1_802 = arith.constant 1 : index
    %c3_803 = arith.constant 3 : index
    %c3_804 = arith.constant 3 : index
    %c0_805 = arith.constant 0 : index
    %1044 = vector.load %arg5[%c1_802, %c3_803, %c3_804, %c0_805] : memref<2x7x22x16xf32, #tpu.memory_space<vmem>>, vector<1x1x16x16xf32>
    %1045 = vector.shape_cast %1044 : vector<1x1x16x16xf32> to vector<16x16xf32>
    %1046 = vector.broadcast %1043 : f32 to vector<16x16xf32>
    %1047 = arith.mulf %1046, %1045 : vector<16x16xf32>
    %1048 = arith.addf %1042, %1047 : vector<16x16xf32>
    %c25_806 = arith.constant 25 : index
    %1049 = memref.load %arg2[%c25_806] : memref<98xf32, #tpu.memory_space<smem>>
    %c0_807 = arith.constant 0 : index
    %c4_808 = arith.constant 4 : index
    %c3_809 = arith.constant 3 : index
    %c0_810 = arith.constant 0 : index
    %1050 = vector.load %arg5[%c0_807, %c4_808, %c3_809, %c0_810] : memref<2x7x22x16xf32, #tpu.memory_space<vmem>>, vector<1x1x16x16xf32>
    %1051 = vector.shape_cast %1050 : vector<1x1x16x16xf32> to vector<16x16xf32>
    %1052 = vector.broadcast %1049 : f32 to vector<16x16xf32>
    %1053 = arith.mulf %1052, %1051 : vector<16x16xf32>
    %1054 = arith.addf %1048, %1053 : vector<16x16xf32>
    %c74_811 = arith.constant 74 : index
    %1055 = memref.load %arg2[%c74_811] : memref<98xf32, #tpu.memory_space<smem>>
    %c1_812 = arith.constant 1 : index
    %c4_813 = arith.constant 4 : index
    %c3_814 = arith.constant 3 : index
    %c0_815 = arith.constant 0 : index
    %1056 = vector.load %arg5[%c1_812, %c4_813, %c3_814, %c0_815] : memref<2x7x22x16xf32, #tpu.memory_space<vmem>>, vector<1x1x16x16xf32>
    %1057 = vector.shape_cast %1056 : vector<1x1x16x16xf32> to vector<16x16xf32>
    %1058 = vector.broadcast %1055 : f32 to vector<16x16xf32>
    %1059 = arith.mulf %1058, %1057 : vector<16x16xf32>
    %1060 = arith.addf %1054, %1059 : vector<16x16xf32>
    %c26_816 = arith.constant 26 : index
    %1061 = memref.load %arg2[%c26_816] : memref<98xf32, #tpu.memory_space<smem>>
    %c0_817 = arith.constant 0 : index
    %c5_818 = arith.constant 5 : index
    %c3_819 = arith.constant 3 : index
    %c0_820 = arith.constant 0 : index
    %1062 = vector.load %arg5[%c0_817, %c5_818, %c3_819, %c0_820] : memref<2x7x22x16xf32, #tpu.memory_space<vmem>>, vector<1x1x16x16xf32>
    %1063 = vector.shape_cast %1062 : vector<1x1x16x16xf32> to vector<16x16xf32>
    %1064 = vector.broadcast %1061 : f32 to vector<16x16xf32>
    %1065 = arith.mulf %1064, %1063 : vector<16x16xf32>
    %1066 = arith.addf %1060, %1065 : vector<16x16xf32>
    %c75_821 = arith.constant 75 : index
    %1067 = memref.load %arg2[%c75_821] : memref<98xf32, #tpu.memory_space<smem>>
    %c1_822 = arith.constant 1 : index
    %c5_823 = arith.constant 5 : index
    %c3_824 = arith.constant 3 : index
    %c0_825 = arith.constant 0 : index
    %1068 = vector.load %arg5[%c1_822, %c5_823, %c3_824, %c0_825] : memref<2x7x22x16xf32, #tpu.memory_space<vmem>>, vector<1x1x16x16xf32>
    %1069 = vector.shape_cast %1068 : vector<1x1x16x16xf32> to vector<16x16xf32>
    %1070 = vector.broadcast %1067 : f32 to vector<16x16xf32>
    %1071 = arith.mulf %1070, %1069 : vector<16x16xf32>
    %1072 = arith.addf %1066, %1071 : vector<16x16xf32>
    %c27_826 = arith.constant 27 : index
    %1073 = memref.load %arg2[%c27_826] : memref<98xf32, #tpu.memory_space<smem>>
    %c0_827 = arith.constant 0 : index
    %c6_828 = arith.constant 6 : index
    %c3_829 = arith.constant 3 : index
    %c0_830 = arith.constant 0 : index
    %1074 = vector.load %arg5[%c0_827, %c6_828, %c3_829, %c0_830] : memref<2x7x22x16xf32, #tpu.memory_space<vmem>>, vector<1x1x16x16xf32>
    %1075 = vector.shape_cast %1074 : vector<1x1x16x16xf32> to vector<16x16xf32>
    %1076 = vector.broadcast %1073 : f32 to vector<16x16xf32>
    %1077 = arith.mulf %1076, %1075 : vector<16x16xf32>
    %1078 = arith.addf %1072, %1077 : vector<16x16xf32>
    %c76_831 = arith.constant 76 : index
    %1079 = memref.load %arg2[%c76_831] : memref<98xf32, #tpu.memory_space<smem>>
    %c1_832 = arith.constant 1 : index
    %c6_833 = arith.constant 6 : index
    %c3_834 = arith.constant 3 : index
    %c0_835 = arith.constant 0 : index
    %1080 = vector.load %arg5[%c1_832, %c6_833, %c3_834, %c0_835] : memref<2x7x22x16xf32, #tpu.memory_space<vmem>>, vector<1x1x16x16xf32>
    %1081 = vector.shape_cast %1080 : vector<1x1x16x16xf32> to vector<16x16xf32>
    %1082 = vector.broadcast %1079 : f32 to vector<16x16xf32>
    %1083 = arith.mulf %1082, %1081 : vector<16x16xf32>
    %1084 = arith.addf %1078, %1083 : vector<16x16xf32>
    %c28_836 = arith.constant 28 : index
    %1085 = memref.load %arg2[%c28_836] : memref<98xf32, #tpu.memory_space<smem>>
    %c0_837 = arith.constant 0 : index
    %c0_838 = arith.constant 0 : index
    %c4_839 = arith.constant 4 : index
    %c0_840 = arith.constant 0 : index
    %1086 = vector.load %arg5[%c0_837, %c0_838, %c4_839, %c0_840] : memref<2x7x22x16xf32, #tpu.memory_space<vmem>>, vector<1x1x16x16xf32>
    %1087 = vector.shape_cast %1086 : vector<1x1x16x16xf32> to vector<16x16xf32>
    %1088 = vector.broadcast %1085 : f32 to vector<16x16xf32>
    %1089 = arith.mulf %1088, %1087 : vector<16x16xf32>
    %1090 = arith.addf %1084, %1089 : vector<16x16xf32>
    %c77_841 = arith.constant 77 : index
    %1091 = memref.load %arg2[%c77_841] : memref<98xf32, #tpu.memory_space<smem>>
    %c1_842 = arith.constant 1 : index
    %c0_843 = arith.constant 0 : index
    %c4_844 = arith.constant 4 : index
    %c0_845 = arith.constant 0 : index
    %1092 = vector.load %arg5[%c1_842, %c0_843, %c4_844, %c0_845] : memref<2x7x22x16xf32, #tpu.memory_space<vmem>>, vector<1x1x16x16xf32>
    %1093 = vector.shape_cast %1092 : vector<1x1x16x16xf32> to vector<16x16xf32>
    %1094 = vector.broadcast %1091 : f32 to vector<16x16xf32>
    %1095 = arith.mulf %1094, %1093 : vector<16x16xf32>
    %1096 = arith.addf %1090, %1095 : vector<16x16xf32>
    %c29_846 = arith.constant 29 : index
    %1097 = memref.load %arg2[%c29_846] : memref<98xf32, #tpu.memory_space<smem>>
    %c0_847 = arith.constant 0 : index
    %c1_848 = arith.constant 1 : index
    %c4_849 = arith.constant 4 : index
    %c0_850 = arith.constant 0 : index
    %1098 = vector.load %arg5[%c0_847, %c1_848, %c4_849, %c0_850] : memref<2x7x22x16xf32, #tpu.memory_space<vmem>>, vector<1x1x16x16xf32>
    %1099 = vector.shape_cast %1098 : vector<1x1x16x16xf32> to vector<16x16xf32>
    %1100 = vector.broadcast %1097 : f32 to vector<16x16xf32>
    %1101 = arith.mulf %1100, %1099 : vector<16x16xf32>
    %1102 = arith.addf %1096, %1101 : vector<16x16xf32>
    %c78_851 = arith.constant 78 : index
    %1103 = memref.load %arg2[%c78_851] : memref<98xf32, #tpu.memory_space<smem>>
    %c1_852 = arith.constant 1 : index
    %c1_853 = arith.constant 1 : index
    %c4_854 = arith.constant 4 : index
    %c0_855 = arith.constant 0 : index
    %1104 = vector.load %arg5[%c1_852, %c1_853, %c4_854, %c0_855] : memref<2x7x22x16xf32, #tpu.memory_space<vmem>>, vector<1x1x16x16xf32>
    %1105 = vector.shape_cast %1104 : vector<1x1x16x16xf32> to vector<16x16xf32>
    %1106 = vector.broadcast %1103 : f32 to vector<16x16xf32>
    %1107 = arith.mulf %1106, %1105 : vector<16x16xf32>
    %1108 = arith.addf %1102, %1107 : vector<16x16xf32>
    %c30_856 = arith.constant 30 : index
    %1109 = memref.load %arg2[%c30_856] : memref<98xf32, #tpu.memory_space<smem>>
    %c0_857 = arith.constant 0 : index
    %c2_858 = arith.constant 2 : index
    %c4_859 = arith.constant 4 : index
    %c0_860 = arith.constant 0 : index
    %1110 = vector.load %arg5[%c0_857, %c2_858, %c4_859, %c0_860] : memref<2x7x22x16xf32, #tpu.memory_space<vmem>>, vector<1x1x16x16xf32>
    %1111 = vector.shape_cast %1110 : vector<1x1x16x16xf32> to vector<16x16xf32>
    %1112 = vector.broadcast %1109 : f32 to vector<16x16xf32>
    %1113 = arith.mulf %1112, %1111 : vector<16x16xf32>
    %1114 = arith.addf %1108, %1113 : vector<16x16xf32>
    %c79_861 = arith.constant 79 : index
    %1115 = memref.load %arg2[%c79_861] : memref<98xf32, #tpu.memory_space<smem>>
    %c1_862 = arith.constant 1 : index
    %c2_863 = arith.constant 2 : index
    %c4_864 = arith.constant 4 : index
    %c0_865 = arith.constant 0 : index
    %1116 = vector.load %arg5[%c1_862, %c2_863, %c4_864, %c0_865] : memref<2x7x22x16xf32, #tpu.memory_space<vmem>>, vector<1x1x16x16xf32>
    %1117 = vector.shape_cast %1116 : vector<1x1x16x16xf32> to vector<16x16xf32>
    %1118 = vector.broadcast %1115 : f32 to vector<16x16xf32>
    %1119 = arith.mulf %1118, %1117 : vector<16x16xf32>
    %1120 = arith.addf %1114, %1119 : vector<16x16xf32>
    %c31_866 = arith.constant 31 : index
    %1121 = memref.load %arg2[%c31_866] : memref<98xf32, #tpu.memory_space<smem>>
    %c0_867 = arith.constant 0 : index
    %c3_868 = arith.constant 3 : index
    %c4_869 = arith.constant 4 : index
    %c0_870 = arith.constant 0 : index
    %1122 = vector.load %arg5[%c0_867, %c3_868, %c4_869, %c0_870] : memref<2x7x22x16xf32, #tpu.memory_space<vmem>>, vector<1x1x16x16xf32>
    %1123 = vector.shape_cast %1122 : vector<1x1x16x16xf32> to vector<16x16xf32>
    %1124 = vector.broadcast %1121 : f32 to vector<16x16xf32>
    %1125 = arith.mulf %1124, %1123 : vector<16x16xf32>
    %1126 = arith.addf %1120, %1125 : vector<16x16xf32>
    %c80_871 = arith.constant 80 : index
    %1127 = memref.load %arg2[%c80_871] : memref<98xf32, #tpu.memory_space<smem>>
    %c1_872 = arith.constant 1 : index
    %c3_873 = arith.constant 3 : index
    %c4_874 = arith.constant 4 : index
    %c0_875 = arith.constant 0 : index
    %1128 = vector.load %arg5[%c1_872, %c3_873, %c4_874, %c0_875] : memref<2x7x22x16xf32, #tpu.memory_space<vmem>>, vector<1x1x16x16xf32>
    %1129 = vector.shape_cast %1128 : vector<1x1x16x16xf32> to vector<16x16xf32>
    %1130 = vector.broadcast %1127 : f32 to vector<16x16xf32>
    %1131 = arith.mulf %1130, %1129 : vector<16x16xf32>
    %1132 = arith.addf %1126, %1131 : vector<16x16xf32>
    %c32_876 = arith.constant 32 : index
    %1133 = memref.load %arg2[%c32_876] : memref<98xf32, #tpu.memory_space<smem>>
    %c0_877 = arith.constant 0 : index
    %c4_878 = arith.constant 4 : index
    %c4_879 = arith.constant 4 : index
    %c0_880 = arith.constant 0 : index
    %1134 = vector.load %arg5[%c0_877, %c4_878, %c4_879, %c0_880] : memref<2x7x22x16xf32, #tpu.memory_space<vmem>>, vector<1x1x16x16xf32>
    %1135 = vector.shape_cast %1134 : vector<1x1x16x16xf32> to vector<16x16xf32>
    %1136 = vector.broadcast %1133 : f32 to vector<16x16xf32>
    %1137 = arith.mulf %1136, %1135 : vector<16x16xf32>
    %1138 = arith.addf %1132, %1137 : vector<16x16xf32>
    %c81_881 = arith.constant 81 : index
    %1139 = memref.load %arg2[%c81_881] : memref<98xf32, #tpu.memory_space<smem>>
    %c1_882 = arith.constant 1 : index
    %c4_883 = arith.constant 4 : index
    %c4_884 = arith.constant 4 : index
    %c0_885 = arith.constant 0 : index
    %1140 = vector.load %arg5[%c1_882, %c4_883, %c4_884, %c0_885] : memref<2x7x22x16xf32, #tpu.memory_space<vmem>>, vector<1x1x16x16xf32>
    %1141 = vector.shape_cast %1140 : vector<1x1x16x16xf32> to vector<16x16xf32>
    %1142 = vector.broadcast %1139 : f32 to vector<16x16xf32>
    %1143 = arith.mulf %1142, %1141 : vector<16x16xf32>
    %1144 = arith.addf %1138, %1143 : vector<16x16xf32>
    %c33_886 = arith.constant 33 : index
    %1145 = memref.load %arg2[%c33_886] : memref<98xf32, #tpu.memory_space<smem>>
    %c0_887 = arith.constant 0 : index
    %c5_888 = arith.constant 5 : index
    %c4_889 = arith.constant 4 : index
    %c0_890 = arith.constant 0 : index
    %1146 = vector.load %arg5[%c0_887, %c5_888, %c4_889, %c0_890] : memref<2x7x22x16xf32, #tpu.memory_space<vmem>>, vector<1x1x16x16xf32>
    %1147 = vector.shape_cast %1146 : vector<1x1x16x16xf32> to vector<16x16xf32>
    %1148 = vector.broadcast %1145 : f32 to vector<16x16xf32>
    %1149 = arith.mulf %1148, %1147 : vector<16x16xf32>
    %1150 = arith.addf %1144, %1149 : vector<16x16xf32>
    %c82_891 = arith.constant 82 : index
    %1151 = memref.load %arg2[%c82_891] : memref<98xf32, #tpu.memory_space<smem>>
    %c1_892 = arith.constant 1 : index
    %c5_893 = arith.constant 5 : index
    %c4_894 = arith.constant 4 : index
    %c0_895 = arith.constant 0 : index
    %1152 = vector.load %arg5[%c1_892, %c5_893, %c4_894, %c0_895] : memref<2x7x22x16xf32, #tpu.memory_space<vmem>>, vector<1x1x16x16xf32>
    %1153 = vector.shape_cast %1152 : vector<1x1x16x16xf32> to vector<16x16xf32>
    %1154 = vector.broadcast %1151 : f32 to vector<16x16xf32>
    %1155 = arith.mulf %1154, %1153 : vector<16x16xf32>
    %1156 = arith.addf %1150, %1155 : vector<16x16xf32>
    %c34_896 = arith.constant 34 : index
    %1157 = memref.load %arg2[%c34_896] : memref<98xf32, #tpu.memory_space<smem>>
    %c0_897 = arith.constant 0 : index
    %c6_898 = arith.constant 6 : index
    %c4_899 = arith.constant 4 : index
    %c0_900 = arith.constant 0 : index
    %1158 = vector.load %arg5[%c0_897, %c6_898, %c4_899, %c0_900] : memref<2x7x22x16xf32, #tpu.memory_space<vmem>>, vector<1x1x16x16xf32>
    %1159 = vector.shape_cast %1158 : vector<1x1x16x16xf32> to vector<16x16xf32>
    %1160 = vector.broadcast %1157 : f32 to vector<16x16xf32>
    %1161 = arith.mulf %1160, %1159 : vector<16x16xf32>
    %1162 = arith.addf %1156, %1161 : vector<16x16xf32>
    %c83_901 = arith.constant 83 : index
    %1163 = memref.load %arg2[%c83_901] : memref<98xf32, #tpu.memory_space<smem>>
    %c1_902 = arith.constant 1 : index
    %c6_903 = arith.constant 6 : index
    %c4_904 = arith.constant 4 : index
    %c0_905 = arith.constant 0 : index
    %1164 = vector.load %arg5[%c1_902, %c6_903, %c4_904, %c0_905] : memref<2x7x22x16xf32, #tpu.memory_space<vmem>>, vector<1x1x16x16xf32>
    %1165 = vector.shape_cast %1164 : vector<1x1x16x16xf32> to vector<16x16xf32>
    %1166 = vector.broadcast %1163 : f32 to vector<16x16xf32>
    %1167 = arith.mulf %1166, %1165 : vector<16x16xf32>
    %1168 = arith.addf %1162, %1167 : vector<16x16xf32>
    %c35_906 = arith.constant 35 : index
    %1169 = memref.load %arg2[%c35_906] : memref<98xf32, #tpu.memory_space<smem>>
    %c0_907 = arith.constant 0 : index
    %c0_908 = arith.constant 0 : index
    %c5_909 = arith.constant 5 : index
    %c0_910 = arith.constant 0 : index
    %1170 = vector.load %arg5[%c0_907, %c0_908, %c5_909, %c0_910] : memref<2x7x22x16xf32, #tpu.memory_space<vmem>>, vector<1x1x16x16xf32>
    %1171 = vector.shape_cast %1170 : vector<1x1x16x16xf32> to vector<16x16xf32>
    %1172 = vector.broadcast %1169 : f32 to vector<16x16xf32>
    %1173 = arith.mulf %1172, %1171 : vector<16x16xf32>
    %1174 = arith.addf %1168, %1173 : vector<16x16xf32>
    %c84_911 = arith.constant 84 : index
    %1175 = memref.load %arg2[%c84_911] : memref<98xf32, #tpu.memory_space<smem>>
    %c1_912 = arith.constant 1 : index
    %c0_913 = arith.constant 0 : index
    %c5_914 = arith.constant 5 : index
    %c0_915 = arith.constant 0 : index
    %1176 = vector.load %arg5[%c1_912, %c0_913, %c5_914, %c0_915] : memref<2x7x22x16xf32, #tpu.memory_space<vmem>>, vector<1x1x16x16xf32>
    %1177 = vector.shape_cast %1176 : vector<1x1x16x16xf32> to vector<16x16xf32>
    %1178 = vector.broadcast %1175 : f32 to vector<16x16xf32>
    %1179 = arith.mulf %1178, %1177 : vector<16x16xf32>
    %1180 = arith.addf %1174, %1179 : vector<16x16xf32>
    %c36_916 = arith.constant 36 : index
    %1181 = memref.load %arg2[%c36_916] : memref<98xf32, #tpu.memory_space<smem>>
    %c0_917 = arith.constant 0 : index
    %c1_918 = arith.constant 1 : index
    %c5_919 = arith.constant 5 : index
    %c0_920 = arith.constant 0 : index
    %1182 = vector.load %arg5[%c0_917, %c1_918, %c5_919, %c0_920] : memref<2x7x22x16xf32, #tpu.memory_space<vmem>>, vector<1x1x16x16xf32>
    %1183 = vector.shape_cast %1182 : vector<1x1x16x16xf32> to vector<16x16xf32>
    %1184 = vector.broadcast %1181 : f32 to vector<16x16xf32>
    %1185 = arith.mulf %1184, %1183 : vector<16x16xf32>
    %1186 = arith.addf %1180, %1185 : vector<16x16xf32>
    %c85_921 = arith.constant 85 : index
    %1187 = memref.load %arg2[%c85_921] : memref<98xf32, #tpu.memory_space<smem>>
    %c1_922 = arith.constant 1 : index
    %c1_923 = arith.constant 1 : index
    %c5_924 = arith.constant 5 : index
    %c0_925 = arith.constant 0 : index
    %1188 = vector.load %arg5[%c1_922, %c1_923, %c5_924, %c0_925] : memref<2x7x22x16xf32, #tpu.memory_space<vmem>>, vector<1x1x16x16xf32>
    %1189 = vector.shape_cast %1188 : vector<1x1x16x16xf32> to vector<16x16xf32>
    %1190 = vector.broadcast %1187 : f32 to vector<16x16xf32>
    %1191 = arith.mulf %1190, %1189 : vector<16x16xf32>
    %1192 = arith.addf %1186, %1191 : vector<16x16xf32>
    %c37_926 = arith.constant 37 : index
    %1193 = memref.load %arg2[%c37_926] : memref<98xf32, #tpu.memory_space<smem>>
    %c0_927 = arith.constant 0 : index
    %c2_928 = arith.constant 2 : index
    %c5_929 = arith.constant 5 : index
    %c0_930 = arith.constant 0 : index
    %1194 = vector.load %arg5[%c0_927, %c2_928, %c5_929, %c0_930] : memref<2x7x22x16xf32, #tpu.memory_space<vmem>>, vector<1x1x16x16xf32>
    %1195 = vector.shape_cast %1194 : vector<1x1x16x16xf32> to vector<16x16xf32>
    %1196 = vector.broadcast %1193 : f32 to vector<16x16xf32>
    %1197 = arith.mulf %1196, %1195 : vector<16x16xf32>
    %1198 = arith.addf %1192, %1197 : vector<16x16xf32>
    %c86_931 = arith.constant 86 : index
    %1199 = memref.load %arg2[%c86_931] : memref<98xf32, #tpu.memory_space<smem>>
    %c1_932 = arith.constant 1 : index
    %c2_933 = arith.constant 2 : index
    %c5_934 = arith.constant 5 : index
    %c0_935 = arith.constant 0 : index
    %1200 = vector.load %arg5[%c1_932, %c2_933, %c5_934, %c0_935] : memref<2x7x22x16xf32, #tpu.memory_space<vmem>>, vector<1x1x16x16xf32>
    %1201 = vector.shape_cast %1200 : vector<1x1x16x16xf32> to vector<16x16xf32>
    %1202 = vector.broadcast %1199 : f32 to vector<16x16xf32>
    %1203 = arith.mulf %1202, %1201 : vector<16x16xf32>
    %1204 = arith.addf %1198, %1203 : vector<16x16xf32>
    %c38_936 = arith.constant 38 : index
    %1205 = memref.load %arg2[%c38_936] : memref<98xf32, #tpu.memory_space<smem>>
    %c0_937 = arith.constant 0 : index
    %c3_938 = arith.constant 3 : index
    %c5_939 = arith.constant 5 : index
    %c0_940 = arith.constant 0 : index
    %1206 = vector.load %arg5[%c0_937, %c3_938, %c5_939, %c0_940] : memref<2x7x22x16xf32, #tpu.memory_space<vmem>>, vector<1x1x16x16xf32>
    %1207 = vector.shape_cast %1206 : vector<1x1x16x16xf32> to vector<16x16xf32>
    %1208 = vector.broadcast %1205 : f32 to vector<16x16xf32>
    %1209 = arith.mulf %1208, %1207 : vector<16x16xf32>
    %1210 = arith.addf %1204, %1209 : vector<16x16xf32>
    %c87_941 = arith.constant 87 : index
    %1211 = memref.load %arg2[%c87_941] : memref<98xf32, #tpu.memory_space<smem>>
    %c1_942 = arith.constant 1 : index
    %c3_943 = arith.constant 3 : index
    %c5_944 = arith.constant 5 : index
    %c0_945 = arith.constant 0 : index
    %1212 = vector.load %arg5[%c1_942, %c3_943, %c5_944, %c0_945] : memref<2x7x22x16xf32, #tpu.memory_space<vmem>>, vector<1x1x16x16xf32>
    %1213 = vector.shape_cast %1212 : vector<1x1x16x16xf32> to vector<16x16xf32>
    %1214 = vector.broadcast %1211 : f32 to vector<16x16xf32>
    %1215 = arith.mulf %1214, %1213 : vector<16x16xf32>
    %1216 = arith.addf %1210, %1215 : vector<16x16xf32>
    %c39_946 = arith.constant 39 : index
    %1217 = memref.load %arg2[%c39_946] : memref<98xf32, #tpu.memory_space<smem>>
    %c0_947 = arith.constant 0 : index
    %c4_948 = arith.constant 4 : index
    %c5_949 = arith.constant 5 : index
    %c0_950 = arith.constant 0 : index
    %1218 = vector.load %arg5[%c0_947, %c4_948, %c5_949, %c0_950] : memref<2x7x22x16xf32, #tpu.memory_space<vmem>>, vector<1x1x16x16xf32>
    %1219 = vector.shape_cast %1218 : vector<1x1x16x16xf32> to vector<16x16xf32>
    %1220 = vector.broadcast %1217 : f32 to vector<16x16xf32>
    %1221 = arith.mulf %1220, %1219 : vector<16x16xf32>
    %1222 = arith.addf %1216, %1221 : vector<16x16xf32>
    %c88_951 = arith.constant 88 : index
    %1223 = memref.load %arg2[%c88_951] : memref<98xf32, #tpu.memory_space<smem>>
    %c1_952 = arith.constant 1 : index
    %c4_953 = arith.constant 4 : index
    %c5_954 = arith.constant 5 : index
    %c0_955 = arith.constant 0 : index
    %1224 = vector.load %arg5[%c1_952, %c4_953, %c5_954, %c0_955] : memref<2x7x22x16xf32, #tpu.memory_space<vmem>>, vector<1x1x16x16xf32>
    %1225 = vector.shape_cast %1224 : vector<1x1x16x16xf32> to vector<16x16xf32>
    %1226 = vector.broadcast %1223 : f32 to vector<16x16xf32>
    %1227 = arith.mulf %1226, %1225 : vector<16x16xf32>
    %1228 = arith.addf %1222, %1227 : vector<16x16xf32>
    %c40_956 = arith.constant 40 : index
    %1229 = memref.load %arg2[%c40_956] : memref<98xf32, #tpu.memory_space<smem>>
    %c0_957 = arith.constant 0 : index
    %c5_958 = arith.constant 5 : index
    %c5_959 = arith.constant 5 : index
    %c0_960 = arith.constant 0 : index
    %1230 = vector.load %arg5[%c0_957, %c5_958, %c5_959, %c0_960] : memref<2x7x22x16xf32, #tpu.memory_space<vmem>>, vector<1x1x16x16xf32>
    %1231 = vector.shape_cast %1230 : vector<1x1x16x16xf32> to vector<16x16xf32>
    %1232 = vector.broadcast %1229 : f32 to vector<16x16xf32>
    %1233 = arith.mulf %1232, %1231 : vector<16x16xf32>
    %1234 = arith.addf %1228, %1233 : vector<16x16xf32>
    %c89_961 = arith.constant 89 : index
    %1235 = memref.load %arg2[%c89_961] : memref<98xf32, #tpu.memory_space<smem>>
    %c1_962 = arith.constant 1 : index
    %c5_963 = arith.constant 5 : index
    %c5_964 = arith.constant 5 : index
    %c0_965 = arith.constant 0 : index
    %1236 = vector.load %arg5[%c1_962, %c5_963, %c5_964, %c0_965] : memref<2x7x22x16xf32, #tpu.memory_space<vmem>>, vector<1x1x16x16xf32>
    %1237 = vector.shape_cast %1236 : vector<1x1x16x16xf32> to vector<16x16xf32>
    %1238 = vector.broadcast %1235 : f32 to vector<16x16xf32>
    %1239 = arith.mulf %1238, %1237 : vector<16x16xf32>
    %1240 = arith.addf %1234, %1239 : vector<16x16xf32>
    %c41_966 = arith.constant 41 : index
    %1241 = memref.load %arg2[%c41_966] : memref<98xf32, #tpu.memory_space<smem>>
    %c0_967 = arith.constant 0 : index
    %c6_968 = arith.constant 6 : index
    %c5_969 = arith.constant 5 : index
    %c0_970 = arith.constant 0 : index
    %1242 = vector.load %arg5[%c0_967, %c6_968, %c5_969, %c0_970] : memref<2x7x22x16xf32, #tpu.memory_space<vmem>>, vector<1x1x16x16xf32>
    %1243 = vector.shape_cast %1242 : vector<1x1x16x16xf32> to vector<16x16xf32>
    %1244 = vector.broadcast %1241 : f32 to vector<16x16xf32>
    %1245 = arith.mulf %1244, %1243 : vector<16x16xf32>
    %1246 = arith.addf %1240, %1245 : vector<16x16xf32>
    %c90_971 = arith.constant 90 : index
    %1247 = memref.load %arg2[%c90_971] : memref<98xf32, #tpu.memory_space<smem>>
    %c1_972 = arith.constant 1 : index
    %c6_973 = arith.constant 6 : index
    %c5_974 = arith.constant 5 : index
    %c0_975 = arith.constant 0 : index
    %1248 = vector.load %arg5[%c1_972, %c6_973, %c5_974, %c0_975] : memref<2x7x22x16xf32, #tpu.memory_space<vmem>>, vector<1x1x16x16xf32>
    %1249 = vector.shape_cast %1248 : vector<1x1x16x16xf32> to vector<16x16xf32>
    %1250 = vector.broadcast %1247 : f32 to vector<16x16xf32>
    %1251 = arith.mulf %1250, %1249 : vector<16x16xf32>
    %1252 = arith.addf %1246, %1251 : vector<16x16xf32>
    %c42_976 = arith.constant 42 : index
    %1253 = memref.load %arg2[%c42_976] : memref<98xf32, #tpu.memory_space<smem>>
    %c0_977 = arith.constant 0 : index
    %c0_978 = arith.constant 0 : index
    %c6_979 = arith.constant 6 : index
    %c0_980 = arith.constant 0 : index
    %1254 = vector.load %arg5[%c0_977, %c0_978, %c6_979, %c0_980] : memref<2x7x22x16xf32, #tpu.memory_space<vmem>>, vector<1x1x16x16xf32>
    %1255 = vector.shape_cast %1254 : vector<1x1x16x16xf32> to vector<16x16xf32>
    %1256 = vector.broadcast %1253 : f32 to vector<16x16xf32>
    %1257 = arith.mulf %1256, %1255 : vector<16x16xf32>
    %1258 = arith.addf %1252, %1257 : vector<16x16xf32>
    %c91_981 = arith.constant 91 : index
    %1259 = memref.load %arg2[%c91_981] : memref<98xf32, #tpu.memory_space<smem>>
    %c1_982 = arith.constant 1 : index
    %c0_983 = arith.constant 0 : index
    %c6_984 = arith.constant 6 : index
    %c0_985 = arith.constant 0 : index
    %1260 = vector.load %arg5[%c1_982, %c0_983, %c6_984, %c0_985] : memref<2x7x22x16xf32, #tpu.memory_space<vmem>>, vector<1x1x16x16xf32>
    %1261 = vector.shape_cast %1260 : vector<1x1x16x16xf32> to vector<16x16xf32>
    %1262 = vector.broadcast %1259 : f32 to vector<16x16xf32>
    %1263 = arith.mulf %1262, %1261 : vector<16x16xf32>
    %1264 = arith.addf %1258, %1263 : vector<16x16xf32>
    %c43_986 = arith.constant 43 : index
    %1265 = memref.load %arg2[%c43_986] : memref<98xf32, #tpu.memory_space<smem>>
    %c0_987 = arith.constant 0 : index
    %c1_988 = arith.constant 1 : index
    %c6_989 = arith.constant 6 : index
    %c0_990 = arith.constant 0 : index
    %1266 = vector.load %arg5[%c0_987, %c1_988, %c6_989, %c0_990] : memref<2x7x22x16xf32, #tpu.memory_space<vmem>>, vector<1x1x16x16xf32>
    %1267 = vector.shape_cast %1266 : vector<1x1x16x16xf32> to vector<16x16xf32>
    %1268 = vector.broadcast %1265 : f32 to vector<16x16xf32>
    %1269 = arith.mulf %1268, %1267 : vector<16x16xf32>
    %1270 = arith.addf %1264, %1269 : vector<16x16xf32>
    %c92_991 = arith.constant 92 : index
    %1271 = memref.load %arg2[%c92_991] : memref<98xf32, #tpu.memory_space<smem>>
    %c1_992 = arith.constant 1 : index
    %c1_993 = arith.constant 1 : index
    %c6_994 = arith.constant 6 : index
    %c0_995 = arith.constant 0 : index
    %1272 = vector.load %arg5[%c1_992, %c1_993, %c6_994, %c0_995] : memref<2x7x22x16xf32, #tpu.memory_space<vmem>>, vector<1x1x16x16xf32>
    %1273 = vector.shape_cast %1272 : vector<1x1x16x16xf32> to vector<16x16xf32>
    %1274 = vector.broadcast %1271 : f32 to vector<16x16xf32>
    %1275 = arith.mulf %1274, %1273 : vector<16x16xf32>
    %1276 = arith.addf %1270, %1275 : vector<16x16xf32>
    %c44_996 = arith.constant 44 : index
    %1277 = memref.load %arg2[%c44_996] : memref<98xf32, #tpu.memory_space<smem>>
    %c0_997 = arith.constant 0 : index
    %c2_998 = arith.constant 2 : index
    %c6_999 = arith.constant 6 : index
    %c0_1000 = arith.constant 0 : index
    %1278 = vector.load %arg5[%c0_997, %c2_998, %c6_999, %c0_1000] : memref<2x7x22x16xf32, #tpu.memory_space<vmem>>, vector<1x1x16x16xf32>
    %1279 = vector.shape_cast %1278 : vector<1x1x16x16xf32> to vector<16x16xf32>
    %1280 = vector.broadcast %1277 : f32 to vector<16x16xf32>
    %1281 = arith.mulf %1280, %1279 : vector<16x16xf32>
    %1282 = arith.addf %1276, %1281 : vector<16x16xf32>
    %c93_1001 = arith.constant 93 : index
    %1283 = memref.load %arg2[%c93_1001] : memref<98xf32, #tpu.memory_space<smem>>
    %c1_1002 = arith.constant 1 : index
    %c2_1003 = arith.constant 2 : index
    %c6_1004 = arith.constant 6 : index
    %c0_1005 = arith.constant 0 : index
    %1284 = vector.load %arg5[%c1_1002, %c2_1003, %c6_1004, %c0_1005] : memref<2x7x22x16xf32, #tpu.memory_space<vmem>>, vector<1x1x16x16xf32>
    %1285 = vector.shape_cast %1284 : vector<1x1x16x16xf32> to vector<16x16xf32>
    %1286 = vector.broadcast %1283 : f32 to vector<16x16xf32>
    %1287 = arith.mulf %1286, %1285 : vector<16x16xf32>
    %1288 = arith.addf %1282, %1287 : vector<16x16xf32>
    %c45_1006 = arith.constant 45 : index
    %1289 = memref.load %arg2[%c45_1006] : memref<98xf32, #tpu.memory_space<smem>>
    %c0_1007 = arith.constant 0 : index
    %c3_1008 = arith.constant 3 : index
    %c6_1009 = arith.constant 6 : index
    %c0_1010 = arith.constant 0 : index
    %1290 = vector.load %arg5[%c0_1007, %c3_1008, %c6_1009, %c0_1010] : memref<2x7x22x16xf32, #tpu.memory_space<vmem>>, vector<1x1x16x16xf32>
    %1291 = vector.shape_cast %1290 : vector<1x1x16x16xf32> to vector<16x16xf32>
    %1292 = vector.broadcast %1289 : f32 to vector<16x16xf32>
    %1293 = arith.mulf %1292, %1291 : vector<16x16xf32>
    %1294 = arith.addf %1288, %1293 : vector<16x16xf32>
    %c94_1011 = arith.constant 94 : index
    %1295 = memref.load %arg2[%c94_1011] : memref<98xf32, #tpu.memory_space<smem>>
    %c1_1012 = arith.constant 1 : index
    %c3_1013 = arith.constant 3 : index
    %c6_1014 = arith.constant 6 : index
    %c0_1015 = arith.constant 0 : index
    %1296 = vector.load %arg5[%c1_1012, %c3_1013, %c6_1014, %c0_1015] : memref<2x7x22x16xf32, #tpu.memory_space<vmem>>, vector<1x1x16x16xf32>
    %1297 = vector.shape_cast %1296 : vector<1x1x16x16xf32> to vector<16x16xf32>
    %1298 = vector.broadcast %1295 : f32 to vector<16x16xf32>
    %1299 = arith.mulf %1298, %1297 : vector<16x16xf32>
    %1300 = arith.addf %1294, %1299 : vector<16x16xf32>
    %c46_1016 = arith.constant 46 : index
    %1301 = memref.load %arg2[%c46_1016] : memref<98xf32, #tpu.memory_space<smem>>
    %c0_1017 = arith.constant 0 : index
    %c4_1018 = arith.constant 4 : index
    %c6_1019 = arith.constant 6 : index
    %c0_1020 = arith.constant 0 : index
    %1302 = vector.load %arg5[%c0_1017, %c4_1018, %c6_1019, %c0_1020] : memref<2x7x22x16xf32, #tpu.memory_space<vmem>>, vector<1x1x16x16xf32>
    %1303 = vector.shape_cast %1302 : vector<1x1x16x16xf32> to vector<16x16xf32>
    %1304 = vector.broadcast %1301 : f32 to vector<16x16xf32>
    %1305 = arith.mulf %1304, %1303 : vector<16x16xf32>
    %1306 = arith.addf %1300, %1305 : vector<16x16xf32>
    %c95_1021 = arith.constant 95 : index
    %1307 = memref.load %arg2[%c95_1021] : memref<98xf32, #tpu.memory_space<smem>>
    %c1_1022 = arith.constant 1 : index
    %c4_1023 = arith.constant 4 : index
    %c6_1024 = arith.constant 6 : index
    %c0_1025 = arith.constant 0 : index
    %1308 = vector.load %arg5[%c1_1022, %c4_1023, %c6_1024, %c0_1025] : memref<2x7x22x16xf32, #tpu.memory_space<vmem>>, vector<1x1x16x16xf32>
    %1309 = vector.shape_cast %1308 : vector<1x1x16x16xf32> to vector<16x16xf32>
    %1310 = vector.broadcast %1307 : f32 to vector<16x16xf32>
    %1311 = arith.mulf %1310, %1309 : vector<16x16xf32>
    %1312 = arith.addf %1306, %1311 : vector<16x16xf32>
    %c47_1026 = arith.constant 47 : index
    %1313 = memref.load %arg2[%c47_1026] : memref<98xf32, #tpu.memory_space<smem>>
    %c0_1027 = arith.constant 0 : index
    %c5_1028 = arith.constant 5 : index
    %c6_1029 = arith.constant 6 : index
    %c0_1030 = arith.constant 0 : index
    %1314 = vector.load %arg5[%c0_1027, %c5_1028, %c6_1029, %c0_1030] : memref<2x7x22x16xf32, #tpu.memory_space<vmem>>, vector<1x1x16x16xf32>
    %1315 = vector.shape_cast %1314 : vector<1x1x16x16xf32> to vector<16x16xf32>
    %1316 = vector.broadcast %1313 : f32 to vector<16x16xf32>
    %1317 = arith.mulf %1316, %1315 : vector<16x16xf32>
    %1318 = arith.addf %1312, %1317 : vector<16x16xf32>
    %c96_1031 = arith.constant 96 : index
    %1319 = memref.load %arg2[%c96_1031] : memref<98xf32, #tpu.memory_space<smem>>
    %c1_1032 = arith.constant 1 : index
    %c5_1033 = arith.constant 5 : index
    %c6_1034 = arith.constant 6 : index
    %c0_1035 = arith.constant 0 : index
    %1320 = vector.load %arg5[%c1_1032, %c5_1033, %c6_1034, %c0_1035] : memref<2x7x22x16xf32, #tpu.memory_space<vmem>>, vector<1x1x16x16xf32>
    %1321 = vector.shape_cast %1320 : vector<1x1x16x16xf32> to vector<16x16xf32>
    %1322 = vector.broadcast %1319 : f32 to vector<16x16xf32>
    %1323 = arith.mulf %1322, %1321 : vector<16x16xf32>
    %1324 = arith.addf %1318, %1323 : vector<16x16xf32>
    %c48_1036 = arith.constant 48 : index
    %1325 = memref.load %arg2[%c48_1036] : memref<98xf32, #tpu.memory_space<smem>>
    %c0_1037 = arith.constant 0 : index
    %c6_1038 = arith.constant 6 : index
    %c6_1039 = arith.constant 6 : index
    %c0_1040 = arith.constant 0 : index
    %1326 = vector.load %arg5[%c0_1037, %c6_1038, %c6_1039, %c0_1040] : memref<2x7x22x16xf32, #tpu.memory_space<vmem>>, vector<1x1x16x16xf32>
    %1327 = vector.shape_cast %1326 : vector<1x1x16x16xf32> to vector<16x16xf32>
    %1328 = vector.broadcast %1325 : f32 to vector<16x16xf32>
    %1329 = arith.mulf %1328, %1327 : vector<16x16xf32>
    %1330 = arith.addf %1324, %1329 : vector<16x16xf32>
    %c97_1041 = arith.constant 97 : index
    %1331 = memref.load %arg2[%c97_1041] : memref<98xf32, #tpu.memory_space<smem>>
    %c1_1042 = arith.constant 1 : index
    %c6_1043 = arith.constant 6 : index
    %c6_1044 = arith.constant 6 : index
    %c0_1045 = arith.constant 0 : index
    %1332 = vector.load %arg5[%c1_1042, %c6_1043, %c6_1044, %c0_1045] : memref<2x7x22x16xf32, #tpu.memory_space<vmem>>, vector<1x1x16x16xf32>
    %1333 = vector.shape_cast %1332 : vector<1x1x16x16xf32> to vector<16x16xf32>
    %1334 = vector.broadcast %1331 : f32 to vector<16x16xf32>
    %1335 = arith.mulf %1334, %1333 : vector<16x16xf32>
    %1336 = arith.addf %1330, %1335 : vector<16x16xf32>
    %1337 = arith.negf %1336 : vector<16x16xf32>
    %1338 = math.exp %1337 : vector<16x16xf32>
    %cst_1046 = arith.constant 1.000000e+00 : f32
    %1339 = vector.broadcast %cst_1046 : f32 to vector<16x16xf32>
    %1340 = arith.addf %1339, %1338 : vector<16x16xf32>
    %1341 = arith.divf %1339, %1340 : vector<16x16xf32>
    %c1_1047 = arith.constant 1 : index
    %c0_1048 = arith.constant 0 : index
    %c0_1049 = arith.constant 0 : index
    %c0_1050 = arith.constant 0 : index
    %1342 = vector.load %arg1[%c1_1047, %c0_1048, %c0_1049, %c0_1050] : memref<2x4x16x16xf32, #tpu.memory_space<vmem>>, vector<1x4x16x16xf32>
    %1343 = vector.shape_cast %1342 : vector<1x4x16x16xf32> to vector<4x16x16xf32>
    %1344 = vector.shape_cast %1341 : vector<16x16xf32> to vector<1x16x16xf32>
    %1345 = vector.broadcast %1344 : vector<1x16x16xf32> to vector<4x16x16xf32>
    %1346 = arith.mulf %1343, %1345 : vector<4x16x16xf32>
    %c1_1051 = arith.constant 1 : index
    %c0_1052 = arith.constant 0 : index
    %c0_1053 = arith.constant 0 : index
    %c0_1054 = arith.constant 0 : index
    %1347 = vector.load %arg3[%c1_1051, %c0_1052, %c0_1053, %c0_1054] : memref<2x4x16x16xf32, #tpu.memory_space<vmem>>, vector<1x4x16x16xf32>
    %1348 = vector.shape_cast %1347 : vector<1x4x16x16xf32> to vector<4x16x16xf32>
    %1349 = vector.shape_cast %1346 : vector<4x16x16xf32> to vector<1x4x16x16xf32>
    tpu.vector_store %arg3[%c1_1051, %c0_1052, %c0_1053, %c0_1054], %1349 {strides = array<i32>} : memref<2x4x16x16xf32, #tpu.memory_space<vmem>>, vector<1x4x16x16xf32>,
    return
  }
  func.func @transform_0(%arg0: i32) -> (i32, i32, i32, i32) {
    %c0_i32 = arith.constant 0 : i32
    %c0_i32_0 = arith.constant 0 : i32
    %c0_i32_1 = arith.constant 0 : i32
    %c0_i32_2 = arith.constant 0 : i32
    return %arg0, %c0_i32, %c0_i32_0, %c0_i32_1 : i32, i32, i32, i32
  }
  func.func @transform_1(%arg0: i32) -> i32 {
    %c0_i32 = arith.constant 0 : i32
    %c0_i32_0 = arith.constant 0 : i32
    return %c0_i32 : i32
  }
  func.func @transform_2(%arg0: i32) -> (i32, i32, i32, i32) {
    %c0_i32 = arith.constant 0 : i32
    %c0_i32_0 = arith.constant 0 : i32
    %c0_i32_1 = arith.constant 0 : i32
    %c0_i32_2 = arith.constant 0 : i32
    return %arg0, %c0_i32, %c0_i32_0, %c0_i32_1 : i32, i32, i32, i32
  }
}

</mosaic_0001>

<llo_original>
// kernel: tpu_custom_call.1
$region0: #{tpu_custom_call.1}
  #allocation0 [shape = 'u32[]', space=smem, size = 0x4, offset = 0x4, fixed_abs, tag = 'smem constant byte address 0x4 - core index']
  #allocation1 [shape = 'u32[144,128]{1,0:T(1,128)}', space=vmem, size = 0x12000, scoped, tag = 'internal scratch']
  #allocation2 [shape = 'f32[2,22,22]{2,1,0:T(8,128)}', space=vmem, size = 0x6000, scoped, tag = 'scratch operand']
  #allocation3 [shape = 'f32[2,7,22,16]{3,2,1,0:T(8,128)}', space=vmem, size = 0x2a000, scoped, tag = 'scratch operand']
  %s0 = inlined_call_operand.hbm [shape: f32[2,4,16,16], index: 0, kind: input, shape index: {}]
  %s1 = inlined_call_operand.vmem [shape: f32[98], index: 1, kind: input, shape index: {}]
  %s2 = inlined_call_operand.hbm [shape: f32[2,4,16,16], index: 2, kind: output, shape index: {}]
  %s3 = sld [smem:[#allocation0]]
  $region26: #{tpu_custom_call.1} parent=0
    _
  %s5 = ssub.s32 1, %s3
  %s6 = scalar_select 0, %s5, %s3
  $region1: #{tpu_custom_call.1} parent=0
    #allocation4 [shape = 'u8[65536]{0}', space=vmem, size = 0x10000, scoped, tag = 'input window, operand 0, single buffered']
    #allocation5 [shape = 's32[1]{0}', space=sflag, size = 0x4, scoped, tag = 'scoped memory for tpu_custom_call.1']
    #allocation6 [shape = 's32[1]{0}', space=sflag, size = 0x4, scoped, tag = 'scoped memory for tpu_custom_call.1']
    #allocation7 [shape = 's32[1]{0}', space=sflag, size = 0x4, scoped, tag = 'scoped memory for tpu_custom_call.1']
    #allocation8 [shape = 'u8[512]{0}', space=smem, size = 0x200, scoped, tag = 'input window, operand 1, single buffered']
    #allocation9 [shape = 'u8[65536]{0}', space=vmem, size = 0x10000, scoped, tag = 'output window, operand 0, single buffered']
    %7 = vsyncpa [#allocation5], 0
    %8 = vsyncpa [#allocation7], 0
    %9 = vsyncpa [#allocation6], 0
    // Predicated region
    $region2: #{tpu_custom_call.1} parent=1 // pred_check
      _
    $region3: #{tpu_custom_call.1} parent=1 // pred_check_branch
      %11 = sbr.rel (0) target = $region5
    $region4: #{tpu_custom_call.1} parent=1 // pred_region
      %s13 = ssub.s32 2048, 2048
      %14 = vsyncadd [#allocation5], %s13
      %s15 = sshll.u32 [#allocation4], 4
      %s16 = int_to_ptr.vmem [resolvable:$true] %s15
      %21 = dma.hbm_to_vmem [thread:$0]  %s0, 2048, %s16, [#allocation5], 128, 128, 8
    $region5: #{tpu_custom_call.1} parent=1 // pred_fallthru
      _
    // Predicated region
    $region6: #{tpu_custom_call.1} parent=1 // pred_check
      _
    $region7: #{tpu_custom_call.1} parent=1 // pred_check_branch
      %23 = sbr.rel (0) target = $region9
    $region8: #{tpu_custom_call.1} parent=1 // pred_region
      %s25 = ssub.s32 16, 16
      %26 = vsyncadd [#allocation7], %s25
      %s28 = sshll.u32 %s1, 4
      %s29 = int_to_ptr.vmem [resolvable:$true] %s28
      %31 = dma.vmem_to_smem %s29, 16, [#allocation8], [#allocation7]
    $region9: #{tpu_custom_call.1} parent=1 // pred_fallthru
      _
    // Predicated region
    $region10: #{tpu_custom_call.1} parent=1 // pred_check
      _
    $region11: #{tpu_custom_call.1} parent=1 // pred_check_branch
      %33 = sbr.rel (0) target = $region13
    $region12: #{tpu_custom_call.1} parent=1 // pred_region
      %34 = dma.done [#allocation5], 2048
    $region13: #{tpu_custom_call.1} parent=1 // pred_fallthru
      _
    // Predicated region
    $region14: #{tpu_custom_call.1} parent=1 // pred_check
      _
    $region15: #{tpu_custom_call.1} parent=1 // pred_check_branch
      %36 = sbr.rel (0) target = $region17
    $region16: #{tpu_custom_call.1} parent=1 // pred_region
      %37 = dma.done [#allocation7], 16
    $region17: #{tpu_custom_call.1} parent=1 // pred_fallthru
      _
    %38 = sfence
    %vm39 = vcmask 179200
    %40 = vst.msk [vmem:[#allocation2] sm:$0xff] %vm39, 0.0
    %41 = vst.msk [vmem:[#allocation2 + $0x8] sm:$0xff] %vm39, 0.0
    %vm42 = vcmask 177152
    %43 = vst.msk [vmem:[#allocation2 + $0x10] sm:$0x3f] %vm42, 0.0
    %44 = vst.msk [vmem:[#allocation2 + $0x18] sm:$0xff] %vm39, 0.0
    %45 = vst.msk [vmem:[#allocation2 + $0x20] sm:$0xff] %vm39, 0.0
    %46 = vst.msk [vmem:[#allocation2 + $0x28] sm:$0x3f] %vm42, 0.0
    %v47 = vld [vmem:[#allocation4] sm:$0xff]
    %v48 = vld [vmem:[#allocation4 + $0x8] sm:$0xff]
    %v49 = vld [vmem:[#allocation4 + $0x10] sm:$0xff]
    %v50 = vld [vmem:[#allocation4 + $0x18] sm:$0xff]
    %v51 = vld [vmem:[#allocation4 + $0x20] sm:$0xff]
    %v52 = vld [vmem:[#allocation4 + $0x28] sm:$0xff]
    %v53 = vld [vmem:[#allocation4 + $0x30] sm:$0xff]
    %v54 = vld [vmem:[#allocation4 + $0x38] sm:$0xff]
    %vm55 = vcmask 130048
    %v56 = vsel %vm55, %v47, -inf
    %v57 = vsel %vm55, %v49, -inf
    %v58 = vsel %vm55, %v51, -inf
    %v59 = vmax.f32 %v56, %v58
    %v60 = vsel %vm55, %v53, -inf
    %v61 = vmax.f32 %v57, %v60
    %v62 = vmax.f32 %v59, %v61
    %v63 = vsel %vm55, %v48, -inf
    %v64 = vsel %vm55, %v50, -inf
    %v65 = vsel %vm55, %v52, -inf
    %v66 = vmax.f32 %v63, %v65
    %v67 = vsel %vm55, %v54, -inf
    %v68 = vmax.f32 %v64, %v67
    %v69 = vmax.f32 %v66, %v68
    %v70 = vsel %vm55, %v47, 0.0
    %v71 = vsel %vm55, %v49, 0.0
    %v72 = vadd.f32 %v70, %v71
    %v73 = vsel %vm55, %v51, 0.0
    %v74 = vadd.f32 %v72, %v73
    %v75 = vsel %vm55, %v53, 0.0
    %v76 = vadd.f32 %v74, %v75
    %v77 = vsel %vm55, %v48, 0.0
    %v78 = vsel %vm55, %v50, 0.0
    %v79 = vadd.f32 %v77, %v78
    %v80 = vsel %vm55, %v52, 0.0
    %v81 = vadd.f32 %v79, %v80
    %v82 = vsel %vm55, %v54, 0.0
    %v83 = vadd.f32 %v81, %v82
    %v84 = vmul.f32 %v76, 0.25
    %v85 = vmul.f32 %v83, 0.25
    %88 = vrot.lane.b32.xlu0 %v62, 3
    %v89 = vpop.permute.xlu0 %88
    %90 = vrot.lane.b32.xlu0 %v69, 3
    %v91 = vpop.permute.xlu0 %90
    %vm94 = vcmask 154648
    %95 = vst.msk [vmem:[#allocation2 + $0x3] sm:$0xff] %vm94, %v89
    %96 = vst.msk [vmem:[#allocation2 + $0xb] sm:$0xff] %vm94, %v91
    %99 = vrot.lane.b32.xlu0 %v84, 3
    %v100 = vpop.permute.xlu0 %99
    %101 = vrot.lane.b32.xlu0 %v85, 3
    %v102 = vpop.permute.xlu0 %101
    %s105 = scalar_lea.vmem [#allocation2], 24
    %106 = vst.msk [vmem:[%s105 + $0x3] sm:$0xff] %vm94, %v100
    %107 = vst.msk [vmem:[%s105 + $0xb] sm:$0xff] %vm94, %v102
    %v108 = vld [vmem:[#allocation2] sm:$0xff]
    %v109 = vld [vmem:[#allocation2 + $0x8] sm:$0xff]
    %v110 = vld [vmem:[#allocation2 + $0x10] sm:$0x3f]
    %111 = vst.msk [vmem:[#allocation3] sm:$0xff] %vm55, %v108
    %112 = vst.msk [vmem:[#allocation3 + $0x8] sm:$0xff] %vm55, %v109
    %vm113 = vcmask 128000
    %114 = vst.msk [vmem:[#allocation3 + $0x10] sm:$0x3f] %vm113, %v110
    %118 = vrot.lane.b32.xlu0 %v108, 127
    %v119 = vpop.permute.xlu0 %118
    %120 = vrot.lane.b32.xlu0 %v109, 127
    %v121 = vpop.permute.xlu0 %120
    %122 = vrot.lane.b32.xlu0 %v110, 127
    %v123 = vpop.permute.xlu0 %122
    %s127 = scalar_lea.vmem [#allocation3], 24
    %128 = vst.msk [vmem:[%s127] sm:$0xff] %vm55, %v119
    %129 = vst.msk [vmem:[%s127 + $0x8] sm:$0xff] %vm55, %v121
    %130 = vst.msk [vmem:[%s127 + $0x10] sm:$0x3f] %vm113, %v123
    %131 = vrot.lane.b32.xlu0 %v108, 126
    %v132 = vpop.permute.xlu0 %131
    %133 = vrot.lane.b32.xlu0 %v109, 126
    %v134 = vpop.permute.xlu0 %133
    %135 = vrot.lane.b32.xlu0 %v110, 126
    %v136 = vpop.permute.xlu0 %135
    %s140 = scalar_lea.vmem [#allocation3], 48
    %141 = vst.msk [vmem:[%s140] sm:$0xff] %vm55, %v132
    %142 = vst.msk [vmem:[%s140 + $0x8] sm:$0xff] %vm55, %v134
    %143 = vst.msk [vmem:[%s140 + $0x10] sm:$0x3f] %vm113, %v136
    %144 = vrot.lane.b32.xlu0 %v108, 125
    %v145 = vpop.permute.xlu0 %144
    %146 = vrot.lane.b32.xlu0 %v109, 125
    %v147 = vpop.permute.xlu0 %146
    %148 = vrot.lane.b32.xlu0 %v110, 125
    %v149 = vpop.permute.xlu0 %148
    %s153 = scalar_lea.vmem [#allocation3], 72
    %154 = vst.msk [vmem:[%s153] sm:$0xff] %vm55, %v145
    %155 = vst.msk [vmem:[%s153 + $0x8] sm:$0xff] %vm55, %v147
    %156 = vst.msk [vmem:[%s153 + $0x10] sm:$0x3f] %vm113, %v149
    %157 = vrot.lane.b32.xlu0 %v108, 124
    %v158 = vpop.permute.xlu0 %157
    %159 = vrot.lane.b32.xlu0 %v109, 124
    %v160 = vpop.permute.xlu0 %159
    %161 = vrot.lane.b32.xlu0 %v110, 124
    %v162 = vpop.permute.xlu0 %161
    %s166 = scalar_lea.vmem [#allocation3], 96
    %167 = vst.msk [vmem:[%s166] sm:$0xff] %vm55, %v158
    %168 = vst.msk [vmem:[%s166 + $0x8] sm:$0xff] %vm55, %v160
    %169 = vst.msk [vmem:[%s166 + $0x10] sm:$0x3f] %vm113, %v162
    %170 = vrot.lane.b32.xlu0 %v108, 123
    %v171 = vpop.permute.xlu0 %170
    %172 = vrot.lane.b32.xlu0 %v109, 123
    %v173 = vpop.permute.xlu0 %172
    %174 = vrot.lane.b32.xlu0 %v110, 123
    %v175 = vpop.permute.xlu0 %174
    %s179 = scalar_lea.vmem [#allocation3], 120
    %180 = vst.msk [vmem:[%s179] sm:$0xff] %vm55, %v171
    %181 = vst.msk [vmem:[%s179 + $0x8] sm:$0xff] %vm55, %v173
    %182 = vst.msk [vmem:[%s179 + $0x10] sm:$0x3f] %vm113, %v175
    %183 = vrot.lane.b32.xlu0 %v108, 122
    %v184 = vpop.permute.xlu0 %183
    %185 = vrot.lane.b32.xlu0 %v109, 122
    %v186 = vpop.permute.xlu0 %185
    %187 = vrot.lane.b32.xlu0 %v110, 122
    %v188 = vpop.permute.xlu0 %187
    %s192 = scalar_lea.vmem [#allocation3], 144
    %193 = vst.msk [vmem:[%s192] sm:$0xff] %vm55, %v184
    %194 = vst.msk [vmem:[%s192 + $0x8] sm:$0xff] %vm55, %v186
    %195 = vst.msk [vmem:[%s192 + $0x10] sm:$0x3f] %vm113, %v188
    %v196 = vld [vmem:[%s105] sm:$0xff]
    %v197 = vld [vmem:[%s105 + $0x8] sm:$0xff]
    %v198 = vld [vmem:[%s105 + $0x10] sm:$0x3f]
    %s199 = scalar_lea.vmem [#allocation3], 168
    %200 = vst.msk [vmem:[%s199] sm:$0xff] %vm55, %v196
    %201 = vst.msk [vmem:[%s199 + $0x8] sm:$0xff] %vm55, %v197
    %202 = vst.msk [vmem:[%s199 + $0x10] sm:$0x3f] %vm113, %v198
    %206 = vrot.lane.b32.xlu0 %v196, 127
    %v207 = vpop.permute.xlu0 %206
    %208 = vrot.lane.b32.xlu0 %v197, 127
    %v209 = vpop.permute.xlu0 %208
    %210 = vrot.lane.b32.xlu0 %v198, 127
    %v211 = vpop.permute.xlu0 %210
    %s215 = scalar_lea.vmem [#allocation3], 192
    %216 = vst.msk [vmem:[%s215] sm:$0xff] %vm55, %v207
    %217 = vst.msk [vmem:[%s215 + $0x8] sm:$0xff] %vm55, %v209
    %218 = vst.msk [vmem:[%s215 + $0x10] sm:$0x3f] %vm113, %v211
    %219 = vrot.lane.b32.xlu0 %v196, 126
    %v220 = vpop.permute.xlu0 %219
    %221 = vrot.lane.b32.xlu0 %v197, 126
    %v222 = vpop.permute.xlu0 %221
    %223 = vrot.lane.b32.xlu0 %v198, 126
    %v224 = vpop.permute.xlu0 %223
    %s228 = scalar_lea.vmem [#allocation3], 216
    %229 = vst.msk [vmem:[%s228] sm:$0xff] %vm55, %v220
    %230 = vst.msk [vmem:[%s228 + $0x8] sm:$0xff] %vm55, %v222
    %231 = vst.msk [vmem:[%s228 + $0x10] sm:$0x3f] %vm113, %v224
    %232 = vrot.lane.b32.xlu0 %v196, 125
    %v233 = vpop.permute.xlu0 %232
    %234 = vrot.lane.b32.xlu0 %v197, 125
    %v235 = vpop.permute.xlu0 %234
    %236 = vrot.lane.b32.xlu0 %v198, 125
    %v237 = vpop.permute.xlu0 %236
    %s241 = scalar_lea.vmem [#allocation3], 240
    %242 = vst.msk [vmem:[%s241] sm:$0xff] %vm55, %v233
    %243 = vst.msk [vmem:[%s241 + $0x8] sm:$0xff] %vm55, %v235
    %244 = vst.msk [vmem:[%s241 + $0x10] sm:$0x3f] %vm113, %v237
    %245 = vrot.lane.b32.xlu0 %v196, 124
    %v246 = vpop.permute.xlu0 %245
    %247 = vrot.lane.b32.xlu0 %v197, 124
    %v248 = vpop.permute.xlu0 %247
    %249 = vrot.lane.b32.xlu0 %v198, 124
    %v250 = vpop.permute.xlu0 %249
    %s254 = scalar_lea.vmem [#allocation3], 264
    %255 = vst.msk [vmem:[%s254] sm:$0xff] %vm55, %v246
    %256 = vst.msk [vmem:[%s254 + $0x8] sm:$0xff] %vm55, %v248
    %257 = vst.msk [vmem:[%s254 + $0x10] sm:$0x3f] %vm113, %v250
    %258 = vrot.lane.b32.xlu0 %v196, 123
    %v259 = vpop.permute.xlu0 %258
    %260 = vrot.lane.b32.xlu0 %v197, 123
    %v261 = vpop.permute.xlu0 %260
    %262 = vrot.lane.b32.xlu0 %v198, 123
    %v263 = vpop.permute.xlu0 %262
    %s267 = scalar_lea.vmem [#allocation3], 288
    %268 = vst.msk [vmem:[%s267] sm:$0xff] %vm55, %v259
    %269 = vst.msk [vmem:[%s267 + $0x8] sm:$0xff] %vm55, %v261
    %270 = vst.msk [vmem:[%s267 + $0x10] sm:$0x3f] %vm113, %v263
    %271 = vrot.lane.b32.xlu0 %v196, 122
    %v272 = vpop.permute.xlu0 %271
    %273 = vrot.lane.b32.xlu0 %v197, 122
    %v274 = vpop.permute.xlu0 %273
    %275 = vrot.lane.b32.xlu0 %v198, 122
    %v276 = vpop.permute.xlu0 %275
    %s280 = scalar_lea.vmem [#allocation3], 312
    %281 = vst.msk [vmem:[%s280] sm:$0xff] %vm55, %v272
    %282 = vst.msk [vmem:[%s280 + $0x8] sm:$0xff] %vm55, %v274
    %283 = vst.msk [vmem:[%s280 + $0x10] sm:$0x3f] %vm113, %v276
    %s284 = sld [smem:[#allocation8]]
    %v285 = vld [vmem:[#allocation3] sm:$0xff]
    %v286 = vld [vmem:[#allocation3 + $0x8] sm:$0xff]
    %v287 = vstv %s284
    %v288 = vmul.f32 %v287, %v285
    %v289 = vmul.f32 %v287, %v286
    %v290 = vadd.f32 %v288, 0.0
    %v291 = vadd.f32 %v289, 0.0
    %s292 = sld [smem:[#allocation8 + $0x31]]
    %v293 = vld [vmem:[%s199] sm:$0xff]
    %v294 = vld [vmem:[%s199 + $0x8] sm:$0xff]
    %v295 = vstv %s292
    %v296 = vmul.f32 %v295, %v293
    %v297 = vmul.f32 %v295, %v294
    %v298 = vadd.f32 %v290, %v296
    %v299 = vadd.f32 %v291, %v297
    %s300 = sld [smem:[#allocation8 + $0x1]]
    %v301 = vld [vmem:[%s127] sm:$0xff]
    %v302 = vld [vmem:[%s127 + $0x8] sm:$0xff]
    %v303 = vstv %s300
    %v304 = vmul.f32 %v303, %v301
    %v305 = vmul.f32 %v303, %v302
    %v306 = vadd.f32 %v298, %v304
    %v307 = vadd.f32 %v299, %v305
    %s308 = sld [smem:[#allocation8 + $0x32]]
    %v309 = vld [vmem:[%s215] sm:$0xff]
    %v310 = vld [vmem:[%s215 + $0x8] sm:$0xff]
    %v311 = vstv %s308
    %v312 = vmul.f32 %v311, %v309
    %v313 = vmul.f32 %v311, %v310
    %v314 = vadd.f32 %v306, %v312
    %v315 = vadd.f32 %v307, %v313
    %s316 = sld [smem:[#allocation8 + $0x2]]
    %v317 = vld [vmem:[%s140] sm:$0xff]
    %v318 = vld [vmem:[%s140 + $0x8] sm:$0xff]
    %v319 = vstv %s316
    %v320 = vmul.f32 %v319, %v317
    %v321 = vmul.f32 %v319, %v318
    %v322 = vadd.f32 %v314, %v320
    %v323 = vadd.f32 %v315, %v321
    %s324 = sld [smem:[#allocation8 + $0x33]]
    %v325 = vld [vmem:[%s228] sm:$0xff]
    %v326 = vld [vmem:[%s228 + $0x8] sm:$0xff]
    %v327 = vstv %s324
    %v328 = vmul.f32 %v327, %v325
    %v329 = vmul.f32 %v327, %v326
    %v330 = vadd.f32 %v322, %v328
    %v331 = vadd.f32 %v323, %v329
    %s332 = sld [smem:[#allocation8 + $0x3]]
    %v333 = vld [vmem:[%s153] sm:$0xff]
    %v334 = vld [vmem:[%s153 + $0x8] sm:$0xff]
    %v335 = vstv %s332
    %v336 = vmul.f32 %v335, %v333
    %v337 = vmul.f32 %v335, %v334
    %v338 = vadd.f32 %v330, %v336
    %v339 = vadd.f32 %v331, %v337
    %s340 = sld [smem:[#allocation8 + $0x34]]
    %v341 = vld [vmem:[%s241] sm:$0xff]
    %v342 = vld [vmem:[%s241 + $0x8] sm:$0xff]
    %v343 = vstv %s340
    %v344 = vmul.f32 %v343, %v341
    %v345 = vmul.f32 %v343, %v342
    %v346 = vadd.f32 %v338, %v344
    %v347 = vadd.f32 %v339, %v345
    %s348 = sld [smem:[#allocation8 + $0x4]]
    %v349 = vld [vmem:[%s166] sm:$0xff]
    %v350 = vld [vmem:[%s166 + $0x8] sm:$0xff]
    %v351 = vstv %s348
    %v352 = vmul.f32 %v351, %v349
    %v353 = vmul.f32 %v351, %v350
    %v354 = vadd.f32 %v346, %v352
    %v355 = vadd.f32 %v347, %v353
    %s356 = sld [smem:[#allocation8 + $0x35]]
    %v357 = vld [vmem:[%s254] sm:$0xff]
    %v358 = vld [vmem:[%s254 + $0x8] sm:$0xff]
    %v359 = vstv %s356
    %v360 = vmul.f32 %v359, %v357
    %v361 = vmul.f32 %v359, %v358
    %v362 = vadd.f32 %v354, %v360
    %v363 = vadd.f32 %v355, %v361
    %s364 = sld [smem:[#allocation8 + $0x5]]
    %v365 = vld [vmem:[%s179] sm:$0xff]
    %v366 = vld [vmem:[%s179 + $0x8] sm:$0xff]
    %v367 = vstv %s364
    %v368 = vmul.f32 %v367, %v365
    %v369 = vmul.f32 %v367, %v366
    %v370 = vadd.f32 %v362, %v368
    %v371 = vadd.f32 %v363, %v369
    %s372 = sld [smem:[#allocation8 + $0x36]]
    %v373 = vld [vmem:[%s267] sm:$0xff]
    %v374 = vld [vmem:[%s267 + $0x8] sm:$0xff]
    %v375 = vstv %s372
    %v376 = vmul.f32 %v375, %v373
    %v377 = vmul.f32 %v375, %v374
    %v378 = vadd.f32 %v370, %v376
    %v379 = vadd.f32 %v371, %v377
    %s380 = sld [smem:[#allocation8 + $0x6]]
    %v381 = vld [vmem:[%s192] sm:$0xff]
    %v382 = vld [vmem:[%s192 + $0x8] sm:$0xff]
    %v383 = vstv %s380
    %v384 = vmul.f32 %v383, %v381
    %v385 = vmul.f32 %v383, %v382
    %v386 = vadd.f32 %v378, %v384
    %v387 = vadd.f32 %v379, %v385
    %s388 = sld [smem:[#allocation8 + $0x37]]
    %v389 = vld [vmem:[%s280] sm:$0xff]
    %v390 = vld [vmem:[%s280 + $0x8] sm:$0xff]
    %v391 = vstv %s388
    %v392 = vmul.f32 %v391, %v389
    %v393 = vmul.f32 %v391, %v390
    %v394 = vadd.f32 %v386, %v392
    %v395 = vadd.f32 %v387, %v393
    %s396 = sld [smem:[#allocation8 + $0x7]]
    %v397 = vld [vmem:[#allocation3 + $0x1] sm:$0xff]
    %v398 = vld [vmem:[#allocation3 + $0x9] sm:$0xff]
    %v399 = vstv %s396
    %v400 = vmul.f32 %v399, %v397
    %v401 = vmul.f32 %v399, %v398
    %v402 = vadd.f32 %v394, %v400
    %v403 = vadd.f32 %v395, %v401
    %s404 = sld [smem:[#allocation8 + $0x38]]
    %v405 = vld [vmem:[%s199 + $0x1] sm:$0xff]
    %v406 = vld [vmem:[%s199 + $0x9] sm:$0xff]
    %v407 = vstv %s404
    %v408 = vmul.f32 %v407, %v405
    %v409 = vmul.f32 %v407, %v406
    %v410 = vadd.f32 %v402, %v408
    %v411 = vadd.f32 %v403, %v409
    %s412 = sld [smem:[#allocation8 + $0x8]]
    %v413 = vld [vmem:[%s127 + $0x1] sm:$0xff]
    %v414 = vld [vmem:[%s127 + $0x9] sm:$0xff]
    %v415 = vstv %s412
    %v416 = vmul.f32 %v415, %v413
    %v417 = vmul.f32 %v415, %v414
    %v418 = vadd.f32 %v410, %v416
    %v419 = vadd.f32 %v411, %v417
    %s420 = sld [smem:[#allocation8 + $0x39]]
    %v421 = vld [vmem:[%s215 + $0x1] sm:$0xff]
    %v422 = vld [vmem:[%s215 + $0x9] sm:$0xff]
    %v423 = vstv %s420
    %v424 = vmul.f32 %v423, %v421
    %v425 = vmul.f32 %v423, %v422
    %v426 = vadd.f32 %v418, %v424
    %v427 = vadd.f32 %v419, %v425
    %s428 = sld [smem:[#allocation8 + $0x9]]
    %v429 = vld [vmem:[%s140 + $0x1] sm:$0xff]
    %v430 = vld [vmem:[%s140 + $0x9] sm:$0xff]
    %v431 = vstv %s428
    %v432 = vmul.f32 %v431, %v429
    %v433 = vmul.f32 %v431, %v430
    %v434 = vadd.f32 %v426, %v432
    %v435 = vadd.f32 %v427, %v433
    %s436 = sld [smem:[#allocation8 + $0x3a]]
    %v437 = vld [vmem:[%s228 + $0x1] sm:$0xff]
    %v438 = vld [vmem:[%s228 + $0x9] sm:$0xff]
    %v439 = vstv %s436
    %v440 = vmul.f32 %v439, %v437
    %v441 = vmul.f32 %v439, %v438
    %v442 = vadd.f32 %v434, %v440
    %v443 = vadd.f32 %v435, %v441
    %s444 = sld [smem:[#allocation8 + $0xa]]
    %v445 = vld [vmem:[%s153 + $0x1] sm:$0xff]
    %v446 = vld [vmem:[%s153 + $0x9] sm:$0xff]
    %v447 = vstv %s444
    %v448 = vmul.f32 %v447, %v445
    %v449 = vmul.f32 %v447, %v446
    %v450 = vadd.f32 %v442, %v448
    %v451 = vadd.f32 %v443, %v449
    %s452 = sld [smem:[#allocation8 + $0x3b]]
    %v453 = vld [vmem:[%s241 + $0x1] sm:$0xff]
    %v454 = vld [vmem:[%s241 + $0x9] sm:$0xff]
    %v455 = vstv %s452
    %v456 = vmul.f32 %v455, %v453
    %v457 = vmul.f32 %v455, %v454
    %v458 = vadd.f32 %v450, %v456
    %v459 = vadd.f32 %v451, %v457
    %s460 = sld [smem:[#allocation8 + $0xb]]
    %v461 = vld [vmem:[%s166 + $0x1] sm:$0xff]
    %v462 = vld [vmem:[%s166 + $0x9] sm:$0xff]
    %v463 = vstv %s460
    %v464 = vmul.f32 %v463, %v461
    %v465 = vmul.f32 %v463, %v462
    %v466 = vadd.f32 %v458, %v464
    %v467 = vadd.f32 %v459, %v465
    %s468 = sld [smem:[#allocation8 + $0x3c]]
    %v469 = vld [vmem:[%s254 + $0x1] sm:$0xff]
    %v470 = vld [vmem:[%s254 + $0x9] sm:$0xff]
    %v471 = vstv %s468
    %v472 = vmul.f32 %v471, %v469
    %v473 = vmul.f32 %v471, %v470
    %v474 = vadd.f32 %v466, %v472
    %v475 = vadd.f32 %v467, %v473
    %s476 = sld [smem:[#allocation8 + $0xc]]
    %v477 = vld [vmem:[%s179 + $0x1] sm:$0xff]
    %v478 = vld [vmem:[%s179 + $0x9] sm:$0xff]
    %v479 = vstv %s476
    %v480 = vmul.f32 %v479, %v477
    %v481 = vmul.f32 %v479, %v478
    %v482 = vadd.f32 %v474, %v480
    %v483 = vadd.f32 %v475, %v481
    %s484 = sld [smem:[#allocation8 + $0x3d]]
    %v485 = vld [vmem:[%s267 + $0x1] sm:$0xff]
    %v486 = vld [vmem:[%s267 + $0x9] sm:$0xff]
    %v487 = vstv %s484
    %v488 = vmul.f32 %v487, %v485
    %v489 = vmul.f32 %v487, %v486
    %v490 = vadd.f32 %v482, %v488
    %v491 = vadd.f32 %v483, %v489
    %s492 = sld [smem:[#allocation8 + $0xd]]
    %v493 = vld [vmem:[%s192 + $0x1] sm:$0xff]
    %v494 = vld [vmem:[%s192 + $0x9] sm:$0xff]
    %v495 = vstv %s492
    %v496 = vmul.f32 %v495, %v493
    %v497 = vmul.f32 %v495, %v494
    %v498 = vadd.f32 %v490, %v496
    %v499 = vadd.f32 %v491, %v497
    %s500 = sld [smem:[#allocation8 + $0x3e]]
    %v501 = vld [vmem:[%s280 + $0x1] sm:$0xff]
    %v502 = vld [vmem:[%s280 + $0x9] sm:$0xff]
    %v503 = vstv %s500
    %v504 = vmul.f32 %v503, %v501
    %v505 = vmul.f32 %v503, %v502
    %v506 = vadd.f32 %v498, %v504
    %v507 = vadd.f32 %v499, %v505
    %s508 = sld [smem:[#allocation8 + $0xe]]
    %v509 = vld [vmem:[#allocation3 + $0x2] sm:$0xff]
    %v510 = vld [vmem:[#allocation3 + $0xa] sm:$0xff]
    %v511 = vstv %s508
    %v512 = vmul.f32 %v511, %v509
    %v513 = vmul.f32 %v511, %v510
    %v514 = vadd.f32 %v506, %v512
    %v515 = vadd.f32 %v507, %v513
    %s516 = sld [smem:[#allocation8 + $0x3f]]
    %v517 = vld [vmem:[%s199 + $0x2] sm:$0xff]
    %v518 = vld [vmem:[%s199 + $0xa] sm:$0xff]
    %v519 = vstv %s516
    %v520 = vmul.f32 %v519, %v517
    %v521 = vmul.f32 %v519, %v518
    %v522 = vadd.f32 %v514, %v520
    %v523 = vadd.f32 %v515, %v521
    %s524 = sld [smem:[#allocation8 + $0xf]]
    %v525 = vld [vmem:[%s127 + $0x2] sm:$0xff]
    %v526 = vld [vmem:[%s127 + $0xa] sm:$0xff]
    %v527 = vstv %s524
    %v528 = vmul.f32 %v527, %v525
    %v529 = vmul.f32 %v527, %v526
    %v530 = vadd.f32 %v522, %v528
    %v531 = vadd.f32 %v523, %v529
    %s532 = sld [smem:[#allocation8 + $0x40]]
    %v533 = vld [vmem:[%s215 + $0x2] sm:$0xff]
    %v534 = vld [vmem:[%s215 + $0xa] sm:$0xff]
    %v535 = vstv %s532
    %v536 = vmul.f32 %v535, %v533
    %v537 = vmul.f32 %v535, %v534
    %v538 = vadd.f32 %v530, %v536
    %v539 = vadd.f32 %v531, %v537
    %s540 = sld [smem:[#allocation8 + $0x10]]
    %v541 = vld [vmem:[%s140 + $0x2] sm:$0xff]
    %v542 = vld [vmem:[%s140 + $0xa] sm:$0xff]
    %v543 = vstv %s540
    %v544 = vmul.f32 %v543, %v541
    %v545 = vmul.f32 %v543, %v542
    %v546 = vadd.f32 %v538, %v544
    %v547 = vadd.f32 %v539, %v545
    %s548 = sld [smem:[#allocation8 + $0x41]]
    %v549 = vld [vmem:[%s228 + $0x2] sm:$0xff]
    %v550 = vld [vmem:[%s228 + $0xa] sm:$0xff]
    %v551 = vstv %s548
    %v552 = vmul.f32 %v551, %v549
    %v553 = vmul.f32 %v551, %v550
    %v554 = vadd.f32 %v546, %v552
    %v555 = vadd.f32 %v547, %v553
    %s556 = sld [smem:[#allocation8 + $0x11]]
    %v557 = vld [vmem:[%s153 + $0x2] sm:$0xff]
    %v558 = vld [vmem:[%s153 + $0xa] sm:$0xff]
    %v559 = vstv %s556
    %v560 = vmul.f32 %v559, %v557
    %v561 = vmul.f32 %v559, %v558
    %v562 = vadd.f32 %v554, %v560
    %v563 = vadd.f32 %v555, %v561
    %s564 = sld [smem:[#allocation8 + $0x42]]
    %v565 = vld [vmem:[%s241 + $0x2] sm:$0xff]
    %v566 = vld [vmem:[%s241 + $0xa] sm:$0xff]
    %v567 = vstv %s564
    %v568 = vmul.f32 %v567, %v565
    %v569 = vmul.f32 %v567, %v566
    %v570 = vadd.f32 %v562, %v568
    %v571 = vadd.f32 %v563, %v569
    %s572 = sld [smem:[#allocation8 + $0x12]]
    %v573 = vld [vmem:[%s166 + $0x2] sm:$0xff]
    %v574 = vld [vmem:[%s166 + $0xa] sm:$0xff]
    %v575 = vstv %s572
    %v576 = vmul.f32 %v575, %v573
    %v577 = vmul.f32 %v575, %v574
    %v578 = vadd.f32 %v570, %v576
    %v579 = vadd.f32 %v571, %v577
    %s580 = sld [smem:[#allocation8 + $0x43]]
    %v581 = vld [vmem:[%s254 + $0x2] sm:$0xff]
    %v582 = vld [vmem:[%s254 + $0xa] sm:$0xff]
    %v583 = vstv %s580
    %v584 = vmul.f32 %v583, %v581
    %v585 = vmul.f32 %v583, %v582
    %v586 = vadd.f32 %v578, %v584
    %v587 = vadd.f32 %v579, %v585
    %s588 = sld [smem:[#allocation8 + $0x13]]
    %v589 = vld [vmem:[%s179 + $0x2] sm:$0xff]
    %v590 = vld [vmem:[%s179 + $0xa] sm:$0xff]
    %v591 = vstv %s588
    %v592 = vmul.f32 %v591, %v589
    %v593 = vmul.f32 %v591, %v590
    %v594 = vadd.f32 %v586, %v592
    %v595 = vadd.f32 %v587, %v593
    %s596 = sld [smem:[#allocation8 + $0x44]]
    %v597 = vld [vmem:[%s267 + $0x2] sm:$0xff]
    %v598 = vld [vmem:[%s267 + $0xa] sm:$0xff]
    %v599 = vstv %s596
    %v600 = vmul.f32 %v599, %v597
    %v601 = vmul.f32 %v599, %v598
    %v602 = vadd.f32 %v594, %v600
    %v603 = vadd.f32 %v595, %v601
    %s604 = sld [smem:[#allocation8 + $0x14]]
    %v605 = vld [vmem:[%s192 + $0x2] sm:$0xff]
    %v606 = vld [vmem:[%s192 + $0xa] sm:$0xff]
    %v607 = vstv %s604
    %v608 = vmul.f32 %v607, %v605
    %v609 = vmul.f32 %v607, %v606
    %v610 = vadd.f32 %v602, %v608
    %v611 = vadd.f32 %v603, %v609
    %s612 = sld [smem:[#allocation8 + $0x45]]
    %v613 = vld [vmem:[%s280 + $0x2] sm:$0xff]
    %v614 = vld [vmem:[%s280 + $0xa] sm:$0xff]
    %v615 = vstv %s612
    %v616 = vmul.f32 %v615, %v613
    %v617 = vmul.f32 %v615, %v614
    %v618 = vadd.f32 %v610, %v616
    %v619 = vadd.f32 %v611, %v617
    %s620 = sld [smem:[#allocation8 + $0x15]]
    %v621 = vld [vmem:[#allocation3 + $0x3] sm:$0xff]
    %v622 = vld [vmem:[#allocation3 + $0xb] sm:$0xff]
    %v623 = vstv %s620
    %v624 = vmul.f32 %v623, %v621
    %v625 = vmul.f32 %v623, %v622
    %v626 = vadd.f32 %v618, %v624
    %v627 = vadd.f32 %v619, %v625
    %s628 = sld [smem:[#allocation8 + $0x46]]
    %v629 = vld [vmem:[%s199 + $0x3] sm:$0xff]
    %v630 = vld [vmem:[%s199 + $0xb] sm:$0xff]
    %v631 = vstv %s628
    %v632 = vmul.f32 %v631, %v629
    %v633 = vmul.f32 %v631, %v630
    %v634 = vadd.f32 %v626, %v632
    %v635 = vadd.f32 %v627, %v633
    %s636 = sld [smem:[#allocation8 + $0x16]]
    %v637 = vld [vmem:[%s127 + $0x3] sm:$0xff]
    %v638 = vld [vmem:[%s127 + $0xb] sm:$0xff]
    %v639 = vstv %s636
    %v640 = vmul.f32 %v639, %v637
    %v641 = vmul.f32 %v639, %v638
    %v642 = vadd.f32 %v634, %v640
    %v643 = vadd.f32 %v635, %v641
    %s644 = sld [smem:[#allocation8 + $0x47]]
    %v645 = vld [vmem:[%s215 + $0x3] sm:$0xff]
    %v646 = vld [vmem:[%s215 + $0xb] sm:$0xff]
    %v647 = vstv %s644
    %v648 = vmul.f32 %v647, %v645
    %v649 = vmul.f32 %v647, %v646
    %v650 = vadd.f32 %v642, %v648
    %v651 = vadd.f32 %v643, %v649
    %s652 = sld [smem:[#allocation8 + $0x17]]
    %v653 = vld [vmem:[%s140 + $0x3] sm:$0xff]
    %v654 = vld [vmem:[%s140 + $0xb] sm:$0xff]
    %v655 = vstv %s652
    %v656 = vmul.f32 %v655, %v653
    %v657 = vmul.f32 %v655, %v654
    %v658 = vadd.f32 %v650, %v656
    %v659 = vadd.f32 %v651, %v657
    %s660 = sld [smem:[#allocation8 + $0x48]]
    %v661 = vld [vmem:[%s228 + $0x3] sm:$0xff]
    %v662 = vld [vmem:[%s228 + $0xb] sm:$0xff]
    %v663 = vstv %s660
    %v664 = vmul.f32 %v663, %v661
    %v665 = vmul.f32 %v663, %v662
    %v666 = vadd.f32 %v658, %v664
    %v667 = vadd.f32 %v659, %v665
    %s668 = sld [smem:[#allocation8 + $0x18]]
    %v669 = vld [vmem:[%s153 + $0x3] sm:$0xff]
    %v670 = vld [vmem:[%s153 + $0xb] sm:$0xff]
    %v671 = vstv %s668
    %v672 = vmul.f32 %v671, %v669
    %v673 = vmul.f32 %v671, %v670
    %v674 = vadd.f32 %v666, %v672
    %v675 = vadd.f32 %v667, %v673
    %s676 = sld [smem:[#allocation8 + $0x49]]
    %v677 = vld [vmem:[%s241 + $0x3] sm:$0xff]
    %v678 = vld [vmem:[%s241 + $0xb] sm:$0xff]
    %v679 = vstv %s676
    %v680 = vmul.f32 %v679, %v677
    %v681 = vmul.f32 %v679, %v678
    %v682 = vadd.f32 %v674, %v680
    %v683 = vadd.f32 %v675, %v681
    %s684 = sld [smem:[#allocation8 + $0x19]]
    %v685 = vld [vmem:[%s166 + $0x3] sm:$0xff]
    %v686 = vld [vmem:[%s166 + $0xb] sm:$0xff]
    %v687 = vstv %s684
    %v688 = vmul.f32 %v687, %v685
    %v689 = vmul.f32 %v687, %v686
    %v690 = vadd.f32 %v682, %v688
    %v691 = vadd.f32 %v683, %v689
    %s692 = sld [smem:[#allocation8 + $0x4a]]
    %v693 = vld [vmem:[%s254 + $0x3] sm:$0xff]
    %v694 = vld [vmem:[%s254 + $0xb] sm:$0xff]
    %v695 = vstv %s692
    %v696 = vmul.f32 %v695, %v693
    %v697 = vmul.f32 %v695, %v694
    %v698 = vadd.f32 %v690, %v696
    %v699 = vadd.f32 %v691, %v697
    %s700 = sld [smem:[#allocation8 + $0x1a]]
    %v701 = vld [vmem:[%s179 + $0x3] sm:$0xff]
    %v702 = vld [vmem:[%s179 + $0xb] sm:$0xff]
    %v703 = vstv %s700
    %v704 = vmul.f32 %v703, %v701
    %v705 = vmul.f32 %v703, %v702
    %v706 = vadd.f32 %v698, %v704
    %v707 = vadd.f32 %v699, %v705
    %s708 = sld [smem:[#allocation8 + $0x4b]]
    %v709 = vld [vmem:[%s267 + $0x3] sm:$0xff]
    %v710 = vld [vmem:[%s267 + $0xb] sm:$0xff]
    %v711 = vstv %s708
    %v712 = vmul.f32 %v711, %v709
    %v713 = vmul.f32 %v711, %v710
    %v714 = vadd.f32 %v706, %v712
    %v715 = vadd.f32 %v707, %v713
    %s716 = sld [smem:[#allocation8 + $0x1b]]
    %v717 = vld [vmem:[%s192 + $0x3] sm:$0xff]
    %v718 = vld [vmem:[%s192 + $0xb] sm:$0xff]
    %v719 = vstv %s716
    %v720 = vmul.f32 %v719, %v717
    %v721 = vmul.f32 %v719, %v718
    %v722 = vadd.f32 %v714, %v720
    %v723 = vadd.f32 %v715, %v721
    %s724 = sld [smem:[#allocation8 + $0x4c]]
    %v725 = vld [vmem:[%s280 + $0x3] sm:$0xff]
    %v726 = vld [vmem:[%s280 + $0xb] sm:$0xff]
    %v727 = vstv %s724
    %v728 = vmul.f32 %v727, %v725
    %v729 = vmul.f32 %v727, %v726
    %v730 = vadd.f32 %v722, %v728
    %v731 = vadd.f32 %v723, %v729
    %s732 = sld [smem:[#allocation8 + $0x1c]]
    %v733 = vld [vmem:[#allocation3 + $0x4] sm:$0xff]
    %v734 = vld [vmem:[#allocation3 + $0xc] sm:$0xff]
    %v735 = vstv %s732
    %v736 = vmul.f32 %v735, %v733
    %v737 = vmul.f32 %v735, %v734
    %v738 = vadd.f32 %v730, %v736
    %v739 = vadd.f32 %v731, %v737
    %s740 = sld [smem:[#allocation8 + $0x4d]]
    %v741 = vld [vmem:[%s199 + $0x4] sm:$0xff]
    %v742 = vld [vmem:[%s199 + $0xc] sm:$0xff]
    %v743 = vstv %s740
    %v744 = vmul.f32 %v743, %v741
    %v745 = vmul.f32 %v743, %v742
    %v746 = vadd.f32 %v738, %v744
    %v747 = vadd.f32 %v739, %v745
    %s748 = sld [smem:[#allocation8 + $0x1d]]
    %v749 = vld [vmem:[%s127 + $0x4] sm:$0xff]
    %v750 = vld [vmem:[%s127 + $0xc] sm:$0xff]
    %v751 = vstv %s748
    %v752 = vmul.f32 %v751, %v749
    %v753 = vmul.f32 %v751, %v750
    %v754 = vadd.f32 %v746, %v752
    %v755 = vadd.f32 %v747, %v753
    %s756 = sld [smem:[#allocation8 + $0x4e]]
    %v757 = vld [vmem:[%s215 + $0x4] sm:$0xff]
    %v758 = vld [vmem:[%s215 + $0xc] sm:$0xff]
    %v759 = vstv %s756
    %v760 = vmul.f32 %v759, %v757
    %v761 = vmul.f32 %v759, %v758
    %v762 = vadd.f32 %v754, %v760
    %v763 = vadd.f32 %v755, %v761
    %s764 = sld [smem:[#allocation8 + $0x1e]]
    %v765 = vld [vmem:[%s140 + $0x4] sm:$0xff]
    %v766 = vld [vmem:[%s140 + $0xc] sm:$0xff]
    %v767 = vstv %s764
    %v768 = vmul.f32 %v767, %v765
    %v769 = vmul.f32 %v767, %v766
    %v770 = vadd.f32 %v762, %v768
    %v771 = vadd.f32 %v763, %v769
    %s772 = sld [smem:[#allocation8 + $0x4f]]
    %v773 = vld [vmem:[%s228 + $0x4] sm:$0xff]
    %v774 = vld [vmem:[%s228 + $0xc] sm:$0xff]
    %v775 = vstv %s772
    %v776 = vmul.f32 %v775, %v773
    %v777 = vmul.f32 %v775, %v774
    %v778 = vadd.f32 %v770, %v776
    %v779 = vadd.f32 %v771, %v777
    %s780 = sld [smem:[#allocation8 + $0x1f]]
    %v781 = vld [vmem:[%s153 + $0x4] sm:$0xff]
    %v782 = vld [vmem:[%s153 + $0xc] sm:$0xff]
    %v783 = vstv %s780
    %v784 = vmul.f32 %v783, %v781
    %v785 = vmul.f32 %v783, %v782
    %v786 = vadd.f32 %v778, %v784
    %v787 = vadd.f32 %v779, %v785
    %s788 = sld [smem:[#allocation8 + $0x50]]
    %v789 = vld [vmem:[%s241 + $0x4] sm:$0xff]
    %v790 = vld [vmem:[%s241 + $0xc] sm:$0xff]
    %v791 = vstv %s788
    %v792 = vmul.f32 %v791, %v789
    %v793 = vmul.f32 %v791, %v790
    %v794 = vadd.f32 %v786, %v792
    %v795 = vadd.f32 %v787, %v793
    %s796 = sld [smem:[#allocation8 + $0x20]]
    %v797 = vld [vmem:[%s166 + $0x4] sm:$0xff]
    %v798 = vld [vmem:[%s166 + $0xc] sm:$0xff]
    %v799 = vstv %s796
    %v800 = vmul.f32 %v799, %v797
    %v801 = vmul.f32 %v799, %v798
    %v802 = vadd.f32 %v794, %v800
    %v803 = vadd.f32 %v795, %v801
    %s804 = sld [smem:[#allocation8 + $0x51]]
    %v805 = vld [vmem:[%s254 + $0x4] sm:$0xff]
    %v806 = vld [vmem:[%s254 + $0xc] sm:$0xff]
    %v807 = vstv %s804
    %v808 = vmul.f32 %v807, %v805
    %v809 = vmul.f32 %v807, %v806
    %v810 = vadd.f32 %v802, %v808
    %v811 = vadd.f32 %v803, %v809
    %s812 = sld [smem:[#allocation8 + $0x21]]
    %v813 = vld [vmem:[%s179 + $0x4] sm:$0xff]
    %v814 = vld [vmem:[%s179 + $0xc] sm:$0xff]
    %v815 = vstv %s812
    %v816 = vmul.f32 %v815, %v813
    %v817 = vmul.f32 %v815, %v814
    %v818 = vadd.f32 %v810, %v816
    %v819 = vadd.f32 %v811, %v817
    %s820 = sld [smem:[#allocation8 + $0x52]]
    %v821 = vld [vmem:[%s267 + $0x4] sm:$0xff]
    %v822 = vld [vmem:[%s267 + $0xc] sm:$0xff]
    %v823 = vstv %s820
    %v824 = vmul.f32 %v823, %v821
    %v825 = vmul.f32 %v823, %v822
    %v826 = vadd.f32 %v818, %v824
    %v827 = vadd.f32 %v819, %v825
    %s828 = sld [smem:[#allocation8 + $0x22]]
    %v829 = vld [vmem:[%s192 + $0x4] sm:$0xff]
    %v830 = vld [vmem:[%s192 + $0xc] sm:$0xff]
    %v831 = vstv %s828
    %v832 = vmul.f32 %v831, %v829
    %v833 = vmul.f32 %v831, %v830
    %v834 = vadd.f32 %v826, %v832
    %v835 = vadd.f32 %v827, %v833
    %s836 = sld [smem:[#allocation8 + $0x53]]
    %v837 = vld [vmem:[%s280 + $0x4] sm:$0xff]
    %v838 = vld [vmem:[%s280 + $0xc] sm:$0xff]
    %v839 = vstv %s836
    %v840 = vmul.f32 %v839, %v837
    %v841 = vmul.f32 %v839, %v838
    %v842 = vadd.f32 %v834, %v840
    %v843 = vadd.f32 %v835, %v841
    %s844 = sld [smem:[#allocation8 + $0x23]]
    %v845 = vld [vmem:[#allocation3 + $0x5] sm:$0xff]
    %v846 = vld [vmem:[#allocation3 + $0xd] sm:$0xff]
    %v847 = vstv %s844
    %v848 = vmul.f32 %v847, %v845
    %v849 = vmul.f32 %v847, %v846
    %v850 = vadd.f32 %v842, %v848
    %v851 = vadd.f32 %v843, %v849
    %s852 = sld [smem:[#allocation8 + $0x54]]
    %v853 = vld [vmem:[%s199 + $0x5] sm:$0xff]
    %v854 = vld [vmem:[%s199 + $0xd] sm:$0xff]
    %v855 = vstv %s852
    %v856 = vmul.f32 %v855, %v853
    %v857 = vmul.f32 %v855, %v854
    %v858 = vadd.f32 %v850, %v856
    %v859 = vadd.f32 %v851, %v857
    %s860 = sld [smem:[#allocation8 + $0x24]]
    %v861 = vld [vmem:[%s127 + $0x5] sm:$0xff]
    %v862 = vld [vmem:[%s127 + $0xd] sm:$0xff]
    %v863 = vstv %s860
    %v864 = vmul.f32 %v863, %v861
    %v865 = vmul.f32 %v863, %v862
    %v866 = vadd.f32 %v858, %v864
    %v867 = vadd.f32 %v859, %v865
    %s868 = sld [smem:[#allocation8 + $0x55]]
    %v869 = vld [vmem:[%s215 + $0x5] sm:$0xff]
    %v870 = vld [vmem:[%s215 + $0xd] sm:$0xff]
    %v871 = vstv %s868
    %v872 = vmul.f32 %v871, %v869
    %v873 = vmul.f32 %v871, %v870
    %v874 = vadd.f32 %v866, %v872
    %v875 = vadd.f32 %v867, %v873
    %s876 = sld [smem:[#allocation8 + $0x25]]
    %v877 = vld [vmem:[%s140 + $0x5] sm:$0xff]
    %v878 = vld [vmem:[%s140 + $0xd] sm:$0xff]
    %v879 = vstv %s876
    %v880 = vmul.f32 %v879, %v877
    %v881 = vmul.f32 %v879, %v878
    %v882 = vadd.f32 %v874, %v880
    %v883 = vadd.f32 %v875, %v881
    %s884 = sld [smem:[#allocation8 + $0x56]]
    %v885 = vld [vmem:[%s228 + $0x5] sm:$0xff]
    %v886 = vld [vmem:[%s228 + $0xd] sm:$0xff]
    %v887 = vstv %s884
    %v888 = vmul.f32 %v887, %v885
    %v889 = vmul.f32 %v887, %v886
    %v890 = vadd.f32 %v882, %v888
    %v891 = vadd.f32 %v883, %v889
    %s892 = sld [smem:[#allocation8 + $0x26]]
    %v893 = vld [vmem:[%s153 + $0x5] sm:$0xff]
    %v894 = vld [vmem:[%s153 + $0xd] sm:$0xff]
    %v895 = vstv %s892
    %v896 = vmul.f32 %v895, %v893
    %v897 = vmul.f32 %v895, %v894
    %v898 = vadd.f32 %v890, %v896
    %v899 = vadd.f32 %v891, %v897
    %s900 = sld [smem:[#allocation8 + $0x57]]
    %v901 = vld [vmem:[%s241 + $0x5] sm:$0xff]
    %v902 = vld [vmem:[%s241 + $0xd] sm:$0xff]
    %v903 = vstv %s900
    %v904 = vmul.f32 %v903, %v901
    %v905 = vmul.f32 %v903, %v902
    %v906 = vadd.f32 %v898, %v904
    %v907 = vadd.f32 %v899, %v905
    %s908 = sld [smem:[#allocation8 + $0x27]]
    %v909 = vld [vmem:[%s166 + $0x5] sm:$0xff]
    %v910 = vld [vmem:[%s166 + $0xd] sm:$0xff]
    %v911 = vstv %s908
    %v912 = vmul.f32 %v911, %v909
    %v913 = vmul.f32 %v911, %v910
    %v914 = vadd.f32 %v906, %v912
    %v915 = vadd.f32 %v907, %v913
    %s916 = sld [smem:[#allocation8 + $0x58]]
    %v917 = vld [vmem:[%s254 + $0x5] sm:$0xff]
    %v918 = vld [vmem:[%s254 + $0xd] sm:$0xff]
    %v919 = vstv %s916
    %v920 = vmul.f32 %v919, %v917
    %v921 = vmul.f32 %v919, %v918
    %v922 = vadd.f32 %v914, %v920
    %v923 = vadd.f32 %v915, %v921
    %s924 = sld [smem:[#allocation8 + $0x28]]
    %v925 = vld [vmem:[%s179 + $0x5] sm:$0xff]
    %v926 = vld [vmem:[%s179 + $0xd] sm:$0xff]
    %v927 = vstv %s924
    %v928 = vmul.f32 %v927, %v925
    %v929 = vmul.f32 %v927, %v926
    %v930 = vadd.f32 %v922, %v928
    %v931 = vadd.f32 %v923, %v929
    %s932 = sld [smem:[#allocation8 + $0x59]]
    %v933 = vld [vmem:[%s267 + $0x5] sm:$0xff]
    %v934 = vld [vmem:[%s267 + $0xd] sm:$0xff]
    %v935 = vstv %s932
    %v936 = vmul.f32 %v935, %v933
    %v937 = vmul.f32 %v935, %v934
    %v938 = vadd.f32 %v930, %v936
    %v939 = vadd.f32 %v931, %v937
    %s940 = sld [smem:[#allocation8 + $0x29]]
    %v941 = vld [vmem:[%s192 + $0x5] sm:$0xff]
    %v942 = vld [vmem:[%s192 + $0xd] sm:$0xff]
    %v943 = vstv %s940
    %v944 = vmul.f32 %v943, %v941
    %v945 = vmul.f32 %v943, %v942
    %v946 = vadd.f32 %v938, %v944
    %v947 = vadd.f32 %v939, %v945
    %s948 = sld [smem:[#allocation8 + $0x5a]]
    %v949 = vld [vmem:[%s280 + $0x5] sm:$0xff]
    %v950 = vld [vmem:[%s280 + $0xd] sm:$0xff]
    %v951 = vstv %s948
    %v952 = vmul.f32 %v951, %v949
    %v953 = vmul.f32 %v951, %v950
    %v954 = vadd.f32 %v946, %v952
    %v955 = vadd.f32 %v947, %v953
    %s956 = sld [smem:[#allocation8 + $0x2a]]
    %v957 = vld [vmem:[#allocation3 + $0x6] sm:$0xff]
    %v958 = vld [vmem:[#allocation3 + $0xe] sm:$0xff]
    %v959 = vstv %s956
    %v960 = vmul.f32 %v959, %v957
    %v961 = vmul.f32 %v959, %v958
    %v962 = vadd.f32 %v954, %v960
    %v963 = vadd.f32 %v955, %v961
    %s964 = sld [smem:[#allocation8 + $0x5b]]
    %v965 = vld [vmem:[%s199 + $0x6] sm:$0xff]
    %v966 = vld [vmem:[%s199 + $0xe] sm:$0xff]
    %v967 = vstv %s964
    %v968 = vmul.f32 %v967, %v965
    %v969 = vmul.f32 %v967, %v966
    %v970 = vadd.f32 %v962, %v968
    %v971 = vadd.f32 %v963, %v969
    %s972 = sld [smem:[#allocation8 + $0x2b]]
    %v973 = vld [vmem:[%s127 + $0x6] sm:$0xff]
    %v974 = vld [vmem:[%s127 + $0xe] sm:$0xff]
    %v975 = vstv %s972
    %v976 = vmul.f32 %v975, %v973
    %v977 = vmul.f32 %v975, %v974
    %v978 = vadd.f32 %v970, %v976
    %v979 = vadd.f32 %v971, %v977
    %s980 = sld [smem:[#allocation8 + $0x5c]]
    %v981 = vld [vmem:[%s215 + $0x6] sm:$0xff]
    %v982 = vld [vmem:[%s215 + $0xe] sm:$0xff]
    %v983 = vstv %s980
    %v984 = vmul.f32 %v983, %v981
    %v985 = vmul.f32 %v983, %v982
    %v986 = vadd.f32 %v978, %v984
    %v987 = vadd.f32 %v979, %v985
    %s988 = sld [smem:[#allocation8 + $0x2c]]
    %v989 = vld [vmem:[%s140 + $0x6] sm:$0xff]
    %v990 = vld [vmem:[%s140 + $0xe] sm:$0xff]
    %v991 = vstv %s988
    %v992 = vmul.f32 %v991, %v989
    %v993 = vmul.f32 %v991, %v990
    %v994 = vadd.f32 %v986, %v992
    %v995 = vadd.f32 %v987, %v993
    %s996 = sld [smem:[#allocation8 + $0x5d]]
    %v997 = vld [vmem:[%s228 + $0x6] sm:$0xff]
    %v998 = vld [vmem:[%s228 + $0xe] sm:$0xff]
    %v999 = vstv %s996
    %v1000 = vmul.f32 %v999, %v997
    %v1001 = vmul.f32 %v999, %v998
    %v1002 = vadd.f32 %v994, %v1000
    %v1003 = vadd.f32 %v995, %v1001
    %s1004 = sld [smem:[#allocation8 + $0x2d]]
    %v1005 = vld [vmem:[%s153 + $0x6] sm:$0xff]
    %v1006 = vld [vmem:[%s153 + $0xe] sm:$0xff]
    %v1007 = vstv %s1004
    %v1008 = vmul.f32 %v1007, %v1005
    %v1009 = vmul.f32 %v1007, %v1006
    %v1010 = vadd.f32 %v1002, %v1008
    %v1011 = vadd.f32 %v1003, %v1009
    %s1012 = sld [smem:[#allocation8 + $0x5e]]
    %v1013 = vld [vmem:[%s241 + $0x6] sm:$0xff]
    %v1014 = vld [vmem:[%s241 + $0xe] sm:$0xff]
    %v1015 = vstv %s1012
    %v1016 = vmul.f32 %v1015, %v1013
    %v1017 = vmul.f32 %v1015, %v1014
    %v1018 = vadd.f32 %v1010, %v1016
    %v1019 = vadd.f32 %v1011, %v1017
    %s1020 = sld [smem:[#allocation8 + $0x2e]]
    %v1021 = vld [vmem:[%s166 + $0x6] sm:$0xff]
    %v1022 = vld [vmem:[%s166 + $0xe] sm:$0xff]
    %v1023 = vstv %s1020
    %v1024 = vmul.f32 %v1023, %v1021
    %v1025 = vmul.f32 %v1023, %v1022
    %v1026 = vadd.f32 %v1018, %v1024
    %v1027 = vadd.f32 %v1019, %v1025
    %s1028 = sld [smem:[#allocation8 + $0x5f]]
    %v1029 = vld [vmem:[%s254 + $0x6] sm:$0xff]
    %v1030 = vld [vmem:[%s254 + $0xe] sm:$0xff]
    %v1031 = vstv %s1028
    %v1032 = vmul.f32 %v1031, %v1029
    %v1033 = vmul.f32 %v1031, %v1030
    %v1034 = vadd.f32 %v1026, %v1032
    %v1035 = vadd.f32 %v1027, %v1033
    %s1036 = sld [smem:[#allocation8 + $0x2f]]
    %v1037 = vld [vmem:[%s179 + $0x6] sm:$0xff]
    %v1038 = vld [vmem:[%s179 + $0xe] sm:$0xff]
    %v1039 = vstv %s1036
    %v1040 = vmul.f32 %v1039, %v1037
    %v1041 = vmul.f32 %v1039, %v1038
    %v1042 = vadd.f32 %v1034, %v1040
    %v1043 = vadd.f32 %v1035, %v1041
    %s1044 = sld [smem:[#allocation8 + $0x60]]
    %v1045 = vld [vmem:[%s267 + $0x6] sm:$0xff]
    %v1046 = vld [vmem:[%s267 + $0xe] sm:$0xff]
    %v1047 = vstv %s1044
    %v1048 = vmul.f32 %v1047, %v1045
    %v1049 = vmul.f32 %v1047, %v1046
    %v1050 = vadd.f32 %v1042, %v1048
    %v1051 = vadd.f32 %v1043, %v1049
    %s1052 = sld [smem:[#allocation8 + $0x30]]
    %v1053 = vld [vmem:[%s192 + $0x6] sm:$0xff]
    %v1054 = vld [vmem:[%s192 + $0xe] sm:$0xff]
    %v1055 = vstv %s1052
    %v1056 = vmul.f32 %v1055, %v1053
    %v1057 = vmul.f32 %v1055, %v1054
    %v1058 = vadd.f32 %v1050, %v1056
    %v1059 = vadd.f32 %v1051, %v1057
    %s1060 = sld [smem:[#allocation8 + $0x61]]
    %v1061 = vld [vmem:[%s280 + $0x6] sm:$0xff]
    %v1062 = vld [vmem:[%s280 + $0xe] sm:$0xff]
    %v1063 = vstv %s1060
    %v1064 = vmul.f32 %v1063, %v1061
    %v1065 = vmul.f32 %v1063, %v1062
    %v1066 = vadd.f32 %v1058, %v1064
    %v1067 = vadd.f32 %v1059, %v1065
    %v1068 = vxor.u32 %v1066, 2147483648
    %v1069 = vxor.u32 %v1067, 2147483648
    %v1070 = vmul.f32 %v1068, 1.442695
    %v1071 = vpow.pop %v1070
    %v1072 = vmul.f32 %v1069, 1.442695
    %v1073 = vpow.pop %v1072
    %v1074 = vadd.f32 %v1071, 1.0
    %v1075 = vadd.f32 %v1073, 1.0
    %v1076 = vrcp.pop %v1074
    %v1077 = vmul.f32 1.0, %v1076
    %v1078 = vrcp.pop %v1075
    %v1079 = vmul.f32 1.0, %v1078
    %v1080 = vld [vmem:[#allocation4] sm:$0xff]
    %v1081 = vld [vmem:[#allocation4 + $0x8] sm:$0xff]
    %v1082 = vld [vmem:[#allocation4 + $0x10] sm:$0xff]
    %v1083 = vld [vmem:[#allocation4 + $0x18] sm:$0xff]
    %v1084 = vld [vmem:[#allocation4 + $0x20] sm:$0xff]
    %v1085 = vld [vmem:[#allocation4 + $0x28] sm:$0xff]
    %v1086 = vld [vmem:[#allocation4 + $0x30] sm:$0xff]
    %v1087 = vld [vmem:[#allocation4 + $0x38] sm:$0xff]
    %v1088 = vmul.f32 %v1080, %v1077
    %v1089 = vmul.f32 %v1081, %v1079
    %v1090 = vmul.f32 %v1082, %v1077
    %v1091 = vmul.f32 %v1083, %v1079
    %v1092 = vmul.f32 %v1084, %v1077
    %v1093 = vmul.f32 %v1085, %v1079
    %v1094 = vmul.f32 %v1086, %v1077
    %v1095 = vmul.f32 %v1087, %v1079
    %1096 = vst.msk [vmem:[#allocation9] sm:$0xff] %vm55, %v1088
    %1097 = vst.msk [vmem:[#allocation9 + $0x8] sm:$0xff] %vm55, %v1089
    %1098 = vst.msk [vmem:[#allocation9 + $0x10] sm:$0xff] %vm55, %v1090
    %1099 = vst.msk [vmem:[#allocation9 + $0x18] sm:$0xff] %vm55, %v1091
    %1100 = vst.msk [vmem:[#allocation9 + $0x20] sm:$0xff] %vm55, %v1092
    %1101 = vst.msk [vmem:[#allocation9 + $0x28] sm:$0xff] %vm55, %v1093
    %1102 = vst.msk [vmem:[#allocation9 + $0x30] sm:$0xff] %vm55, %v1094
    %1103 = vst.msk [vmem:[#allocation9 + $0x38] sm:$0xff] %vm55, %v1095
    %s1104 = scalar_lea.vmem [#allocation4], 64
    %v1105 = vld [vmem:[%s1104] sm:$0xff]
    %v1106 = vld [vmem:[%s1104 + $0x8] sm:$0xff]
    %v1107 = vld [vmem:[%s1104 + $0x10] sm:$0xff]
    %v1108 = vld [vmem:[%s1104 + $0x18] sm:$0xff]
    %v1109 = vld [vmem:[%s1104 + $0x20] sm:$0xff]
    %v1110 = vld [vmem:[%s1104 + $0x28] sm:$0xff]
    %v1111 = vld [vmem:[%s1104 + $0x30] sm:$0xff]
    %v1112 = vld [vmem:[%s1104 + $0x38] sm:$0xff]
    %v1113 = vsel %vm55, %v1105, -inf
    %v1114 = vsel %vm55, %v1107, -inf
    %v1115 = vsel %vm55, %v1109, -inf
    %v1116 = vmax.f32 %v1113, %v1115
    %v1117 = vsel %vm55, %v1111, -inf
    %v1118 = vmax.f32 %v1114, %v1117
    %v1119 = vmax.f32 %v1116, %v1118
    %v1120 = vsel %vm55, %v1106, -inf
    %v1121 = vsel %vm55, %v1108, -inf
    %v1122 = vsel %vm55, %v1110, -inf
    %v1123 = vmax.f32 %v1120, %v1122
    %v1124 = vsel %vm55, %v1112, -inf
    %v1125 = vmax.f32 %v1121, %v1124
    %v1126 = vmax.f32 %v1123, %v1125
    %v1127 = vsel %vm55, %v1105, 0.0
    %v1128 = vsel %vm55, %v1107, 0.0
    %v1129 = vadd.f32 %v1127, %v1128
    %v1130 = vsel %vm55, %v1109, 0.0
    %v1131 = vadd.f32 %v1129, %v1130
    %v1132 = vsel %vm55, %v1111, 0.0
    %v1133 = vadd.f32 %v1131, %v1132
    %v1134 = vsel %vm55, %v1106, 0.0
    %v1135 = vsel %vm55, %v1108, 0.0
    %v1136 = vadd.f32 %v1134, %v1135
    %v1137 = vsel %vm55, %v1110, 0.0
    %v1138 = vadd.f32 %v1136, %v1137
    %v1139 = vsel %vm55, %v1112, 0.0
    %v1140 = vadd.f32 %v1138, %v1139
    %v1141 = vmul.f32 %v1133, 0.25
    %v1142 = vmul.f32 %v1140, 0.25
    %1145 = vrot.lane.b32.xlu0 %v1119, 3
    %v1146 = vpop.permute.xlu0 %1145
    %1147 = vrot.lane.b32.xlu0 %v1126, 3
    %v1148 = vpop.permute.xlu0 %1147
    %1151 = vst.msk [vmem:[#allocation2 + $0x3] sm:$0xff] %vm94, %v1146
    %1152 = vst.msk [vmem:[#allocation2 + $0xb] sm:$0xff] %vm94, %v1148
    %1155 = vrot.lane.b32.xlu0 %v1141, 3
    %v1156 = vpop.permute.xlu0 %1155
    %1157 = vrot.lane.b32.xlu0 %v1142, 3
    %v1158 = vpop.permute.xlu0 %1157
    %1161 = vst.msk [vmem:[%s105 + $0x3] sm:$0xff] %vm94, %v1156
    %1162 = vst.msk [vmem:[%s105 + $0xb] sm:$0xff] %vm94, %v1158
    %v1163 = vld [vmem:[#allocation2] sm:$0xff]
    %v1164 = vld [vmem:[#allocation2 + $0x8] sm:$0xff]
    %v1165 = vld [vmem:[#allocation2 + $0x10] sm:$0x3f]
    %1166 = vst.msk [vmem:[#allocation3] sm:$0xff] %vm55, %v1163
    %1167 = vst.msk [vmem:[#allocation3 + $0x8] sm:$0xff] %vm55, %v1164
    %1168 = vst.msk [vmem:[#allocation3 + $0x10] sm:$0x3f] %vm113, %v1165
    %1172 = vrot.lane.b32.xlu0 %v1163, 127
    %v1173 = vpop.permute.xlu0 %1172
    %1174 = vrot.lane.b32.xlu0 %v1164, 127
    %v1175 = vpop.permute.xlu0 %1174
    %1176 = vrot.lane.b32.xlu0 %v1165, 127
    %v1177 = vpop.permute.xlu0 %1176
    %1181 = vst.msk [vmem:[%s127] sm:$0xff] %vm55, %v1173
    %1182 = vst.msk [vmem:[%s127 + $0x8] sm:$0xff] %vm55, %v1175
    %1183 = vst.msk [vmem:[%s127 + $0x10] sm:$0x3f] %vm113, %v1177
    %1184 = vrot.lane.b32.xlu0 %v1163, 126
    %v1185 = vpop.permute.xlu0 %1184
    %1186 = vrot.lane.b32.xlu0 %v1164, 126
    %v1187 = vpop.permute.xlu0 %1186
    %1188 = vrot.lane.b32.xlu0 %v1165, 126
    %v1189 = vpop.permute.xlu0 %1188
    %1193 = vst.msk [vmem:[%s140] sm:$0xff] %vm55, %v1185
    %1194 = vst.msk [vmem:[%s140 + $0x8] sm:$0xff] %vm55, %v1187
    %1195 = vst.msk [vmem:[%s140 + $0x10] sm:$0x3f] %vm113, %v1189
    %1196 = vrot.lane.b32.xlu0 %v1163, 125
    %v1197 = vpop.permute.xlu0 %1196
    %1198 = vrot.lane.b32.xlu0 %v1164, 125
    %v1199 = vpop.permute.xlu0 %1198
    %1200 = vrot.lane.b32.xlu0 %v1165, 125
    %v1201 = vpop.permute.xlu0 %1200
    %1205 = vst.msk [vmem:[%s153] sm:$0xff] %vm55, %v1197
    %1206 = vst.msk [vmem:[%s153 + $0x8] sm:$0xff] %vm55, %v1199
    %1207 = vst.msk [vmem:[%s153 + $0x10] sm:$0x3f] %vm113, %v1201
    %1208 = vrot.lane.b32.xlu0 %v1163, 124
    %v1209 = vpop.permute.xlu0 %1208
    %1210 = vrot.lane.b32.xlu0 %v1164, 124
    %v1211 = vpop.permute.xlu0 %1210
    %1212 = vrot.lane.b32.xlu0 %v1165, 124
    %v1213 = vpop.permute.xlu0 %1212
    %1217 = vst.msk [vmem:[%s166] sm:$0xff] %vm55, %v1209
    %1218 = vst.msk [vmem:[%s166 + $0x8] sm:$0xff] %vm55, %v1211
    %1219 = vst.msk [vmem:[%s166 + $0x10] sm:$0x3f] %vm113, %v1213
    %1220 = vrot.lane.b32.xlu0 %v1163, 123
    %v1221 = vpop.permute.xlu0 %1220
    %1222 = vrot.lane.b32.xlu0 %v1164, 123
    %v1223 = vpop.permute.xlu0 %1222
    %1224 = vrot.lane.b32.xlu0 %v1165, 123
    %v1225 = vpop.permute.xlu0 %1224
    %1229 = vst.msk [vmem:[%s179] sm:$0xff] %vm55, %v1221
    %1230 = vst.msk [vmem:[%s179 + $0x8] sm:$0xff] %vm55, %v1223
    %1231 = vst.msk [vmem:[%s179 + $0x10] sm:$0x3f] %vm113, %v1225
    %1232 = vrot.lane.b32.xlu0 %v1163, 122
    %v1233 = vpop.permute.xlu0 %1232
    %1234 = vrot.lane.b32.xlu0 %v1164, 122
    %v1235 = vpop.permute.xlu0 %1234
    %1236 = vrot.lane.b32.xlu0 %v1165, 122
    %v1237 = vpop.permute.xlu0 %1236
    %1241 = vst.msk [vmem:[%s192] sm:$0xff] %vm55, %v1233
    %1242 = vst.msk [vmem:[%s192 + $0x8] sm:$0xff] %vm55, %v1235
    %1243 = vst.msk [vmem:[%s192 + $0x10] sm:$0x3f] %vm113, %v1237
    %v1244 = vld [vmem:[%s105] sm:$0xff]
    %v1245 = vld [vmem:[%s105 + $0x8] sm:$0xff]
    %v1246 = vld [vmem:[%s105 + $0x10] sm:$0x3f]
    %1247 = vst.msk [vmem:[%s199] sm:$0xff] %vm55, %v1244
    %1248 = vst.msk [vmem:[%s199 + $0x8] sm:$0xff] %vm55, %v1245
    %1249 = vst.msk [vmem:[%s199 + $0x10] sm:$0x3f] %vm113, %v1246
    %1253 = vrot.lane.b32.xlu0 %v1244, 127
    %v1254 = vpop.permute.xlu0 %1253
    %1255 = vrot.lane.b32.xlu0 %v1245, 127
    %v1256 = vpop.permute.xlu0 %1255
    %1257 = vrot.lane.b32.xlu0 %v1246, 127
    %v1258 = vpop.permute.xlu0 %1257
    %1262 = vst.msk [vmem:[%s215] sm:$0xff] %vm55, %v1254
    %1263 = vst.msk [vmem:[%s215 + $0x8] sm:$0xff] %vm55, %v1256
    %1264 = vst.msk [vmem:[%s215 + $0x10] sm:$0x3f] %vm113, %v1258
    %1265 = vrot.lane.b32.xlu0 %v1244, 126
    %v1266 = vpop.permute.xlu0 %1265
    %1267 = vrot.lane.b32.xlu0 %v1245, 126
    %v1268 = vpop.permute.xlu0 %1267
    %1269 = vrot.lane.b32.xlu0 %v1246, 126
    %v1270 = vpop.permute.xlu0 %1269
    %1274 = vst.msk [vmem:[%s228] sm:$0xff] %vm55, %v1266
    %1275 = vst.msk [vmem:[%s228 + $0x8] sm:$0xff] %vm55, %v1268
    %1276 = vst.msk [vmem:[%s228 + $0x10] sm:$0x3f] %vm113, %v1270
    %1277 = vrot.lane.b32.xlu0 %v1244, 125
    %v1278 = vpop.permute.xlu0 %1277
    %1279 = vrot.lane.b32.xlu0 %v1245, 125
    %v1280 = vpop.permute.xlu0 %1279
    %1281 = vrot.lane.b32.xlu0 %v1246, 125
    %v1282 = vpop.permute.xlu0 %1281
    %1286 = vst.msk [vmem:[%s241] sm:$0xff] %vm55, %v1278
    %1287 = vst.msk [vmem:[%s241 + $0x8] sm:$0xff] %vm55, %v1280
    %1288 = vst.msk [vmem:[%s241 + $0x10] sm:$0x3f] %vm113, %v1282
    %1289 = vrot.lane.b32.xlu0 %v1244, 124
    %v1290 = vpop.permute.xlu0 %1289
    %1291 = vrot.lane.b32.xlu0 %v1245, 124
    %v1292 = vpop.permute.xlu0 %1291
    %1293 = vrot.lane.b32.xlu0 %v1246, 124
    %v1294 = vpop.permute.xlu0 %1293
    %1298 = vst.msk [vmem:[%s254] sm:$0xff] %vm55, %v1290
    %1299 = vst.msk [vmem:[%s254 + $0x8] sm:$0xff] %vm55, %v1292
    %1300 = vst.msk [vmem:[%s254 + $0x10] sm:$0x3f] %vm113, %v1294
    %1301 = vrot.lane.b32.xlu0 %v1244, 123
    %v1302 = vpop.permute.xlu0 %1301
    %1303 = vrot.lane.b32.xlu0 %v1245, 123
    %v1304 = vpop.permute.xlu0 %1303
    %1305 = vrot.lane.b32.xlu0 %v1246, 123
    %v1306 = vpop.permute.xlu0 %1305
    %1310 = vst.msk [vmem:[%s267] sm:$0xff] %vm55, %v1302
    %1311 = vst.msk [vmem:[%s267 + $0x8] sm:$0xff] %vm55, %v1304
    %1312 = vst.msk [vmem:[%s267 + $0x10] sm:$0x3f] %vm113, %v1306
    %1313 = vrot.lane.b32.xlu0 %v1244, 122
    %v1314 = vpop.permute.xlu0 %1313
    %1315 = vrot.lane.b32.xlu0 %v1245, 122
    %v1316 = vpop.permute.xlu0 %1315
    %1317 = vrot.lane.b32.xlu0 %v1246, 122
    %v1318 = vpop.permute.xlu0 %1317
    %1322 = vst.msk [vmem:[%s280] sm:$0xff] %vm55, %v1314
    %1323 = vst.msk [vmem:[%s280 + $0x8] sm:$0xff] %vm55, %v1316
    %1324 = vst.msk [vmem:[%s280 + $0x10] sm:$0x3f] %vm113, %v1318
    %s1325 = sld [smem:[#allocation8]]
    %v1326 = vld [vmem:[#allocation3] sm:$0xff]
    %v1327 = vld [vmem:[#allocation3 + $0x8] sm:$0xff]
    %v1328 = vstv %s1325
    %v1329 = vmul.f32 %v1328, %v1326
    %v1330 = vmul.f32 %v1328, %v1327
    %v1331 = vadd.f32 %v1329, 0.0
    %v1332 = vadd.f32 %v1330, 0.0
    %s1333 = sld [smem:[#allocation8 + $0x31]]
    %v1334 = vld [vmem:[%s199] sm:$0xff]
    %v1335 = vld [vmem:[%s199 + $0x8] sm:$0xff]
    %v1336 = vstv %s1333
    %v1337 = vmul.f32 %v1336, %v1334
    %v1338 = vmul.f32 %v1336, %v1335
    %v1339 = vadd.f32 %v1331, %v1337
    %v1340 = vadd.f32 %v1332, %v1338
    %s1341 = sld [smem:[#allocation8 + $0x1]]
    %v1342 = vld [vmem:[%s127] sm:$0xff]
    %v1343 = vld [vmem:[%s127 + $0x8] sm:$0xff]
    %v1344 = vstv %s1341
    %v1345 = vmul.f32 %v1344, %v1342
    %v1346 = vmul.f32 %v1344, %v1343
    %v1347 = vadd.f32 %v1339, %v1345
    %v1348 = vadd.f32 %v1340, %v1346
    %s1349 = sld [smem:[#allocation8 + $0x32]]
    %v1350 = vld [vmem:[%s215] sm:$0xff]
    %v1351 = vld [vmem:[%s215 + $0x8] sm:$0xff]
    %v1352 = vstv %s1349
    %v1353 = vmul.f32 %v1352, %v1350
    %v1354 = vmul.f32 %v1352, %v1351
    %v1355 = vadd.f32 %v1347, %v1353
    %v1356 = vadd.f32 %v1348, %v1354
    %s1357 = sld [smem:[#allocation8 + $0x2]]
    %v1358 = vld [vmem:[%s140] sm:$0xff]
    %v1359 = vld [vmem:[%s140 + $0x8] sm:$0xff]
    %v1360 = vstv %s1357
    %v1361 = vmul.f32 %v1360, %v1358
    %v1362 = vmul.f32 %v1360, %v1359
    %v1363 = vadd.f32 %v1355, %v1361
    %v1364 = vadd.f32 %v1356, %v1362
    %s1365 = sld [smem:[#allocation8 + $0x33]]
    %v1366 = vld [vmem:[%s228] sm:$0xff]
    %v1367 = vld [vmem:[%s228 + $0x8] sm:$0xff]
    %v1368 = vstv %s1365
    %v1369 = vmul.f32 %v1368, %v1366
    %v1370 = vmul.f32 %v1368, %v1367
    %v1371 = vadd.f32 %v1363, %v1369
    %v1372 = vadd.f32 %v1364, %v1370
    %s1373 = sld [smem:[#allocation8 + $0x3]]
    %v1374 = vld [vmem:[%s153] sm:$0xff]
    %v1375 = vld [vmem:[%s153 + $0x8] sm:$0xff]
    %v1376 = vstv %s1373
    %v1377 = vmul.f32 %v1376, %v1374
    %v1378 = vmul.f32 %v1376, %v1375
    %v1379 = vadd.f32 %v1371, %v1377
    %v1380 = vadd.f32 %v1372, %v1378
    %s1381 = sld [smem:[#allocation8 + $0x34]]
    %v1382 = vld [vmem:[%s241] sm:$0xff]
    %v1383 = vld [vmem:[%s241 + $0x8] sm:$0xff]
    %v1384 = vstv %s1381
    %v1385 = vmul.f32 %v1384, %v1382
    %v1386 = vmul.f32 %v1384, %v1383
    %v1387 = vadd.f32 %v1379, %v1385
    %v1388 = vadd.f32 %v1380, %v1386
    %s1389 = sld [smem:[#allocation8 + $0x4]]
    %v1390 = vld [vmem:[%s166] sm:$0xff]
    %v1391 = vld [vmem:[%s166 + $0x8] sm:$0xff]
    %v1392 = vstv %s1389
    %v1393 = vmul.f32 %v1392, %v1390
    %v1394 = vmul.f32 %v1392, %v1391
    %v1395 = vadd.f32 %v1387, %v1393
    %v1396 = vadd.f32 %v1388, %v1394
    %s1397 = sld [smem:[#allocation8 + $0x35]]
    %v1398 = vld [vmem:[%s254] sm:$0xff]
    %v1399 = vld [vmem:[%s254 + $0x8] sm:$0xff]
    %v1400 = vstv %s1397
    %v1401 = vmul.f32 %v1400, %v1398
    %v1402 = vmul.f32 %v1400, %v1399
    %v1403 = vadd.f32 %v1395, %v1401
    %v1404 = vadd.f32 %v1396, %v1402
    %s1405 = sld [smem:[#allocation8 + $0x5]]
    %v1406 = vld [vmem:[%s179] sm:$0xff]
    %v1407 = vld [vmem:[%s179 + $0x8] sm:$0xff]
    %v1408 = vstv %s1405
    %v1409 = vmul.f32 %v1408, %v1406
    %v1410 = vmul.f32 %v1408, %v1407
    %v1411 = vadd.f32 %v1403, %v1409
    %v1412 = vadd.f32 %v1404, %v1410
    %s1413 = sld [smem:[#allocation8 + $0x36]]
    %v1414 = vld [vmem:[%s267] sm:$0xff]
    %v1415 = vld [vmem:[%s267 + $0x8] sm:$0xff]
    %v1416 = vstv %s1413
    %v1417 = vmul.f32 %v1416, %v1414
    %v1418 = vmul.f32 %v1416, %v1415
    %v1419 = vadd.f32 %v1411, %v1417
    %v1420 = vadd.f32 %v1412, %v1418
    %s1421 = sld [smem:[#allocation8 + $0x6]]
    %v1422 = vld [vmem:[%s192] sm:$0xff]
    %v1423 = vld [vmem:[%s192 + $0x8] sm:$0xff]
    %v1424 = vstv %s1421
    %v1425 = vmul.f32 %v1424, %v1422
    %v1426 = vmul.f32 %v1424, %v1423
    %v1427 = vadd.f32 %v1419, %v1425
    %v1428 = vadd.f32 %v1420, %v1426
    %s1429 = sld [smem:[#allocation8 + $0x37]]
    %v1430 = vld [vmem:[%s280] sm:$0xff]
    %v1431 = vld [vmem:[%s280 + $0x8] sm:$0xff]
    %v1432 = vstv %s1429
    %v1433 = vmul.f32 %v1432, %v1430
    %v1434 = vmul.f32 %v1432, %v1431
    %v1435 = vadd.f32 %v1427, %v1433
    %v1436 = vadd.f32 %v1428, %v1434
    %s1437 = sld [smem:[#allocation8 + $0x7]]
    %v1438 = vld [vmem:[#allocation3 + $0x1] sm:$0xff]
    %v1439 = vld [vmem:[#allocation3 + $0x9] sm:$0xff]
    %v1440 = vstv %s1437
    %v1441 = vmul.f32 %v1440, %v1438
    %v1442 = vmul.f32 %v1440, %v1439
    %v1443 = vadd.f32 %v1435, %v1441
    %v1444 = vadd.f32 %v1436, %v1442
    %s1445 = sld [smem:[#allocation8 + $0x38]]
    %v1446 = vld [vmem:[%s199 + $0x1] sm:$0xff]
    %v1447 = vld [vmem:[%s199 + $0x9] sm:$0xff]
    %v1448 = vstv %s1445
    %v1449 = vmul.f32 %v1448, %v1446
    %v1450 = vmul.f32 %v1448, %v1447
    %v1451 = vadd.f32 %v1443, %v1449
    %v1452 = vadd.f32 %v1444, %v1450
    %s1453 = sld [smem:[#allocation8 + $0x8]]
    %v1454 = vld [vmem:[%s127 + $0x1] sm:$0xff]
    %v1455 = vld [vmem:[%s127 + $0x9] sm:$0xff]
    %v1456 = vstv %s1453
    %v1457 = vmul.f32 %v1456, %v1454
    %v1458 = vmul.f32 %v1456, %v1455
    %v1459 = vadd.f32 %v1451, %v1457
    %v1460 = vadd.f32 %v1452, %v1458
    %s1461 = sld [smem:[#allocation8 + $0x39]]
    %v1462 = vld [vmem:[%s215 + $0x1] sm:$0xff]
    %v1463 = vld [vmem:[%s215 + $0x9] sm:$0xff]
    %v1464 = vstv %s1461
    %v1465 = vmul.f32 %v1464, %v1462
    %v1466 = vmul.f32 %v1464, %v1463
    %v1467 = vadd.f32 %v1459, %v1465
    %v1468 = vadd.f32 %v1460, %v1466
    %s1469 = sld [smem:[#allocation8 + $0x9]]
    %v1470 = vld [vmem:[%s140 + $0x1] sm:$0xff]
    %v1471 = vld [vmem:[%s140 + $0x9] sm:$0xff]
    %v1472 = vstv %s1469
    %v1473 = vmul.f32 %v1472, %v1470
    %v1474 = vmul.f32 %v1472, %v1471
    %v1475 = vadd.f32 %v1467, %v1473
    %v1476 = vadd.f32 %v1468, %v1474
    %s1477 = sld [smem:[#allocation8 + $0x3a]]
    %v1478 = vld [vmem:[%s228 + $0x1] sm:$0xff]
    %v1479 = vld [vmem:[%s228 + $0x9] sm:$0xff]
    %v1480 = vstv %s1477
    %v1481 = vmul.f32 %v1480, %v1478
    %v1482 = vmul.f32 %v1480, %v1479
    %v1483 = vadd.f32 %v1475, %v1481
    %v1484 = vadd.f32 %v1476, %v1482
    %s1485 = sld [smem:[#allocation8 + $0xa]]
    %v1486 = vld [vmem:[%s153 + $0x1] sm:$0xff]
    %v1487 = vld [vmem:[%s153 + $0x9] sm:$0xff]
    %v1488 = vstv %s1485
    %v1489 = vmul.f32 %v1488, %v1486
    %v1490 = vmul.f32 %v1488, %v1487
    %v1491 = vadd.f32 %v1483, %v1489
    %v1492 = vadd.f32 %v1484, %v1490
    %s1493 = sld [smem:[#allocation8 + $0x3b]]
    %v1494 = vld [vmem:[%s241 + $0x1] sm:$0xff]
    %v1495 = vld [vmem:[%s241 + $0x9] sm:$0xff]
    %v1496 = vstv %s1493
    %v1497 = vmul.f32 %v1496, %v1494
    %v1498 = vmul.f32 %v1496, %v1495
    %v1499 = vadd.f32 %v1491, %v1497
    %v1500 = vadd.f32 %v1492, %v1498
    %s1501 = sld [smem:[#allocation8 + $0xb]]
    %v1502 = vld [vmem:[%s166 + $0x1] sm:$0xff]
    %v1503 = vld [vmem:[%s166 + $0x9] sm:$0xff]
    %v1504 = vstv %s1501
    %v1505 = vmul.f32 %v1504, %v1502
    %v1506 = vmul.f32 %v1504, %v1503
    %v1507 = vadd.f32 %v1499, %v1505
    %v1508 = vadd.f32 %v1500, %v1506
    %s1509 = sld [smem:[#allocation8 + $0x3c]]
    %v1510 = vld [vmem:[%s254 + $0x1] sm:$0xff]
    %v1511 = vld [vmem:[%s254 + $0x9] sm:$0xff]
    %v1512 = vstv %s1509
    %v1513 = vmul.f32 %v1512, %v1510
    %v1514 = vmul.f32 %v1512, %v1511
    %v1515 = vadd.f32 %v1507, %v1513
    %v1516 = vadd.f32 %v1508, %v1514
    %s1517 = sld [smem:[#allocation8 + $0xc]]
    %v1518 = vld [vmem:[%s179 + $0x1] sm:$0xff]
    %v1519 = vld [vmem:[%s179 + $0x9] sm:$0xff]
    %v1520 = vstv %s1517
    %v1521 = vmul.f32 %v1520, %v1518
    %v1522 = vmul.f32 %v1520, %v1519
    %v1523 = vadd.f32 %v1515, %v1521
    %v1524 = vadd.f32 %v1516, %v1522
    %s1525 = sld [smem:[#allocation8 + $0x3d]]
    %v1526 = vld [vmem:[%s267 + $0x1] sm:$0xff]
    %v1527 = vld [vmem:[%s267 + $0x9] sm:$0xff]
    %v1528 = vstv %s1525
    %v1529 = vmul.f32 %v1528, %v1526
    %v1530 = vmul.f32 %v1528, %v1527
    %v1531 = vadd.f32 %v1523, %v1529
    %v1532 = vadd.f32 %v1524, %v1530
    %s1533 = sld [smem:[#allocation8 + $0xd]]
    %v1534 = vld [vmem:[%s192 + $0x1] sm:$0xff]
    %v1535 = vld [vmem:[%s192 + $0x9] sm:$0xff]
    %v1536 = vstv %s1533
    %v1537 = vmul.f32 %v1536, %v1534
    %v1538 = vmul.f32 %v1536, %v1535
    %v1539 = vadd.f32 %v1531, %v1537
    %v1540 = vadd.f32 %v1532, %v1538
    %s1541 = sld [smem:[#allocation8 + $0x3e]]
    %v1542 = vld [vmem:[%s280 + $0x1] sm:$0xff]
    %v1543 = vld [vmem:[%s280 + $0x9] sm:$0xff]
    %v1544 = vstv %s1541
    %v1545 = vmul.f32 %v1544, %v1542
    %v1546 = vmul.f32 %v1544, %v1543
    %v1547 = vadd.f32 %v1539, %v1545
    %v1548 = vadd.f32 %v1540, %v1546
    %s1549 = sld [smem:[#allocation8 + $0xe]]
    %v1550 = vld [vmem:[#allocation3 + $0x2] sm:$0xff]
    %v1551 = vld [vmem:[#allocation3 + $0xa] sm:$0xff]
    %v1552 = vstv %s1549
    %v1553 = vmul.f32 %v1552, %v1550
    %v1554 = vmul.f32 %v1552, %v1551
    %v1555 = vadd.f32 %v1547, %v1553
    %v1556 = vadd.f32 %v1548, %v1554
    %s1557 = sld [smem:[#allocation8 + $0x3f]]
    %v1558 = vld [vmem:[%s199 + $0x2] sm:$0xff]
    %v1559 = vld [vmem:[%s199 + $0xa] sm:$0xff]
    %v1560 = vstv %s1557
    %v1561 = vmul.f32 %v1560, %v1558
    %v1562 = vmul.f32 %v1560, %v1559
    %v1563 = vadd.f32 %v1555, %v1561
    %v1564 = vadd.f32 %v1556, %v1562
    %s1565 = sld [smem:[#allocation8 + $0xf]]
    %v1566 = vld [vmem:[%s127 + $0x2] sm:$0xff]
    %v1567 = vld [vmem:[%s127 + $0xa] sm:$0xff]
    %v1568 = vstv %s1565
    %v1569 = vmul.f32 %v1568, %v1566
    %v1570 = vmul.f32 %v1568, %v1567
    %v1571 = vadd.f32 %v1563, %v1569
    %v1572 = vadd.f32 %v1564, %v1570
    %s1573 = sld [smem:[#allocation8 + $0x40]]
    %v1574 = vld [vmem:[%s215 + $0x2] sm:$0xff]
    %v1575 = vld [vmem:[%s215 + $0xa] sm:$0xff]
    %v1576 = vstv %s1573
    %v1577 = vmul.f32 %v1576, %v1574
    %v1578 = vmul.f32 %v1576, %v1575
    %v1579 = vadd.f32 %v1571, %v1577
    %v1580 = vadd.f32 %v1572, %v1578
    %s1581 = sld [smem:[#allocation8 + $0x10]]
    %v1582 = vld [vmem:[%s140 + $0x2] sm:$0xff]
    %v1583 = vld [vmem:[%s140 + $0xa] sm:$0xff]
    %v1584 = vstv %s1581
    %v1585 = vmul.f32 %v1584, %v1582
    %v1586 = vmul.f32 %v1584, %v1583
    %v1587 = vadd.f32 %v1579, %v1585
    %v1588 = vadd.f32 %v1580, %v1586
    %s1589 = sld [smem:[#allocation8 + $0x41]]
    %v1590 = vld [vmem:[%s228 + $0x2] sm:$0xff]
    %v1591 = vld [vmem:[%s228 + $0xa] sm:$0xff]
    %v1592 = vstv %s1589
    %v1593 = vmul.f32 %v1592, %v1590
    %v1594 = vmul.f32 %v1592, %v1591
    %v1595 = vadd.f32 %v1587, %v1593
    %v1596 = vadd.f32 %v1588, %v1594
    %s1597 = sld [smem:[#allocation8 + $0x11]]
    %v1598 = vld [vmem:[%s153 + $0x2] sm:$0xff]
    %v1599 = vld [vmem:[%s153 + $0xa] sm:$0xff]
    %v1600 = vstv %s1597
    %v1601 = vmul.f32 %v1600, %v1598
    %v1602 = vmul.f32 %v1600, %v1599
    %v1603 = vadd.f32 %v1595, %v1601
    %v1604 = vadd.f32 %v1596, %v1602
    %s1605 = sld [smem:[#allocation8 + $0x42]]
    %v1606 = vld [vmem:[%s241 + $0x2] sm:$0xff]
    %v1607 = vld [vmem:[%s241 + $0xa] sm:$0xff]
    %v1608 = vstv %s1605
    %v1609 = vmul.f32 %v1608, %v1606
    %v1610 = vmul.f32 %v1608, %v1607
    %v1611 = vadd.f32 %v1603, %v1609
    %v1612 = vadd.f32 %v1604, %v1610
    %s1613 = sld [smem:[#allocation8 + $0x12]]
    %v1614 = vld [vmem:[%s166 + $0x2] sm:$0xff]
    %v1615 = vld [vmem:[%s166 + $0xa] sm:$0xff]
    %v1616 = vstv %s1613
    %v1617 = vmul.f32 %v1616, %v1614
    %v1618 = vmul.f32 %v1616, %v1615
    %v1619 = vadd.f32 %v1611, %v1617
    %v1620 = vadd.f32 %v1612, %v1618
    %s1621 = sld [smem:[#allocation8 + $0x43]]
    %v1622 = vld [vmem:[%s254 + $0x2] sm:$0xff]
    %v1623 = vld [vmem:[%s254 + $0xa] sm:$0xff]
    %v1624 = vstv %s1621
    %v1625 = vmul.f32 %v1624, %v1622
    %v1626 = vmul.f32 %v1624, %v1623
    %v1627 = vadd.f32 %v1619, %v1625
    %v1628 = vadd.f32 %v1620, %v1626
    %s1629 = sld [smem:[#allocation8 + $0x13]]
    %v1630 = vld [vmem:[%s179 + $0x2] sm:$0xff]
    %v1631 = vld [vmem:[%s179 + $0xa] sm:$0xff]
    %v1632 = vstv %s1629
    %v1633 = vmul.f32 %v1632, %v1630
    %v1634 = vmul.f32 %v1632, %v1631
    %v1635 = vadd.f32 %v1627, %v1633
    %v1636 = vadd.f32 %v1628, %v1634
    %s1637 = sld [smem:[#allocation8 + $0x44]]
    %v1638 = vld [vmem:[%s267 + $0x2] sm:$0xff]
    %v1639 = vld [vmem:[%s267 + $0xa] sm:$0xff]
    %v1640 = vstv %s1637
    %v1641 = vmul.f32 %v1640, %v1638
    %v1642 = vmul.f32 %v1640, %v1639
    %v1643 = vadd.f32 %v1635, %v1641
    %v1644 = vadd.f32 %v1636, %v1642
    %s1645 = sld [smem:[#allocation8 + $0x14]]
    %v1646 = vld [vmem:[%s192 + $0x2] sm:$0xff]
    %v1647 = vld [vmem:[%s192 + $0xa] sm:$0xff]
    %v1648 = vstv %s1645
    %v1649 = vmul.f32 %v1648, %v1646
    %v1650 = vmul.f32 %v1648, %v1647
    %v1651 = vadd.f32 %v1643, %v1649
    %v1652 = vadd.f32 %v1644, %v1650
    %s1653 = sld [smem:[#allocation8 + $0x45]]
    %v1654 = vld [vmem:[%s280 + $0x2] sm:$0xff]
    %v1655 = vld [vmem:[%s280 + $0xa] sm:$0xff]
    %v1656 = vstv %s1653
    %v1657 = vmul.f32 %v1656, %v1654
    %v1658 = vmul.f32 %v1656, %v1655
    %v1659 = vadd.f32 %v1651, %v1657
    %v1660 = vadd.f32 %v1652, %v1658
    %s1661 = sld [smem:[#allocation8 + $0x15]]
    %v1662 = vld [vmem:[#allocation3 + $0x3] sm:$0xff]
    %v1663 = vld [vmem:[#allocation3 + $0xb] sm:$0xff]
    %v1664 = vstv %s1661
    %v1665 = vmul.f32 %v1664, %v1662
    %v1666 = vmul.f32 %v1664, %v1663
    %v1667 = vadd.f32 %v1659, %v1665
    %v1668 = vadd.f32 %v1660, %v1666
    %s1669 = sld [smem:[#allocation8 + $0x46]]
    %v1670 = vld [vmem:[%s199 + $0x3] sm:$0xff]
    %v1671 = vld [vmem:[%s199 + $0xb] sm:$0xff]
    %v1672 = vstv %s1669
    %v1673 = vmul.f32 %v1672, %v1670
    %v1674 = vmul.f32 %v1672, %v1671
    %v1675 = vadd.f32 %v1667, %v1673
    %v1676 = vadd.f32 %v1668, %v1674
    %s1677 = sld [smem:[#allocation8 + $0x16]]
    %v1678 = vld [vmem:[%s127 + $0x3] sm:$0xff]
    %v1679 = vld [vmem:[%s127 + $0xb] sm:$0xff]
    %v1680 = vstv %s1677
    %v1681 = vmul.f32 %v1680, %v1678
    %v1682 = vmul.f32 %v1680, %v1679
    %v1683 = vadd.f32 %v1675, %v1681
    %v1684 = vadd.f32 %v1676, %v1682
    %s1685 = sld [smem:[#allocation8 + $0x47]]
    %v1686 = vld [vmem:[%s215 + $0x3] sm:$0xff]
    %v1687 = vld [vmem:[%s215 + $0xb] sm:$0xff]
    %v1688 = vstv %s1685
    %v1689 = vmul.f32 %v1688, %v1686
    %v1690 = vmul.f32 %v1688, %v1687
    %v1691 = vadd.f32 %v1683, %v1689
    %v1692 = vadd.f32 %v1684, %v1690
    %s1693 = sld [smem:[#allocation8 + $0x17]]
    %v1694 = vld [vmem:[%s140 + $0x3] sm:$0xff]
    %v1695 = vld [vmem:[%s140 + $0xb] sm:$0xff]
    %v1696 = vstv %s1693
    %v1697 = vmul.f32 %v1696, %v1694
    %v1698 = vmul.f32 %v1696, %v1695
    %v1699 = vadd.f32 %v1691, %v1697
    %v1700 = vadd.f32 %v1692, %v1698
    %s1701 = sld [smem:[#allocation8 + $0x48]]
    %v1702 = vld [vmem:[%s228 + $0x3] sm:$0xff]
    %v1703 = vld [vmem:[%s228 + $0xb] sm:$0xff]
    %v1704 = vstv %s1701
    %v1705 = vmul.f32 %v1704, %v1702
    %v1706 = vmul.f32 %v1704, %v1703
    %v1707 = vadd.f32 %v1699, %v1705
    %v1708 = vadd.f32 %v1700, %v1706
    %s1709 = sld [smem:[#allocation8 + $0x18]]
    %v1710 = vld [vmem:[%s153 + $0x3] sm:$0xff]
    %v1711 = vld [vmem:[%s153 + $0xb] sm:$0xff]
    %v1712 = vstv %s1709
    %v1713 = vmul.f32 %v1712, %v1710
    %v1714 = vmul.f32 %v1712, %v1711
    %v1715 = vadd.f32 %v1707, %v1713
    %v1716 = vadd.f32 %v1708, %v1714
    %s1717 = sld [smem:[#allocation8 + $0x49]]
    %v1718 = vld [vmem:[%s241 + $0x3] sm:$0xff]
    %v1719 = vld [vmem:[%s241 + $0xb] sm:$0xff]
    %v1720 = vstv %s1717
    %v1721 = vmul.f32 %v1720, %v1718
    %v1722 = vmul.f32 %v1720, %v1719
    %v1723 = vadd.f32 %v1715, %v1721
    %v1724 = vadd.f32 %v1716, %v1722
    %s1725 = sld [smem:[#allocation8 + $0x19]]
    %v1726 = vld [vmem:[%s166 + $0x3] sm:$0xff]
    %v1727 = vld [vmem:[%s166 + $0xb] sm:$0xff]
    %v1728 = vstv %s1725
    %v1729 = vmul.f32 %v1728, %v1726
    %v1730 = vmul.f32 %v1728, %v1727
    %v1731 = vadd.f32 %v1723, %v1729
    %v1732 = vadd.f32 %v1724, %v1730
    %s1733 = sld [smem:[#allocation8 + $0x4a]]
    %v1734 = vld [vmem:[%s254 + $0x3] sm:$0xff]
    %v1735 = vld [vmem:[%s254 + $0xb] sm:$0xff]
    %v1736 = vstv %s1733
    %v1737 = vmul.f32 %v1736, %v1734
    %v1738 = vmul.f32 %v1736, %v1735
    %v1739 = vadd.f32 %v1731, %v1737
    %v1740 = vadd.f32 %v1732, %v1738
    %s1741 = sld [smem:[#allocation8 + $0x1a]]
    %v1742 = vld [vmem:[%s179 + $0x3] sm:$0xff]
    %v1743 = vld [vmem:[%s179 + $0xb] sm:$0xff]
    %v1744 = vstv %s1741
    %v1745 = vmul.f32 %v1744, %v1742
    %v1746 = vmul.f32 %v1744, %v1743
    %v1747 = vadd.f32 %v1739, %v1745
    %v1748 = vadd.f32 %v1740, %v1746
    %s1749 = sld [smem:[#allocation8 + $0x4b]]
    %v1750 = vld [vmem:[%s267 + $0x3] sm:$0xff]
    %v1751 = vld [vmem:[%s267 + $0xb] sm:$0xff]
    %v1752 = vstv %s1749
    %v1753 = vmul.f32 %v1752, %v1750
    %v1754 = vmul.f32 %v1752, %v1751
    %v1755 = vadd.f32 %v1747, %v1753
    %v1756 = vadd.f32 %v1748, %v1754
    %s1757 = sld [smem:[#allocation8 + $0x1b]]
    %v1758 = vld [vmem:[%s192 + $0x3] sm:$0xff]
    %v1759 = vld [vmem:[%s192 + $0xb] sm:$0xff]
    %v1760 = vstv %s1757
    %v1761 = vmul.f32 %v1760, %v1758
    %v1762 = vmul.f32 %v1760, %v1759
    %v1763 = vadd.f32 %v1755, %v1761
    %v1764 = vadd.f32 %v1756, %v1762
    %s1765 = sld [smem:[#allocation8 + $0x4c]]
    %v1766 = vld [vmem:[%s280 + $0x3] sm:$0xff]
    %v1767 = vld [vmem:[%s280 + $0xb] sm:$0xff]
    %v1768 = vstv %s1765
    %v1769 = vmul.f32 %v1768, %v1766
    %v1770 = vmul.f32 %v1768, %v1767
    %v1771 = vadd.f32 %v1763, %v1769
    %v1772 = vadd.f32 %v1764, %v1770
    %s1773 = sld [smem:[#allocation8 + $0x1c]]
    %v1774 = vld [vmem:[#allocation3 + $0x4] sm:$0xff]
    %v1775 = vld [vmem:[#allocation3 + $0xc] sm:$0xff]
    %v1776 = vstv %s1773
    %v1777 = vmul.f32 %v1776, %v1774
    %v1778 = vmul.f32 %v1776, %v1775
    %v1779 = vadd.f32 %v1771, %v1777
    %v1780 = vadd.f32 %v1772, %v1778
    %s1781 = sld [smem:[#allocation8 + $0x4d]]
    %v1782 = vld [vmem:[%s199 + $0x4] sm:$0xff]
    %v1783 = vld [vmem:[%s199 + $0xc] sm:$0xff]
    %v1784 = vstv %s1781
    %v1785 = vmul.f32 %v1784, %v1782
    %v1786 = vmul.f32 %v1784, %v1783
    %v1787 = vadd.f32 %v1779, %v1785
    %v1788 = vadd.f32 %v1780, %v1786
    %s1789 = sld [smem:[#allocation8 + $0x1d]]
    %v1790 = vld [vmem:[%s127 + $0x4] sm:$0xff]
    %v1791 = vld [vmem:[%s127 + $0xc] sm:$0xff]
    %v1792 = vstv %s1789
    %v1793 = vmul.f32 %v1792, %v1790
    %v1794 = vmul.f32 %v1792, %v1791
    %v1795 = vadd.f32 %v1787, %v1793
    %v1796 = vadd.f32 %v1788, %v1794
    %s1797 = sld [smem:[#allocation8 + $0x4e]]
    %v1798 = vld [vmem:[%s215 + $0x4] sm:$0xff]
    %v1799 = vld [vmem:[%s215 + $0xc] sm:$0xff]
    %v1800 = vstv %s1797
    %v1801 = vmul.f32 %v1800, %v1798
    %v1802 = vmul.f32 %v1800, %v1799
    %v1803 = vadd.f32 %v1795, %v1801
    %v1804 = vadd.f32 %v1796, %v1802
    %s1805 = sld [smem:[#allocation8 + $0x1e]]
    %v1806 = vld [vmem:[%s140 + $0x4] sm:$0xff]
    %v1807 = vld [vmem:[%s140 + $0xc] sm:$0xff]
    %v1808 = vstv %s1805
    %v1809 = vmul.f32 %v1808, %v1806
    %v1810 = vmul.f32 %v1808, %v1807
    %v1811 = vadd.f32 %v1803, %v1809
    %v1812 = vadd.f32 %v1804, %v1810
    %s1813 = sld [smem:[#allocation8 + $0x4f]]
    %v1814 = vld [vmem:[%s228 + $0x4] sm:$0xff]
    %v1815 = vld [vmem:[%s228 + $0xc] sm:$0xff]
    %v1816 = vstv %s1813
    %v1817 = vmul.f32 %v1816, %v1814
    %v1818 = vmul.f32 %v1816, %v1815
    %v1819 = vadd.f32 %v1811, %v1817
    %v1820 = vadd.f32 %v1812, %v1818
    %s1821 = sld [smem:[#allocation8 + $0x1f]]
    %v1822 = vld [vmem:[%s153 + $0x4] sm:$0xff]
    %v1823 = vld [vmem:[%s153 + $0xc] sm:$0xff]
    %v1824 = vstv %s1821
    %v1825 = vmul.f32 %v1824, %v1822
    %v1826 = vmul.f32 %v1824, %v1823
    %v1827 = vadd.f32 %v1819, %v1825
    %v1828 = vadd.f32 %v1820, %v1826
    %s1829 = sld [smem:[#allocation8 + $0x50]]
    %v1830 = vld [vmem:[%s241 + $0x4] sm:$0xff]
    %v1831 = vld [vmem:[%s241 + $0xc] sm:$0xff]
    %v1832 = vstv %s1829
    %v1833 = vmul.f32 %v1832, %v1830
    %v1834 = vmul.f32 %v1832, %v1831
    %v1835 = vadd.f32 %v1827, %v1833
    %v1836 = vadd.f32 %v1828, %v1834
    %s1837 = sld [smem:[#allocation8 + $0x20]]
    %v1838 = vld [vmem:[%s166 + $0x4] sm:$0xff]
    %v1839 = vld [vmem:[%s166 + $0xc] sm:$0xff]
    %v1840 = vstv %s1837
    %v1841 = vmul.f32 %v1840, %v1838
    %v1842 = vmul.f32 %v1840, %v1839
    %v1843 = vadd.f32 %v1835, %v1841
    %v1844 = vadd.f32 %v1836, %v1842
    %s1845 = sld [smem:[#allocation8 + $0x51]]
    %v1846 = vld [vmem:[%s254 + $0x4] sm:$0xff]
    %v1847 = vld [vmem:[%s254 + $0xc] sm:$0xff]
    %v1848 = vstv %s1845
    %v1849 = vmul.f32 %v1848, %v1846
    %v1850 = vmul.f32 %v1848, %v1847
    %v1851 = vadd.f32 %v1843, %v1849
    %v1852 = vadd.f32 %v1844, %v1850
    %s1853 = sld [smem:[#allocation8 + $0x21]]
    %v1854 = vld [vmem:[%s179 + $0x4] sm:$0xff]
    %v1855 = vld [vmem:[%s179 + $0xc] sm:$0xff]
    %v1856 = vstv %s1853
    %v1857 = vmul.f32 %v1856, %v1854
    %v1858 = vmul.f32 %v1856, %v1855
    %v1859 = vadd.f32 %v1851, %v1857
    %v1860 = vadd.f32 %v1852, %v1858
    %s1861 = sld [smem:[#allocation8 + $0x52]]
    %v1862 = vld [vmem:[%s267 + $0x4] sm:$0xff]
    %v1863 = vld [vmem:[%s267 + $0xc] sm:$0xff]
    %v1864 = vstv %s1861
    %v1865 = vmul.f32 %v1864, %v1862
    %v1866 = vmul.f32 %v1864, %v1863
    %v1867 = vadd.f32 %v1859, %v1865
    %v1868 = vadd.f32 %v1860, %v1866
    %s1869 = sld [smem:[#allocation8 + $0x22]]
    %v1870 = vld [vmem:[%s192 + $0x4] sm:$0xff]
    %v1871 = vld [vmem:[%s192 + $0xc] sm:$0xff]
    %v1872 = vstv %s1869
    %v1873 = vmul.f32 %v1872, %v1870
    %v1874 = vmul.f32 %v1872, %v1871
    %v1875 = vadd.f32 %v1867, %v1873
    %v1876 = vadd.f32 %v1868, %v1874
    %s1877 = sld [smem:[#allocation8 + $0x53]]
    %v1878 = vld [vmem:[%s280 + $0x4] sm:$0xff]
    %v1879 = vld [vmem:[%s280 + $0xc] sm:$0xff]
    %v1880 = vstv %s1877
    %v1881 = vmul.f32 %v1880, %v1878
    %v1882 = vmul.f32 %v1880, %v1879
    %v1883 = vadd.f32 %v1875, %v1881
    %v1884 = vadd.f32 %v1876, %v1882
    %s1885 = sld [smem:[#allocation8 + $0x23]]
    %v1886 = vld [vmem:[#allocation3 + $0x5] sm:$0xff]
    %v1887 = vld [vmem:[#allocation3 + $0xd] sm:$0xff]
    %v1888 = vstv %s1885
    %v1889 = vmul.f32 %v1888, %v1886
    %v1890 = vmul.f32 %v1888, %v1887
    %v1891 = vadd.f32 %v1883, %v1889
    %v1892 = vadd.f32 %v1884, %v1890
    %s1893 = sld [smem:[#allocation8 + $0x54]]
    %v1894 = vld [vmem:[%s199 + $0x5] sm:$0xff]
    %v1895 = vld [vmem:[%s199 + $0xd] sm:$0xff]
    %v1896 = vstv %s1893
    %v1897 = vmul.f32 %v1896, %v1894
    %v1898 = vmul.f32 %v1896, %v1895
    %v1899 = vadd.f32 %v1891, %v1897
    %v1900 = vadd.f32 %v1892, %v1898
    %s1901 = sld [smem:[#allocation8 + $0x24]]
    %v1902 = vld [vmem:[%s127 + $0x5] sm:$0xff]
    %v1903 = vld [vmem:[%s127 + $0xd] sm:$0xff]
    %v1904 = vstv %s1901
    %v1905 = vmul.f32 %v1904, %v1902
    %v1906 = vmul.f32 %v1904, %v1903
    %v1907 = vadd.f32 %v1899, %v1905
    %v1908 = vadd.f32 %v1900, %v1906
    %s1909 = sld [smem:[#allocation8 + $0x55]]
    %v1910 = vld [vmem:[%s215 + $0x5] sm:$0xff]
    %v1911 = vld [vmem:[%s215 + $0xd] sm:$0xff]
    %v1912 = vstv %s1909
    %v1913 = vmul.f32 %v1912, %v1910
    %v1914 = vmul.f32 %v1912, %v1911
    %v1915 = vadd.f32 %v1907, %v1913
    %v1916 = vadd.f32 %v1908, %v1914
    %s1917 = sld [smem:[#allocation8 + $0x25]]
    %v1918 = vld [vmem:[%s140 + $0x5] sm:$0xff]
    %v1919 = vld [vmem:[%s140 + $0xd] sm:$0xff]
    %v1920 = vstv %s1917
    %v1921 = vmul.f32 %v1920, %v1918
    %v1922 = vmul.f32 %v1920, %v1919
    %v1923 = vadd.f32 %v1915, %v1921
    %v1924 = vadd.f32 %v1916, %v1922
    %s1925 = sld [smem:[#allocation8 + $0x56]]
    %v1926 = vld [vmem:[%s228 + $0x5] sm:$0xff]
    %v1927 = vld [vmem:[%s228 + $0xd] sm:$0xff]
    %v1928 = vstv %s1925
    %v1929 = vmul.f32 %v1928, %v1926
    %v1930 = vmul.f32 %v1928, %v1927
    %v1931 = vadd.f32 %v1923, %v1929
    %v1932 = vadd.f32 %v1924, %v1930
    %s1933 = sld [smem:[#allocation8 + $0x26]]
    %v1934 = vld [vmem:[%s153 + $0x5] sm:$0xff]
    %v1935 = vld [vmem:[%s153 + $0xd] sm:$0xff]
    %v1936 = vstv %s1933
    %v1937 = vmul.f32 %v1936, %v1934
    %v1938 = vmul.f32 %v1936, %v1935
    %v1939 = vadd.f32 %v1931, %v1937
    %v1940 = vadd.f32 %v1932, %v1938
    %s1941 = sld [smem:[#allocation8 + $0x57]]
    %v1942 = vld [vmem:[%s241 + $0x5] sm:$0xff]
    %v1943 = vld [vmem:[%s241 + $0xd] sm:$0xff]
    %v1944 = vstv %s1941
    %v1945 = vmul.f32 %v1944, %v1942
    %v1946 = vmul.f32 %v1944, %v1943
    %v1947 = vadd.f32 %v1939, %v1945
    %v1948 = vadd.f32 %v1940, %v1946
    %s1949 = sld [smem:[#allocation8 + $0x27]]
    %v1950 = vld [vmem:[%s166 + $0x5] sm:$0xff]
    %v1951 = vld [vmem:[%s166 + $0xd] sm:$0xff]
    %v1952 = vstv %s1949
    %v1953 = vmul.f32 %v1952, %v1950
    %v1954 = vmul.f32 %v1952, %v1951
    %v1955 = vadd.f32 %v1947, %v1953
    %v1956 = vadd.f32 %v1948, %v1954
    %s1957 = sld [smem:[#allocation8 + $0x58]]
    %v1958 = vld [vmem:[%s254 + $0x5] sm:$0xff]
    %v1959 = vld [vmem:[%s254 + $0xd] sm:$0xff]
    %v1960 = vstv %s1957
    %v1961 = vmul.f32 %v1960, %v1958
    %v1962 = vmul.f32 %v1960, %v1959
    %v1963 = vadd.f32 %v1955, %v1961
    %v1964 = vadd.f32 %v1956, %v1962
    %s1965 = sld [smem:[#allocation8 + $0x28]]
    %v1966 = vld [vmem:[%s179 + $0x5] sm:$0xff]
    %v1967 = vld [vmem:[%s179 + $0xd] sm:$0xff]
    %v1968 = vstv %s1965
    %v1969 = vmul.f32 %v1968, %v1966
    %v1970 = vmul.f32 %v1968, %v1967
    %v1971 = vadd.f32 %v1963, %v1969
    %v1972 = vadd.f32 %v1964, %v1970
    %s1973 = sld [smem:[#allocation8 + $0x59]]
    %v1974 = vld [vmem:[%s267 + $0x5] sm:$0xff]
    %v1975 = vld [vmem:[%s267 + $0xd] sm:$0xff]
    %v1976 = vstv %s1973
    %v1977 = vmul.f32 %v1976, %v1974
    %v1978 = vmul.f32 %v1976, %v1975
    %v1979 = vadd.f32 %v1971, %v1977
    %v1980 = vadd.f32 %v1972, %v1978
    %s1981 = sld [smem:[#allocation8 + $0x29]]
    %v1982 = vld [vmem:[%s192 + $0x5] sm:$0xff]
    %v1983 = vld [vmem:[%s192 + $0xd] sm:$0xff]
    %v1984 = vstv %s1981
    %v1985 = vmul.f32 %v1984, %v1982
    %v1986 = vmul.f32 %v1984, %v1983
    %v1987 = vadd.f32 %v1979, %v1985
    %v1988 = vadd.f32 %v1980, %v1986
    %s1989 = sld [smem:[#allocation8 + $0x5a]]
    %v1990 = vld [vmem:[%s280 + $0x5] sm:$0xff]
    %v1991 = vld [vmem:[%s280 + $0xd] sm:$0xff]
    %v1992 = vstv %s1989
    %v1993 = vmul.f32 %v1992, %v1990
    %v1994 = vmul.f32 %v1992, %v1991
    %v1995 = vadd.f32 %v1987, %v1993
    %v1996 = vadd.f32 %v1988, %v1994
    %s1997 = sld [smem:[#allocation8 + $0x2a]]
    %v1998 = vld [vmem:[#allocation3 + $0x6] sm:$0xff]
    %v1999 = vld [vmem:[#allocation3 + $0xe] sm:$0xff]
    %v2000 = vstv %s1997
    %v2001 = vmul.f32 %v2000, %v1998
    %v2002 = vmul.f32 %v2000, %v1999
    %v2003 = vadd.f32 %v1995, %v2001
    %v2004 = vadd.f32 %v1996, %v2002
    %s2005 = sld [smem:[#allocation8 + $0x5b]]
    %v2006 = vld [vmem:[%s199 + $0x6] sm:$0xff]
    %v2007 = vld [vmem:[%s199 + $0xe] sm:$0xff]
    %v2008 = vstv %s2005
    %v2009 = vmul.f32 %v2008, %v2006
    %v2010 = vmul.f32 %v2008, %v2007
    %v2011 = vadd.f32 %v2003, %v2009
    %v2012 = vadd.f32 %v2004, %v2010
    %s2013 = sld [smem:[#allocation8 + $0x2b]]
    %v2014 = vld [vmem:[%s127 + $0x6] sm:$0xff]
    %v2015 = vld [vmem:[%s127 + $0xe] sm:$0xff]
    %v2016 = vstv %s2013
    %v2017 = vmul.f32 %v2016, %v2014
    %v2018 = vmul.f32 %v2016, %v2015
    %v2019 = vadd.f32 %v2011, %v2017
    %v2020 = vadd.f32 %v2012, %v2018
    %s2021 = sld [smem:[#allocation8 + $0x5c]]
    %v2022 = vld [vmem:[%s215 + $0x6] sm:$0xff]
    %v2023 = vld [vmem:[%s215 + $0xe] sm:$0xff]
    %v2024 = vstv %s2021
    %v2025 = vmul.f32 %v2024, %v2022
    %v2026 = vmul.f32 %v2024, %v2023
    %v2027 = vadd.f32 %v2019, %v2025
    %v2028 = vadd.f32 %v2020, %v2026
    %s2029 = sld [smem:[#allocation8 + $0x2c]]
    %v2030 = vld [vmem:[%s140 + $0x6] sm:$0xff]
    %v2031 = vld [vmem:[%s140 + $0xe] sm:$0xff]
    %v2032 = vstv %s2029
    %v2033 = vmul.f32 %v2032, %v2030
    %v2034 = vmul.f32 %v2032, %v2031
    %v2035 = vadd.f32 %v2027, %v2033
    %v2036 = vadd.f32 %v2028, %v2034
    %s2037 = sld [smem:[#allocation8 + $0x5d]]
    %v2038 = vld [vmem:[%s228 + $0x6] sm:$0xff]
    %v2039 = vld [vmem:[%s228 + $0xe] sm:$0xff]
    %v2040 = vstv %s2037
    %v2041 = vmul.f32 %v2040, %v2038
    %v2042 = vmul.f32 %v2040, %v2039
    %v2043 = vadd.f32 %v2035, %v2041
    %v2044 = vadd.f32 %v2036, %v2042
    %s2045 = sld [smem:[#allocation8 + $0x2d]]
    %v2046 = vld [vmem:[%s153 + $0x6] sm:$0xff]
    %v2047 = vld [vmem:[%s153 + $0xe] sm:$0xff]
    %v2048 = vstv %s2045
    %v2049 = vmul.f32 %v2048, %v2046
    %v2050 = vmul.f32 %v2048, %v2047
    %v2051 = vadd.f32 %v2043, %v2049
    %v2052 = vadd.f32 %v2044, %v2050
    %s2053 = sld [smem:[#allocation8 + $0x5e]]
    %v2054 = vld [vmem:[%s241 + $0x6] sm:$0xff]
    %v2055 = vld [vmem:[%s241 + $0xe] sm:$0xff]
    %v2056 = vstv %s2053
    %v2057 = vmul.f32 %v2056, %v2054
    %v2058 = vmul.f32 %v2056, %v2055
    %v2059 = vadd.f32 %v2051, %v2057
    %v2060 = vadd.f32 %v2052, %v2058
    %s2061 = sld [smem:[#allocation8 + $0x2e]]
    %v2062 = vld [vmem:[%s166 + $0x6] sm:$0xff]
    %v2063 = vld [vmem:[%s166 + $0xe] sm:$0xff]
    %v2064 = vstv %s2061
    %v2065 = vmul.f32 %v2064, %v2062
    %v2066 = vmul.f32 %v2064, %v2063
    %v2067 = vadd.f32 %v2059, %v2065
    %v2068 = vadd.f32 %v2060, %v2066
    %s2069 = sld [smem:[#allocation8 + $0x5f]]
    %v2070 = vld [vmem:[%s254 + $0x6] sm:$0xff]
    %v2071 = vld [vmem:[%s254 + $0xe] sm:$0xff]
    %v2072 = vstv %s2069
    %v2073 = vmul.f32 %v2072, %v2070
    %v2074 = vmul.f32 %v2072, %v2071
    %v2075 = vadd.f32 %v2067, %v2073
    %v2076 = vadd.f32 %v2068, %v2074
    %s2077 = sld [smem:[#allocation8 + $0x2f]]
    %v2078 = vld [vmem:[%s179 + $0x6] sm:$0xff]
    %v2079 = vld [vmem:[%s179 + $0xe] sm:$0xff]
    %v2080 = vstv %s2077
    %v2081 = vmul.f32 %v2080, %v2078
    %v2082 = vmul.f32 %v2080, %v2079
    %v2083 = vadd.f32 %v2075, %v2081
    %v2084 = vadd.f32 %v2076, %v2082
    %s2085 = sld [smem:[#allocation8 + $0x60]]
    %v2086 = vld [vmem:[%s267 + $0x6] sm:$0xff]
    %v2087 = vld [vmem:[%s267 + $0xe] sm:$0xff]
    %v2088 = vstv %s2085
    %v2089 = vmul.f32 %v2088, %v2086
    %v2090 = vmul.f32 %v2088, %v2087
    %v2091 = vadd.f32 %v2083, %v2089
    %v2092 = vadd.f32 %v2084, %v2090
    %s2093 = sld [smem:[#allocation8 + $0x30]]
    %v2094 = vld [vmem:[%s192 + $0x6] sm:$0xff]
    %v2095 = vld [vmem:[%s192 + $0xe] sm:$0xff]
    %v2096 = vstv %s2093
    %v2097 = vmul.f32 %v2096, %v2094
    %v2098 = vmul.f32 %v2096, %v2095
    %v2099 = vadd.f32 %v2091, %v2097
    %v2100 = vadd.f32 %v2092, %v2098
    %s2101 = sld [smem:[#allocation8 + $0x61]]
    %v2102 = vld [vmem:[%s280 + $0x6] sm:$0xff]
    %v2103 = vld [vmem:[%s280 + $0xe] sm:$0xff]
    %v2104 = vstv %s2101
    %v2105 = vmul.f32 %v2104, %v2102
    %v2106 = vmul.f32 %v2104, %v2103
    %v2107 = vadd.f32 %v2099, %v2105
    %v2108 = vadd.f32 %v2100, %v2106
    %v2109 = vxor.u32 %v2107, 2147483648
    %v2110 = vxor.u32 %v2108, 2147483648
    %v2111 = vmul.f32 %v2109, 1.442695
    %v2112 = vpow.pop %v2111
    %v2113 = vmul.f32 %v2110, 1.442695
    %v2114 = vpow.pop %v2113
    %v2115 = vadd.f32 %v2112, 1.0
    %v2116 = vadd.f32 %v2114, 1.0
    %v2117 = vrcp.pop %v2115
    %v2118 = vmul.f32 1.0, %v2117
    %v2119 = vrcp.pop %v2116
    %v2120 = vmul.f32 1.0, %v2119
    %v2121 = vld [vmem:[%s1104] sm:$0xff]
    %v2122 = vld [vmem:[%s1104 + $0x8] sm:$0xff]
    %v2123 = vld [vmem:[%s1104 + $0x10] sm:$0xff]
    %v2124 = vld [vmem:[%s1104 + $0x18] sm:$0xff]
    %v2125 = vld [vmem:[%s1104 + $0x20] sm:$0xff]
    %v2126 = vld [vmem:[%s1104 + $0x28] sm:$0xff]
    %v2127 = vld [vmem:[%s1104 + $0x30] sm:$0xff]
    %v2128 = vld [vmem:[%s1104 + $0x38] sm:$0xff]
    %v2129 = vmul.f32 %v2121, %v2118
    %v2130 = vmul.f32 %v2122, %v2120
    %v2131 = vmul.f32 %v2123, %v2118
    %v2132 = vmul.f32 %v2124, %v2120
    %v2133 = vmul.f32 %v2125, %v2118
    %v2134 = vmul.f32 %v2126, %v2120
    %v2135 = vmul.f32 %v2127, %v2118
    %v2136 = vmul.f32 %v2128, %v2120
    %s2137 = scalar_lea.vmem [#allocation9], 64
    %2138 = vst.msk [vmem:[%s2137] sm:$0xff] %vm55, %v2129
    %2139 = vst.msk [vmem:[%s2137 + $0x8] sm:$0xff] %vm55, %v2130
    %2140 = vst.msk [vmem:[%s2137 + $0x10] sm:$0xff] %vm55, %v2131
    %2141 = vst.msk [vmem:[%s2137 + $0x18] sm:$0xff] %vm55, %v2132
    %2142 = vst.msk [vmem:[%s2137 + $0x20] sm:$0xff] %vm55, %v2133
    %2143 = vst.msk [vmem:[%s2137 + $0x28] sm:$0xff] %vm55, %v2134
    %2144 = vst.msk [vmem:[%s2137 + $0x30] sm:$0xff] %vm55, %v2135
    %2145 = vst.msk [vmem:[%s2137 + $0x38] sm:$0xff] %vm55, %v2136
    // Predicated region
    $region18: #{tpu_custom_call.1} parent=1 // pred_check
      _
    $region19: #{tpu_custom_call.1} parent=1 // pred_check_branch
      %2147 = sbr.rel (0) target = $region21
    $region20: #{tpu_custom_call.1} parent=1 // pred_region
      %s2149 = ssub.s32 2048, 2048
      %2150 = vsyncadd [#allocation6], %s2149
      %s2151 = sshll.u32 [#allocation9], 4
      %s2152 = int_to_ptr.vmem [resolvable:$true] %s2151
      %2157 = dma.vmem_to_hbm [thread:$0]  %s2152, 2048, %s2, [#allocation6], 128, 128, 8
    $region21: #{tpu_custom_call.1} parent=1 // pred_fallthru
      _
    // Predicated region
    $region22: #{tpu_custom_call.1} parent=1 // pred_check
      _
    $region23: #{tpu_custom_call.1} parent=1 // pred_check_branch
      %2159 = sbr.rel (0) target = $region25
    $region24: #{tpu_custom_call.1} parent=1 // pred_region
      %2160 = dma.done [#allocation6], 2048
    $region25: #{tpu_custom_call.1} parent=1 // pred_fallthru
      _
    %2161 = vsyncpa [#allocation5], 1
    %2162 = vsyncpa [#allocation6], 1
    %2163 = vsyncpa [#allocation7], 1

</llo_original>
